<compile_context>
chip_gen: v6e
topology: v6e:2x2x1
jax: 0.10.0
libtpu: 0.0.40
codegen_flags: <defaults>
</compile_context>

<pallas_src>
import math
import functools

import jax
import jax.numpy as jnp
from jax.experimental import pallas as pl
from jax.experimental.pallas import tpu as pltpu

NEG_INF = -1e30
LN_EPS = 1e-5


# ----------------------------- in-kernel helpers -----------------------------

def _layernorm(x, g, b):
    mean = jnp.mean(x, axis=-1, keepdims=True)
    var = jnp.mean((x - mean) ** 2, axis=-1, keepdims=True)
    return (x - mean) * jax.lax.rsqrt(var + LN_EPS) * g + b


def _mha(q, k, v, w_out, mask, num_heads):
    """Multi-head attention for one batch element.

    q:     [Tq, H] f32 (the 1/sqrt(hd) scale is pre-folded into Wq)
    k, v:  [Tk, H] f32
    w_out: [H, H]  bf16 output projection
    mask:  [Tq, Tk] f32 additive mask, or None
    """
    h_dim = q.shape[-1]
    hd = h_dim // num_heads
    out = None
    for h in range(num_heads):                 # static unroll (small num_heads)
        sl = slice(h * hd, (h + 1) * hd)
        s = jax.lax.dot_general(
            q[:, sl].astype(jnp.bfloat16), k[:, sl].astype(jnp.bfloat16),
            (((1,), (1,)), ((), ())), preferred_element_type=jnp.float32)
        if mask is not None:
            s = s + mask
        s = s - jnp.max(s, axis=-1, keepdims=True)
        p = jnp.exp(s)
        p = p * pl.reciprocal(jnp.sum(p, axis=-1, keepdims=True), approx=True)
        o_h = jnp.dot(p.astype(jnp.bfloat16), v[:, sl].astype(jnp.bfloat16),
                      preferred_element_type=jnp.float32)
        # concat_h(o_h) @ W_out == sum_h o_h @ W_out[h*hd:(h+1)*hd, :]
        contrib = jnp.dot(o_h.astype(jnp.bfloat16), w_out[sl, :],
                          preferred_element_type=jnp.float32)
        out = contrib if out is None else out + contrib
    return out


# ------------------------------- fused kernel --------------------------------

def fused_decoder_kernel(x0_ref, mem_ref,
                         w_sqkv_ref, b_sqkv_ref,
                         w_cq_ref, w_ckv_ref, b_ckv_ref,
                         w_out_ref, b_vec_ref,
                         w_ff1_ref, b_ff1_ref, w_ff2_ref,
                         ln_ref, w_vocab_ref, b_vocab_ref,
                         logits_ref, x_sc, *, num_heads):
    layer = pl.program_id(1)
    num_layers = pl.num_programs(1)

    @pl.when(layer == 0)
    def _():
        x_sc[...] = x0_ref[0]

    x = x_sc[...]                     # [T, H] f32, resident across layer steps
    mem = mem_ref[0]                  # [S, H] bf16 (MXU operand only)
    t, h_dim = x.shape

    # Causal additive mask, generated in-kernel (iota + compare on the VPU).
    rows = jax.lax.broadcasted_iota(jnp.int32, (t, t), 0)
    cols = jax.lax.broadcasted_iota(jnp.int32, (t, t), 1)
    causal = jnp.where(cols <= rows, 0.0, NEG_INF).astype(jnp.float32)

    b_vec = b_vec_ref[0]              # [4, H]: (b_cross_q, b_out_self, b_out_cross, b_ff2)
    ln = ln_ref[0]                    # [6, H]: (g1, b1, g2, b2, g3, b3)

    # --- self-attention: fused QKV projection (one [T,H]x[H,3H] matmul) ------
    qkv = jnp.dot(x.astype(jnp.bfloat16), w_sqkv_ref[0],
                  preferred_element_type=jnp.float32) + b_sqkv_ref[0]
    sa = _mha(qkv[:, 0:h_dim], qkv[:, h_dim:2 * h_dim], qkv[:, 2 * h_dim:],
              w_out_ref[0, 0], causal, num_heads) + b_vec[1:2]
    x = _layernorm(x + sa, ln[0:1], ln[1:2])

    # --- cross-attention on encoder memory (fused KV projection) -------------
    q_c = jnp.dot(x.astype(jnp.bfloat16), w_cq_ref[0],
                  preferred_element_type=jnp.float32) + b_vec[0:1]
    kv_c = jnp.dot(mem, w_ckv_ref[0],
                   preferred_element_type=jnp.float32) + b_ckv_ref[0]
    ca = _mha(q_c, kv_c[:, 0:h_dim], kv_c[:, h_dim:2 * h_dim],
              w_out_ref[0, 1], None, num_heads) + b_vec[2:3]
    x = _layernorm(x + ca, ln[2:3], ln[3:4])

    # --- feed-forward (ReLU) + residual + post-LN -----------------------------
    hid = jnp.dot(x.astype(jnp.bfloat16), w_ff1_ref[0],
                  preferred_element_type=jnp.float32) + b_ff1_ref[0]
    hid = jnp.maximum(hid, 0.0)
    ff = jnp.dot(hid.astype(jnp.bfloat16), w_ff2_ref[0],
                 preferred_element_type=jnp.float32) + b_vec[3:4]
    x = _layernorm(x + ff, ln[4:5], ln[5:6])

    x_sc[...] = x

    # --- vocab projection: single lane-dense store on the last layer step ----
    @pl.when(layer == num_layers - 1)
    def _():
        logits_ref[0] = (jnp.dot(x.astype(jnp.bfloat16), w_vocab_ref[...],
                                 preferred_element_type=jnp.float32)
                         + b_vocab_ref[...])


# ---------------------------- parameters & glue -------------------------------

def sinusoidal_pe(max_len, d_model):
    position = jnp.arange(max_len, dtype=jnp.float32)[:, None]
    div_term = jnp.exp(jnp.arange(0, d_model, 2, dtype=jnp.float32)
                       * (-math.log(10000.0) / d_model))
    pe = jnp.zeros((max_len, d_model), jnp.float32)
    pe = pe.at[:, 0::2].set(jnp.sin(position * div_term))
    pe = pe.at[:, 1::2].set(jnp.cos(position * div_term))
    return pe


def init_params(key, config):
    V, H = config['vocab_size'], config['hidden_dim']
    L, F = config['num_layers'], 4 * config['hidden_dim']
    nh = config['num_heads']
    scale = 1.0 / math.sqrt(H // nh)
    keys = jax.random.split(key, 8)

    def normal(k, shape, std=0.02):
        return (std * jax.random.normal(k, shape)).astype(jnp.float32)

    # Self-attn in-projection packed as (Wq | Wk | Wv), pre-transposed for x@W.
    # The 1/sqrt(head_dim) score scale is folded into Wq (Q biases are zero,
    # otherwise they would be scaled too).
    w_self_qkv = normal(keys[1], (L, H, 3 * H))
    w_self_qkv = w_self_qkv.at[:, :, :H].multiply(scale)
    w_cross_q = normal(keys[2], (L, H, H)) * scale

    ln_pattern = jnp.array([1., 0., 1., 0., 1., 0.], jnp.float32)

    params = {
        'embedding': normal(keys[0], (V, H), 1.0),            # nn.Embedding ~ N(0,1)
        'pe': sinusoidal_pe(config['max_length'], H),
        # per-layer stacks, leading-axis indexed inside the kernel
        'w_self_qkv': w_self_qkv.astype(jnp.bfloat16),         # [L, H, 3H]
        'b_self_qkv': jnp.zeros((L, 1, 3 * H), jnp.float32),
        'w_cross_q': w_cross_q.astype(jnp.bfloat16),           # [L, H, H]
        'w_cross_kv': normal(keys[3], (L, H, 2 * H)).astype(jnp.bfloat16),
        'b_cross_kv': jnp.zeros((L, 1, 2 * H), jnp.float32),
        'w_out': normal(keys[4], (L, 2, H, H)).astype(jnp.bfloat16),   # self/cross
        'b_vec': jnp.zeros((L, 4, H), jnp.float32),            # cross_q, out_s, out_c, ff2
        'w_ff1': normal(keys[5], (L, H, F)).astype(jnp.bfloat16),
        'b_ff1': jnp.zeros((L, 1, F), jnp.float32),
        'w_ff2': normal(keys[6], (L, F, H)).astype(jnp.bfloat16),
        'ln': jnp.tile(ln_pattern[None, :, None], (L, 1, H)),  # [L, 6, H]
        # output projection
        'w_vocab': normal(keys[7], (H, V)).astype(jnp.bfloat16),
        'b_vocab': jnp.zeros((1, V), jnp.float32),
    }
    return params


def text_decoder_forward(params, target_ids, encoder_output, config):
    B, T = target_ids.shape
    S = encoder_output.shape[1]
    H = config['hidden_dim']
    V = config['vocab_size']
    L = config['num_layers']
    F = 4 * H
    nh = config['num_heads']

    # Embedding lookup + positional encoding (plain-JAX glue).
    x = jnp.take(params['embedding'], target_ids, axis=0)            # [B, T, H]
    x = (x + params['pe'][:T][None, :, :]).astype(jnp.float32)
    mem = encoder_output.astype(jnp.bfloat16)                        # [B, S, H]

    def batch_spec(shape):
        nd = len(shape)
        return pl.BlockSpec((1,) + shape, lambda b, l, _nd=nd: (b,) + (0,) * _nd)

    def layer_spec(shape):
        nd = len(shape)
        return pl.BlockSpec((1,) + shape, lambda b, l, _nd=nd: (l,) + (0,) * _nd)

    def const_spec(shape):
        nd = len(shape)
        return pl.BlockSpec(shape, lambda b, l, _nd=nd: (0,) * _nd)

    logits = pl.pallas_call(
        functools.partial(fused_decoder_kernel, num_heads=nh),
        grid=(B, L),
        in_specs=[
            batch_spec((T, H)),           # x0
            batch_spec((S, H)),           # encoder memory (bf16)
            layer_spec((H, 3 * H)),       # fused self-attn QKV weight
            layer_spec((1, 3 * H)),       # fused self-attn QKV bias
            layer_spec((H, H)),           # cross-attn Q weight (scale folded)
            layer_spec((H, 2 * H)),       # fused cross-attn KV weight
            layer_spec((1, 2 * H)),       # fused cross-attn KV bias
            layer_spec((2, H, H)),        # out-proj weights (self, cross)
            layer_spec((4, H)),           # packed H-wide biases
            layer_spec((H, F)),           # ffn linear1 W
            layer_spec((1, F)),           # ffn linear1 b
            layer_spec((F, H)),           # ffn linear2 W
            layer_spec((6, H)),           # layernorm gammas / betas
            const_spec((H, V)),           # vocab projection W (resident)
            const_spec((1, V)),           # vocab projection b (resident)
        ],
        out_specs=pl.BlockSpec((1, T, V), lambda b, l: (b, 0, 0)),
        out_shape=jax.ShapeDtypeStruct((B, T, V), jnp.float32),
        scratch_shapes=[pltpu.VMEM((T, H), jnp.float32)],
        compiler_params=pltpu.CompilerParams(
            dimension_semantics=("parallel", "arbitrary")),
    )(x, mem,
      params['w_self_qkv'], params['b_self_qkv'],
      params['w_cross_q'], params['w_cross_kv'], params['b_cross_kv'],
      params['w_out'], params['b_vec'],
      params['w_ff1'], params['b_ff1'], params['w_ff2'],
      params['ln'], params['w_vocab'], params['b_vocab'])

    return logits


# ----------------------------------- main -------------------------------------

if __name__ == "__main__":
    config = {
        'vocab_size': 128,
        'hidden_dim': 32,
        'num_heads': 4,
        'num_layers': 2,
        'max_length': 64,
        'dropout': 0.1,
    }
    B, T, S = 2, 8, 8

    key = jax.random.PRNGKey(0)
    k_param, k_ids, k_mem = jax.random.split(key, 3)

    params = init_params(k_param, config)
    target_ids = jax.random.randint(k_ids, (B, T), 0, config['vocab_size'],
                                    dtype=jnp.int32)
    encoder_output = jax.random.normal(
        k_mem, (B, S, config['hidden_dim']), dtype=jnp.float32)

    logits = text_decoder_forward(params, target_ids, encoder_output, config)
    logits = jax.block_until_ready(logits)

    assert logits.shape == (B, T, config['vocab_size'])
    assert bool(jnp.all(jnp.isfinite(logits)))
    print("KERNEL_OK")
</pallas_src>

<mosaic_0001>
module attributes {stable_mosaic.version = 11 : i64} {
  func.func @fused_decoder_kernel(%arg0: i32, %arg1: i32, %arg2: memref<1x8x32xf32, #tpu.memory_space<vmem>>, %arg3: memref<1x8x32xbf16, #tpu.memory_space<vmem>>, %arg4: memref<1x32x96xbf16, #tpu.memory_space<vmem>>, %arg5: memref<1x1x96xf32, #tpu.memory_space<vmem>>, %arg6: memref<1x32x32xbf16, #tpu.memory_space<vmem>>, %arg7: memref<1x32x64xbf16, #tpu.memory_space<vmem>>, %arg8: memref<1x1x64xf32, #tpu.memory_space<vmem>>, %arg9: memref<1x2x32x32xbf16, #tpu.memory_space<vmem>>, %arg10: memref<1x4x32xf32, #tpu.memory_space<vmem>>, %arg11: memref<1x32x128xbf16, #tpu.memory_space<vmem>>, %arg12: memref<1x1x128xf32, #tpu.memory_space<vmem>>, %arg13: memref<1x128x32xbf16, #tpu.memory_space<vmem>>, %arg14: memref<1x6x32xf32, #tpu.memory_space<vmem>>, %arg15: memref<32x128xbf16, #tpu.memory_space<vmem>>, %arg16: memref<1x128xf32, #tpu.memory_space<vmem>>, %arg17: memref<1x8x128xf32, #tpu.memory_space<vmem>>, %arg18: memref<8x32xf32, #tpu.memory_space<vmem>>) attributes {dimension_semantics = [#tpu.dimension_semantics<parallel>, #tpu.dimension_semantics<arbitrary>], iteration_bounds = array<i64: 2, 2>, scalar_prefetch = 0 : i64, scratch_operands = 1 : i64, tpu.core_type = #tpu.core_type<tc>, window_params = [{transform_indices = @transform_0, window_bounds = array<i64: 1, 8, 32>}, {transform_indices = @transform_1, window_bounds = array<i64: 1, 8, 32>}, {transform_indices = @transform_2, window_bounds = array<i64: 1, 32, 96>}, {transform_indices = @transform_3, window_bounds = array<i64: 1, 1, 96>}, {transform_indices = @transform_4, window_bounds = array<i64: 1, 32, 32>}, {transform_indices = @transform_5, window_bounds = array<i64: 1, 32, 64>}, {transform_indices = @transform_6, window_bounds = array<i64: 1, 1, 64>}, {transform_indices = @transform_7, window_bounds = array<i64: 1, 2, 32, 32>}, {transform_indices = @transform_8, window_bounds = array<i64: 1, 4, 32>}, {transform_indices = @transform_9, window_bounds = array<i64: 1, 32, 128>}, {transform_indices = @transform_10, window_bounds = array<i64: 1, 1, 128>}, {transform_indices = @transform_11, window_bounds = array<i64: 1, 128, 32>}, {transform_indices = @transform_12, window_bounds = array<i64: 1, 6, 32>}, {pipeline_mode = #tpu.pipeline_mode<synchronous>, transform_indices = @transform_13, window_bounds = array<i64: 32, 128>}, {pipeline_mode = #tpu.pipeline_mode<synchronous>, transform_indices = @transform_14, window_bounds = array<i64: 1, 128>}, {transform_indices = @transform_15, window_bounds = array<i64: 1, 8, 128>}]} {
    %c0_i32 = arith.constant 0 : i32
    %0 = arith.cmpi eq, %arg1, %c0_i32 : i32
    %1 = arith.extui %0 : i1 to i32
    %c0_i32_0 = arith.constant 0 : i32
    %2 = arith.cmpi ne, %1, %c0_i32_0 : i32
    scf.if %2 {
      %c0_107 = arith.constant 0 : index
      %c0_108 = arith.constant 0 : index
      %c0_109 = arith.constant 0 : index
      %335 = vector.load %arg2[%c0_107, %c0_108, %c0_109] : memref<1x8x32xf32, #tpu.memory_space<vmem>>, vector<1x8x32xf32>
      %336 = vector.shape_cast %335 : vector<1x8x32xf32> to vector<8x32xf32>
      %c0_110 = arith.constant 0 : index
      %c0_111 = arith.constant 0 : index
      %337 = vector.load %arg18[%c0_110, %c0_111] : memref<8x32xf32, #tpu.memory_space<vmem>>, vector<8x32xf32>
      tpu.vector_store %arg18[%c0_110, %c0_111], %336 {strides = array<i32>} : memref<8x32xf32, #tpu.memory_space<vmem>>, vector<8x32xf32>,
    } else {
    }
    %c0 = arith.constant 0 : index
    %c0_1 = arith.constant 0 : index
    %3 = vector.load %arg18[%c0, %c0_1] : memref<8x32xf32, #tpu.memory_space<vmem>>, vector<8x32xf32>
    %c0_2 = arith.constant 0 : index
    %c0_3 = arith.constant 0 : index
    %c0_4 = arith.constant 0 : index
    %4 = vector.load %arg3[%c0_2, %c0_3, %c0_4] : memref<1x8x32xbf16, #tpu.memory_space<vmem>>, vector<1x8x32xbf16>
    %5 = vector.shape_cast %4 : vector<1x8x32xbf16> to vector<8x32xbf16>
    %6 = tpu.iota {dimensions = array<i32: 0>} : vector<8x8xi32>
    %7 = tpu.iota {dimensions = array<i32: 1>} : vector<8x8xi32>
    %8 = arith.cmpi sle, %7, %6 : vector<8x8xi32>
    %cst = arith.constant 0.000000e+00 : f32
    %cst_5 = arith.constant -1.000000e+30 : f32
    %9 = vector.broadcast %cst : f32 to vector<8x8xf32>
    %10 = vector.broadcast %cst_5 : f32 to vector<8x8xf32>
    %11 = arith.select %8, %9, %10 : vector<8x8xi1>, vector<8x8xf32>
    %c0_6 = arith.constant 0 : index
    %c0_7 = arith.constant 0 : index
    %c0_8 = arith.constant 0 : index
    %12 = vector.load %arg10[%c0_6, %c0_7, %c0_8] : memref<1x4x32xf32, #tpu.memory_space<vmem>>, vector<1x4x32xf32>
    %13 = vector.shape_cast %12 : vector<1x4x32xf32> to vector<4x32xf32>
    %c0_9 = arith.constant 0 : index
    %c0_10 = arith.constant 0 : index
    %c0_11 = arith.constant 0 : index
    %14 = vector.load %arg14[%c0_9, %c0_10, %c0_11] : memref<1x6x32xf32, #tpu.memory_space<vmem>>, vector<1x6x32xf32>
    %15 = vector.shape_cast %14 : vector<1x6x32xf32> to vector<6x32xf32>
    %16 = arith.truncf %3 : vector<8x32xf32> to vector<8x32xbf16>
    %c0_12 = arith.constant 0 : index
    %c0_13 = arith.constant 0 : index
    %c0_14 = arith.constant 0 : index
    %17 = vector.load %arg4[%c0_12, %c0_13, %c0_14] : memref<1x32x96xbf16, #tpu.memory_space<vmem>>, vector<1x32x96xbf16>
    %18 = vector.shape_cast %17 : vector<1x32x96xbf16> to vector<32x96xbf16>
    %cst_15 = arith.constant dense<0.000000e+00> : vector<8x96xf32>
    %19 = tpu.matmul %16, %18, %cst_15 {dimension_numbers = #tpu.dot_dimension_numbers<[1], [0], [0], [1], [0, 0, 1, 1], [], []>} : vector<8x32xbf16>, vector<32x96xbf16>, vector<8x96xf32> -> vector<8x96xf32>
    %c0_16 = arith.constant 0 : index
    %c0_17 = arith.constant 0 : index
    %c0_18 = arith.constant 0 : index
    %20 = vector.load %arg5[%c0_16, %c0_17, %c0_18] : memref<1x1x96xf32, #tpu.memory_space<vmem>>, vector<1x1x96xf32>
    %21 = vector.shape_cast %20 : vector<1x1x96xf32> to vector<1x96xf32>
    %22 = vector.broadcast %21 : vector<1x96xf32> to vector<8x96xf32>
    %23 = arith.addf %19, %22 : vector<8x96xf32>
    %24 = vector.extract_strided_slice %23 {offsets = [0, 0], sizes = [8, 32], strides = [1, 1]} : vector<8x96xf32> to vector<8x32xf32>
    %25 = vector.extract_strided_slice %23 {offsets = [0, 32], sizes = [8, 32], strides = [1, 1]} : vector<8x96xf32> to vector<8x32xf32>
    %26 = vector.extract_strided_slice %23 {offsets = [0, 64], sizes = [8, 32], strides = [1, 1]} : vector<8x96xf32> to vector<8x32xf32>
    %c0_19 = arith.constant 0 : index
    %c0_20 = arith.constant 0 : index
    %c0_21 = arith.constant 0 : index
    %c0_22 = arith.constant 0 : index
    %27 = vector.load %arg9[%c0_19, %c0_20, %c0_21, %c0_22] : memref<1x2x32x32xbf16, #tpu.memory_space<vmem>>, vector<1x1x32x32xbf16>
    %28 = vector.shape_cast %27 : vector<1x1x32x32xbf16> to vector<32x32xbf16>
    %29 = vector.extract_strided_slice %24 {offsets = [0, 0], sizes = [8, 8], strides = [1, 1]} : vector<8x32xf32> to vector<8x8xf32>
    %30 = arith.truncf %29 : vector<8x8xf32> to vector<8x8xbf16>
    %31 = vector.extract_strided_slice %25 {offsets = [0, 0], sizes = [8, 8], strides = [1, 1]} : vector<8x32xf32> to vector<8x8xf32>
    %32 = arith.truncf %31 : vector<8x8xf32> to vector<8x8xbf16>
    %cst_23 = arith.constant dense<0.000000e+00> : vector<8x8xf32>
    %33 = tpu.matmul %30, %32, %cst_23 {dimension_numbers = #tpu.dot_dimension_numbers<[1], [1], [0], [0], [0, 0, 1, 0], [], []>} : vector<8x8xbf16>, vector<8x8xbf16>, vector<8x8xf32> -> vector<8x8xf32>
    %34 = arith.addf %33, %11 : vector<8x8xf32>
    %cst_24 = arith.constant dense<0xFF800000> : vector<8xf32>
    %35 = vector.multi_reduction <maximumf>, %34, %cst_24 [1] : vector<8x8xf32> to vector<8xf32>
    %36 = vector.shape_cast %35 : vector<8xf32> to vector<8x1xf32>
    %37 = vector.broadcast %36 : vector<8x1xf32> to vector<8x8xf32>
    %38 = arith.subf %34, %37 : vector<8x8xf32>
    %39 = math.exp %38 : vector<8x8xf32>
    %cst_25 = arith.constant dense<0.000000e+00> : vector<8xf32>
    %40 = vector.multi_reduction <add>, %39, %cst_25 [1] : vector<8x8xf32> to vector<8xf32>
    %41 = vector.shape_cast %40 : vector<8xf32> to vector<8x1xf32>
    %42 = tpu.reciprocal %41 {approx = true} : vector<8x1xf32> -> vector<8x1xf32>
    %43 = vector.broadcast %42 : vector<8x1xf32> to vector<8x8xf32>
    %44 = arith.mulf %39, %43 : vector<8x8xf32>
    %45 = arith.truncf %44 : vector<8x8xf32> to vector<8x8xbf16>
    %46 = vector.extract_strided_slice %26 {offsets = [0, 0], sizes = [8, 8], strides = [1, 1]} : vector<8x32xf32> to vector<8x8xf32>
    %47 = arith.truncf %46 : vector<8x8xf32> to vector<8x8xbf16>
    %cst_26 = arith.constant dense<0.000000e+00> : vector<8x8xf32>
    %48 = tpu.matmul %45, %47, %cst_26 {dimension_numbers = #tpu.dot_dimension_numbers<[1], [0], [0], [1], [0, 0, 1, 1], [], []>} : vector<8x8xbf16>, vector<8x8xbf16>, vector<8x8xf32> -> vector<8x8xf32>
    %49 = arith.truncf %48 : vector<8x8xf32> to vector<8x8xbf16>
    %50 = vector.extract_strided_slice %28 {offsets = [0, 0], sizes = [8, 32], strides = [1, 1]} : vector<32x32xbf16> to vector<8x32xbf16>
    %cst_27 = arith.constant dense<0.000000e+00> : vector<8x32xf32>
    %51 = tpu.matmul %49, %50, %cst_27 {dimension_numbers = #tpu.dot_dimension_numbers<[1], [0], [0], [1], [0, 0, 1, 1], [], []>} : vector<8x8xbf16>, vector<8x32xbf16>, vector<8x32xf32> -> vector<8x32xf32>
    %52 = vector.extract_strided_slice %24 {offsets = [0, 8], sizes = [8, 8], strides = [1, 1]} : vector<8x32xf32> to vector<8x8xf32>
    %53 = arith.truncf %52 : vector<8x8xf32> to vector<8x8xbf16>
    %54 = vector.extract_strided_slice %25 {offsets = [0, 8], sizes = [8, 8], strides = [1, 1]} : vector<8x32xf32> to vector<8x8xf32>
    %55 = arith.truncf %54 : vector<8x8xf32> to vector<8x8xbf16>
    %cst_28 = arith.constant dense<0.000000e+00> : vector<8x8xf32>
    %56 = tpu.matmul %53, %55, %cst_28 {dimension_numbers = #tpu.dot_dimension_numbers<[1], [1], [0], [0], [0, 0, 1, 0], [], []>} : vector<8x8xbf16>, vector<8x8xbf16>, vector<8x8xf32> -> vector<8x8xf32>
    %57 = arith.addf %56, %11 : vector<8x8xf32>
    %cst_29 = arith.constant dense<0xFF800000> : vector<8xf32>
    %58 = vector.multi_reduction <maximumf>, %57, %cst_29 [1] : vector<8x8xf32> to vector<8xf32>
    %59 = vector.shape_cast %58 : vector<8xf32> to vector<8x1xf32>
    %60 = vector.broadcast %59 : vector<8x1xf32> to vector<8x8xf32>
    %61 = arith.subf %57, %60 : vector<8x8xf32>
    %62 = math.exp %61 : vector<8x8xf32>
    %cst_30 = arith.constant dense<0.000000e+00> : vector<8xf32>
    %63 = vector.multi_reduction <add>, %62, %cst_30 [1] : vector<8x8xf32> to vector<8xf32>
    %64 = vector.shape_cast %63 : vector<8xf32> to vector<8x1xf32>
    %65 = tpu.reciprocal %64 {approx = true} : vector<8x1xf32> -> vector<8x1xf32>
    %66 = vector.broadcast %65 : vector<8x1xf32> to vector<8x8xf32>
    %67 = arith.mulf %62, %66 : vector<8x8xf32>
    %68 = arith.truncf %67 : vector<8x8xf32> to vector<8x8xbf16>
    %69 = vector.extract_strided_slice %26 {offsets = [0, 8], sizes = [8, 8], strides = [1, 1]} : vector<8x32xf32> to vector<8x8xf32>
    %70 = arith.truncf %69 : vector<8x8xf32> to vector<8x8xbf16>
    %cst_31 = arith.constant dense<0.000000e+00> : vector<8x8xf32>
    %71 = tpu.matmul %68, %70, %cst_31 {dimension_numbers = #tpu.dot_dimension_numbers<[1], [0], [0], [1], [0, 0, 1, 1], [], []>} : vector<8x8xbf16>, vector<8x8xbf16>, vector<8x8xf32> -> vector<8x8xf32>
    %72 = arith.truncf %71 : vector<8x8xf32> to vector<8x8xbf16>
    %73 = vector.extract_strided_slice %28 {offsets = [8, 0], sizes = [8, 32], strides = [1, 1]} : vector<32x32xbf16> to vector<8x32xbf16>
    %cst_32 = arith.constant dense<0.000000e+00> : vector<8x32xf32>
    %74 = tpu.matmul %72, %73, %cst_32 {dimension_numbers = #tpu.dot_dimension_numbers<[1], [0], [0], [1], [0, 0, 1, 1], [], []>} : vector<8x8xbf16>, vector<8x32xbf16>, vector<8x32xf32> -> vector<8x32xf32>
    %75 = arith.addf %51, %74 : vector<8x32xf32>
    %76 = vector.extract_strided_slice %24 {offsets = [0, 16], sizes = [8, 8], strides = [1, 1]} : vector<8x32xf32> to vector<8x8xf32>
    %77 = arith.truncf %76 : vector<8x8xf32> to vector<8x8xbf16>
    %78 = vector.extract_strided_slice %25 {offsets = [0, 16], sizes = [8, 8], strides = [1, 1]} : vector<8x32xf32> to vector<8x8xf32>
    %79 = arith.truncf %78 : vector<8x8xf32> to vector<8x8xbf16>
    %cst_33 = arith.constant dense<0.000000e+00> : vector<8x8xf32>
    %80 = tpu.matmul %77, %79, %cst_33 {dimension_numbers = #tpu.dot_dimension_numbers<[1], [1], [0], [0], [0, 0, 1, 0], [], []>} : vector<8x8xbf16>, vector<8x8xbf16>, vector<8x8xf32> -> vector<8x8xf32>
    %81 = arith.addf %80, %11 : vector<8x8xf32>
    %cst_34 = arith.constant dense<0xFF800000> : vector<8xf32>
    %82 = vector.multi_reduction <maximumf>, %81, %cst_34 [1] : vector<8x8xf32> to vector<8xf32>
    %83 = vector.shape_cast %82 : vector<8xf32> to vector<8x1xf32>
    %84 = vector.broadcast %83 : vector<8x1xf32> to vector<8x8xf32>
    %85 = arith.subf %81, %84 : vector<8x8xf32>
    %86 = math.exp %85 : vector<8x8xf32>
    %cst_35 = arith.constant dense<0.000000e+00> : vector<8xf32>
    %87 = vector.multi_reduction <add>, %86, %cst_35 [1] : vector<8x8xf32> to vector<8xf32>
    %88 = vector.shape_cast %87 : vector<8xf32> to vector<8x1xf32>
    %89 = tpu.reciprocal %88 {approx = true} : vector<8x1xf32> -> vector<8x1xf32>
    %90 = vector.broadcast %89 : vector<8x1xf32> to vector<8x8xf32>
    %91 = arith.mulf %86, %90 : vector<8x8xf32>
    %92 = arith.truncf %91 : vector<8x8xf32> to vector<8x8xbf16>
    %93 = vector.extract_strided_slice %26 {offsets = [0, 16], sizes = [8, 8], strides = [1, 1]} : vector<8x32xf32> to vector<8x8xf32>
    %94 = arith.truncf %93 : vector<8x8xf32> to vector<8x8xbf16>
    %cst_36 = arith.constant dense<0.000000e+00> : vector<8x8xf32>
    %95 = tpu.matmul %92, %94, %cst_36 {dimension_numbers = #tpu.dot_dimension_numbers<[1], [0], [0], [1], [0, 0, 1, 1], [], []>} : vector<8x8xbf16>, vector<8x8xbf16>, vector<8x8xf32> -> vector<8x8xf32>
    %96 = arith.truncf %95 : vector<8x8xf32> to vector<8x8xbf16>
    %97 = vector.extract_strided_slice %28 {offsets = [16, 0], sizes = [8, 32], strides = [1, 1]} : vector<32x32xbf16> to vector<8x32xbf16>
    %cst_37 = arith.constant dense<0.000000e+00> : vector<8x32xf32>
    %98 = tpu.matmul %96, %97, %cst_37 {dimension_numbers = #tpu.dot_dimension_numbers<[1], [0], [0], [1], [0, 0, 1, 1], [], []>} : vector<8x8xbf16>, vector<8x32xbf16>, vector<8x32xf32> -> vector<8x32xf32>
    %99 = arith.addf %75, %98 : vector<8x32xf32>
    %100 = vector.extract_strided_slice %24 {offsets = [0, 24], sizes = [8, 8], strides = [1, 1]} : vector<8x32xf32> to vector<8x8xf32>
    %101 = arith.truncf %100 : vector<8x8xf32> to vector<8x8xbf16>
    %102 = vector.extract_strided_slice %25 {offsets = [0, 24], sizes = [8, 8], strides = [1, 1]} : vector<8x32xf32> to vector<8x8xf32>
    %103 = arith.truncf %102 : vector<8x8xf32> to vector<8x8xbf16>
    %cst_38 = arith.constant dense<0.000000e+00> : vector<8x8xf32>
    %104 = tpu.matmul %101, %103, %cst_38 {dimension_numbers = #tpu.dot_dimension_numbers<[1], [1], [0], [0], [0, 0, 1, 0], [], []>} : vector<8x8xbf16>, vector<8x8xbf16>, vector<8x8xf32> -> vector<8x8xf32>
    %105 = arith.addf %104, %11 : vector<8x8xf32>
    %cst_39 = arith.constant dense<0xFF800000> : vector<8xf32>
    %106 = vector.multi_reduction <maximumf>, %105, %cst_39 [1] : vector<8x8xf32> to vector<8xf32>
    %107 = vector.shape_cast %106 : vector<8xf32> to vector<8x1xf32>
    %108 = vector.broadcast %107 : vector<8x1xf32> to vector<8x8xf32>
    %109 = arith.subf %105, %108 : vector<8x8xf32>
    %110 = math.exp %109 : vector<8x8xf32>
    %cst_40 = arith.constant dense<0.000000e+00> : vector<8xf32>
    %111 = vector.multi_reduction <add>, %110, %cst_40 [1] : vector<8x8xf32> to vector<8xf32>
    %112 = vector.shape_cast %111 : vector<8xf32> to vector<8x1xf32>
    %113 = tpu.reciprocal %112 {approx = true} : vector<8x1xf32> -> vector<8x1xf32>
    %114 = vector.broadcast %113 : vector<8x1xf32> to vector<8x8xf32>
    %115 = arith.mulf %110, %114 : vector<8x8xf32>
    %116 = arith.truncf %115 : vector<8x8xf32> to vector<8x8xbf16>
    %117 = vector.extract_strided_slice %26 {offsets = [0, 24], sizes = [8, 8], strides = [1, 1]} : vector<8x32xf32> to vector<8x8xf32>
    %118 = arith.truncf %117 : vector<8x8xf32> to vector<8x8xbf16>
    %cst_41 = arith.constant dense<0.000000e+00> : vector<8x8xf32>
    %119 = tpu.matmul %116, %118, %cst_41 {dimension_numbers = #tpu.dot_dimension_numbers<[1], [0], [0], [1], [0, 0, 1, 1], [], []>} : vector<8x8xbf16>, vector<8x8xbf16>, vector<8x8xf32> -> vector<8x8xf32>
    %120 = arith.truncf %119 : vector<8x8xf32> to vector<8x8xbf16>
    %121 = vector.extract_strided_slice %28 {offsets = [24, 0], sizes = [8, 32], strides = [1, 1]} : vector<32x32xbf16> to vector<8x32xbf16>
    %cst_42 = arith.constant dense<0.000000e+00> : vector<8x32xf32>
    %122 = tpu.matmul %120, %121, %cst_42 {dimension_numbers = #tpu.dot_dimension_numbers<[1], [0], [0], [1], [0, 0, 1, 1], [], []>} : vector<8x8xbf16>, vector<8x32xbf16>, vector<8x32xf32> -> vector<8x32xf32>
    %123 = arith.addf %99, %122 : vector<8x32xf32>
    %124 = vector.extract_strided_slice %13 {offsets = [1, 0], sizes = [1, 32], strides = [1, 1]} : vector<4x32xf32> to vector<1x32xf32>
    %125 = vector.broadcast %124 : vector<1x32xf32> to vector<8x32xf32>
    %126 = arith.addf %123, %125 : vector<8x32xf32>
    %127 = arith.addf %3, %126 : vector<8x32xf32>
    %128 = vector.extract_strided_slice %15 {offsets = [0, 0], sizes = [1, 32], strides = [1, 1]} : vector<6x32xf32> to vector<1x32xf32>
    %129 = vector.extract_strided_slice %15 {offsets = [1, 0], sizes = [1, 32], strides = [1, 1]} : vector<6x32xf32> to vector<1x32xf32>
    %cst_43 = arith.constant dense<0.000000e+00> : vector<8xf32>
    %130 = vector.multi_reduction <add>, %127, %cst_43 [1] : vector<8x32xf32> to vector<8xf32>
    %131 = vector.shape_cast %130 : vector<8xf32> to vector<8x1xf32>
    %cst_44 = arith.constant 3.200000e+01 : f32
    %132 = vector.broadcast %cst_44 : f32 to vector<8x1xf32>
    %133 = arith.divf %131, %132 : vector<8x1xf32>
    %134 = vector.broadcast %133 : vector<8x1xf32> to vector<8x32xf32>
    %135 = arith.subf %127, %134 : vector<8x32xf32>
    %136 = arith.mulf %135, %135 : vector<8x32xf32>
    %cst_45 = arith.constant dense<0.000000e+00> : vector<8xf32>
    %137 = vector.multi_reduction <add>, %136, %cst_45 [1] : vector<8x32xf32> to vector<8xf32>
    %138 = vector.shape_cast %137 : vector<8xf32> to vector<8x1xf32>
    %cst_46 = arith.constant 3.200000e+01 : f32
    %139 = vector.broadcast %cst_46 : f32 to vector<8x1xf32>
    %140 = arith.divf %138, %139 : vector<8x1xf32>
    %141 = vector.broadcast %133 : vector<8x1xf32> to vector<8x32xf32>
    %142 = arith.subf %127, %141 : vector<8x32xf32>
    %cst_47 = arith.constant 9.99999974E-6 : f32
    %143 = vector.broadcast %cst_47 : f32 to vector<8x1xf32>
    %144 = arith.addf %140, %143 : vector<8x1xf32>
    %145 = math.rsqrt %144 : vector<8x1xf32>
    %146 = vector.broadcast %145 : vector<8x1xf32> to vector<8x32xf32>
    %147 = arith.mulf %142, %146 : vector<8x32xf32>
    %148 = vector.broadcast %128 : vector<1x32xf32> to vector<8x32xf32>
    %149 = arith.mulf %147, %148 : vector<8x32xf32>
    %150 = vector.broadcast %129 : vector<1x32xf32> to vector<8x32xf32>
    %151 = arith.addf %149, %150 : vector<8x32xf32>
    %152 = arith.truncf %151 : vector<8x32xf32> to vector<8x32xbf16>
    %c0_48 = arith.constant 0 : index
    %c0_49 = arith.constant 0 : index
    %c0_50 = arith.constant 0 : index
    %153 = vector.load %arg6[%c0_48, %c0_49, %c0_50] : memref<1x32x32xbf16, #tpu.memory_space<vmem>>, vector<1x32x32xbf16>
    %154 = vector.shape_cast %153 : vector<1x32x32xbf16> to vector<32x32xbf16>
    %cst_51 = arith.constant dense<0.000000e+00> : vector<8x32xf32>
    %155 = tpu.matmul %152, %154, %cst_51 {dimension_numbers = #tpu.dot_dimension_numbers<[1], [0], [0], [1], [0, 0, 1, 1], [], []>} : vector<8x32xbf16>, vector<32x32xbf16>, vector<8x32xf32> -> vector<8x32xf32>
    %156 = vector.extract_strided_slice %13 {offsets = [0, 0], sizes = [1, 32], strides = [1, 1]} : vector<4x32xf32> to vector<1x32xf32>
    %157 = vector.broadcast %156 : vector<1x32xf32> to vector<8x32xf32>
    %158 = arith.addf %155, %157 : vector<8x32xf32>
    %c0_52 = arith.constant 0 : index
    %c0_53 = arith.constant 0 : index
    %c0_54 = arith.constant 0 : index
    %159 = vector.load %arg7[%c0_52, %c0_53, %c0_54] : memref<1x32x64xbf16, #tpu.memory_space<vmem>>, vector<1x32x64xbf16>
    %160 = vector.shape_cast %159 : vector<1x32x64xbf16> to vector<32x64xbf16>
    %cst_55 = arith.constant dense<0.000000e+00> : vector<8x64xf32>
    %161 = tpu.matmul %5, %160, %cst_55 {dimension_numbers = #tpu.dot_dimension_numbers<[1], [0], [0], [1], [0, 0, 1, 1], [], []>} : vector<8x32xbf16>, vector<32x64xbf16>, vector<8x64xf32> -> vector<8x64xf32>
    %c0_56 = arith.constant 0 : index
    %c0_57 = arith.constant 0 : index
    %c0_58 = arith.constant 0 : index
    %162 = vector.load %arg8[%c0_56, %c0_57, %c0_58] : memref<1x1x64xf32, #tpu.memory_space<vmem>>, vector<1x1x64xf32>
    %163 = vector.shape_cast %162 : vector<1x1x64xf32> to vector<1x64xf32>
    %164 = vector.broadcast %163 : vector<1x64xf32> to vector<8x64xf32>
    %165 = arith.addf %161, %164 : vector<8x64xf32>
    %166 = vector.extract_strided_slice %165 {offsets = [0, 0], sizes = [8, 32], strides = [1, 1]} : vector<8x64xf32> to vector<8x32xf32>
    %167 = vector.extract_strided_slice %165 {offsets = [0, 32], sizes = [8, 32], strides = [1, 1]} : vector<8x64xf32> to vector<8x32xf32>
    %c0_59 = arith.constant 0 : index
    %c1 = arith.constant 1 : index
    %c0_60 = arith.constant 0 : index
    %c0_61 = arith.constant 0 : index
    %168 = vector.load %arg9[%c0_59, %c1, %c0_60, %c0_61] : memref<1x2x32x32xbf16, #tpu.memory_space<vmem>>, vector<1x1x32x32xbf16>
    %169 = vector.shape_cast %168 : vector<1x1x32x32xbf16> to vector<32x32xbf16>
    %170 = vector.extract_strided_slice %158 {offsets = [0, 0], sizes = [8, 8], strides = [1, 1]} : vector<8x32xf32> to vector<8x8xf32>
    %171 = arith.truncf %170 : vector<8x8xf32> to vector<8x8xbf16>
    %172 = vector.extract_strided_slice %166 {offsets = [0, 0], sizes = [8, 8], strides = [1, 1]} : vector<8x32xf32> to vector<8x8xf32>
    %173 = arith.truncf %172 : vector<8x8xf32> to vector<8x8xbf16>
    %cst_62 = arith.constant dense<0.000000e+00> : vector<8x8xf32>
    %174 = tpu.matmul %171, %173, %cst_62 {dimension_numbers = #tpu.dot_dimension_numbers<[1], [1], [0], [0], [0, 0, 1, 0], [], []>} : vector<8x8xbf16>, vector<8x8xbf16>, vector<8x8xf32> -> vector<8x8xf32>
    %cst_63 = arith.constant dense<0xFF800000> : vector<8xf32>
    %175 = vector.multi_reduction <maximumf>, %174, %cst_63 [1] : vector<8x8xf32> to vector<8xf32>
    %176 = vector.shape_cast %175 : vector<8xf32> to vector<8x1xf32>
    %177 = vector.broadcast %176 : vector<8x1xf32> to vector<8x8xf32>
    %178 = arith.subf %174, %177 : vector<8x8xf32>
    %179 = math.exp %178 : vector<8x8xf32>
    %cst_64 = arith.constant dense<0.000000e+00> : vector<8xf32>
    %180 = vector.multi_reduction <add>, %179, %cst_64 [1] : vector<8x8xf32> to vector<8xf32>
    %181 = vector.shape_cast %180 : vector<8xf32> to vector<8x1xf32>
    %182 = tpu.reciprocal %181 {approx = true} : vector<8x1xf32> -> vector<8x1xf32>
    %183 = vector.broadcast %182 : vector<8x1xf32> to vector<8x8xf32>
    %184 = arith.mulf %179, %183 : vector<8x8xf32>
    %185 = arith.truncf %184 : vector<8x8xf32> to vector<8x8xbf16>
    %186 = vector.extract_strided_slice %167 {offsets = [0, 0], sizes = [8, 8], strides = [1, 1]} : vector<8x32xf32> to vector<8x8xf32>
    %187 = arith.truncf %186 : vector<8x8xf32> to vector<8x8xbf16>
    %cst_65 = arith.constant dense<0.000000e+00> : vector<8x8xf32>
    %188 = tpu.matmul %185, %187, %cst_65 {dimension_numbers = #tpu.dot_dimension_numbers<[1], [0], [0], [1], [0, 0, 1, 1], [], []>} : vector<8x8xbf16>, vector<8x8xbf16>, vector<8x8xf32> -> vector<8x8xf32>
    %189 = arith.truncf %188 : vector<8x8xf32> to vector<8x8xbf16>
    %190 = vector.extract_strided_slice %169 {offsets = [0, 0], sizes = [8, 32], strides = [1, 1]} : vector<32x32xbf16> to vector<8x32xbf16>
    %cst_66 = arith.constant dense<0.000000e+00> : vector<8x32xf32>
    %191 = tpu.matmul %189, %190, %cst_66 {dimension_numbers = #tpu.dot_dimension_numbers<[1], [0], [0], [1], [0, 0, 1, 1], [], []>} : vector<8x8xbf16>, vector<8x32xbf16>, vector<8x32xf32> -> vector<8x32xf32>
    %192 = vector.extract_strided_slice %158 {offsets = [0, 8], sizes = [8, 8], strides = [1, 1]} : vector<8x32xf32> to vector<8x8xf32>
    %193 = arith.truncf %192 : vector<8x8xf32> to vector<8x8xbf16>
    %194 = vector.extract_strided_slice %166 {offsets = [0, 8], sizes = [8, 8], strides = [1, 1]} : vector<8x32xf32> to vector<8x8xf32>
    %195 = arith.truncf %194 : vector<8x8xf32> to vector<8x8xbf16>
    %cst_67 = arith.constant dense<0.000000e+00> : vector<8x8xf32>
    %196 = tpu.matmul %193, %195, %cst_67 {dimension_numbers = #tpu.dot_dimension_numbers<[1], [1], [0], [0], [0, 0, 1, 0], [], []>} : vector<8x8xbf16>, vector<8x8xbf16>, vector<8x8xf32> -> vector<8x8xf32>
    %cst_68 = arith.constant dense<0xFF800000> : vector<8xf32>
    %197 = vector.multi_reduction <maximumf>, %196, %cst_68 [1] : vector<8x8xf32> to vector<8xf32>
    %198 = vector.shape_cast %197 : vector<8xf32> to vector<8x1xf32>
    %199 = vector.broadcast %198 : vector<8x1xf32> to vector<8x8xf32>
    %200 = arith.subf %196, %199 : vector<8x8xf32>
    %201 = math.exp %200 : vector<8x8xf32>
    %cst_69 = arith.constant dense<0.000000e+00> : vector<8xf32>
    %202 = vector.multi_reduction <add>, %201, %cst_69 [1] : vector<8x8xf32> to vector<8xf32>
    %203 = vector.shape_cast %202 : vector<8xf32> to vector<8x1xf32>
    %204 = tpu.reciprocal %203 {approx = true} : vector<8x1xf32> -> vector<8x1xf32>
    %205 = vector.broadcast %204 : vector<8x1xf32> to vector<8x8xf32>
    %206 = arith.mulf %201, %205 : vector<8x8xf32>
    %207 = arith.truncf %206 : vector<8x8xf32> to vector<8x8xbf16>
    %208 = vector.extract_strided_slice %167 {offsets = [0, 8], sizes = [8, 8], strides = [1, 1]} : vector<8x32xf32> to vector<8x8xf32>
    %209 = arith.truncf %208 : vector<8x8xf32> to vector<8x8xbf16>
    %cst_70 = arith.constant dense<0.000000e+00> : vector<8x8xf32>
    %210 = tpu.matmul %207, %209, %cst_70 {dimension_numbers = #tpu.dot_dimension_numbers<[1], [0], [0], [1], [0, 0, 1, 1], [], []>} : vector<8x8xbf16>, vector<8x8xbf16>, vector<8x8xf32> -> vector<8x8xf32>
    %211 = arith.truncf %210 : vector<8x8xf32> to vector<8x8xbf16>
    %212 = vector.extract_strided_slice %169 {offsets = [8, 0], sizes = [8, 32], strides = [1, 1]} : vector<32x32xbf16> to vector<8x32xbf16>
    %cst_71 = arith.constant dense<0.000000e+00> : vector<8x32xf32>
    %213 = tpu.matmul %211, %212, %cst_71 {dimension_numbers = #tpu.dot_dimension_numbers<[1], [0], [0], [1], [0, 0, 1, 1], [], []>} : vector<8x8xbf16>, vector<8x32xbf16>, vector<8x32xf32> -> vector<8x32xf32>
    %214 = arith.addf %191, %213 : vector<8x32xf32>
    %215 = vector.extract_strided_slice %158 {offsets = [0, 16], sizes = [8, 8], strides = [1, 1]} : vector<8x32xf32> to vector<8x8xf32>
    %216 = arith.truncf %215 : vector<8x8xf32> to vector<8x8xbf16>
    %217 = vector.extract_strided_slice %166 {offsets = [0, 16], sizes = [8, 8], strides = [1, 1]} : vector<8x32xf32> to vector<8x8xf32>
    %218 = arith.truncf %217 : vector<8x8xf32> to vector<8x8xbf16>
    %cst_72 = arith.constant dense<0.000000e+00> : vector<8x8xf32>
    %219 = tpu.matmul %216, %218, %cst_72 {dimension_numbers = #tpu.dot_dimension_numbers<[1], [1], [0], [0], [0, 0, 1, 0], [], []>} : vector<8x8xbf16>, vector<8x8xbf16>, vector<8x8xf32> -> vector<8x8xf32>
    %cst_73 = arith.constant dense<0xFF800000> : vector<8xf32>
    %220 = vector.multi_reduction <maximumf>, %219, %cst_73 [1] : vector<8x8xf32> to vector<8xf32>
    %221 = vector.shape_cast %220 : vector<8xf32> to vector<8x1xf32>
    %222 = vector.broadcast %221 : vector<8x1xf32> to vector<8x8xf32>
    %223 = arith.subf %219, %222 : vector<8x8xf32>
    %224 = math.exp %223 : vector<8x8xf32>
    %cst_74 = arith.constant dense<0.000000e+00> : vector<8xf32>
    %225 = vector.multi_reduction <add>, %224, %cst_74 [1] : vector<8x8xf32> to vector<8xf32>
    %226 = vector.shape_cast %225 : vector<8xf32> to vector<8x1xf32>
    %227 = tpu.reciprocal %226 {approx = true} : vector<8x1xf32> -> vector<8x1xf32>
    %228 = vector.broadcast %227 : vector<8x1xf32> to vector<8x8xf32>
    %229 = arith.mulf %224, %228 : vector<8x8xf32>
    %230 = arith.truncf %229 : vector<8x8xf32> to vector<8x8xbf16>
    %231 = vector.extract_strided_slice %167 {offsets = [0, 16], sizes = [8, 8], strides = [1, 1]} : vector<8x32xf32> to vector<8x8xf32>
    %232 = arith.truncf %231 : vector<8x8xf32> to vector<8x8xbf16>
    %cst_75 = arith.constant dense<0.000000e+00> : vector<8x8xf32>
    %233 = tpu.matmul %230, %232, %cst_75 {dimension_numbers = #tpu.dot_dimension_numbers<[1], [0], [0], [1], [0, 0, 1, 1], [], []>} : vector<8x8xbf16>, vector<8x8xbf16>, vector<8x8xf32> -> vector<8x8xf32>
    %234 = arith.truncf %233 : vector<8x8xf32> to vector<8x8xbf16>
    %235 = vector.extract_strided_slice %169 {offsets = [16, 0], sizes = [8, 32], strides = [1, 1]} : vector<32x32xbf16> to vector<8x32xbf16>
    %cst_76 = arith.constant dense<0.000000e+00> : vector<8x32xf32>
    %236 = tpu.matmul %234, %235, %cst_76 {dimension_numbers = #tpu.dot_dimension_numbers<[1], [0], [0], [1], [0, 0, 1, 1], [], []>} : vector<8x8xbf16>, vector<8x32xbf16>, vector<8x32xf32> -> vector<8x32xf32>
    %237 = arith.addf %214, %236 : vector<8x32xf32>
    %238 = vector.extract_strided_slice %158 {offsets = [0, 24], sizes = [8, 8], strides = [1, 1]} : vector<8x32xf32> to vector<8x8xf32>
    %239 = arith.truncf %238 : vector<8x8xf32> to vector<8x8xbf16>
    %240 = vector.extract_strided_slice %166 {offsets = [0, 24], sizes = [8, 8], strides = [1, 1]} : vector<8x32xf32> to vector<8x8xf32>
    %241 = arith.truncf %240 : vector<8x8xf32> to vector<8x8xbf16>
    %cst_77 = arith.constant dense<0.000000e+00> : vector<8x8xf32>
    %242 = tpu.matmul %239, %241, %cst_77 {dimension_numbers = #tpu.dot_dimension_numbers<[1], [1], [0], [0], [0, 0, 1, 0], [], []>} : vector<8x8xbf16>, vector<8x8xbf16>, vector<8x8xf32> -> vector<8x8xf32>
    %cst_78 = arith.constant dense<0xFF800000> : vector<8xf32>
    %243 = vector.multi_reduction <maximumf>, %242, %cst_78 [1] : vector<8x8xf32> to vector<8xf32>
    %244 = vector.shape_cast %243 : vector<8xf32> to vector<8x1xf32>
    %245 = vector.broadcast %244 : vector<8x1xf32> to vector<8x8xf32>
    %246 = arith.subf %242, %245 : vector<8x8xf32>
    %247 = math.exp %246 : vector<8x8xf32>
    %cst_79 = arith.constant dense<0.000000e+00> : vector<8xf32>
    %248 = vector.multi_reduction <add>, %247, %cst_79 [1] : vector<8x8xf32> to vector<8xf32>
    %249 = vector.shape_cast %248 : vector<8xf32> to vector<8x1xf32>
    %250 = tpu.reciprocal %249 {approx = true} : vector<8x1xf32> -> vector<8x1xf32>
    %251 = vector.broadcast %250 : vector<8x1xf32> to vector<8x8xf32>
    %252 = arith.mulf %247, %251 : vector<8x8xf32>
    %253 = arith.truncf %252 : vector<8x8xf32> to vector<8x8xbf16>
    %254 = vector.extract_strided_slice %167 {offsets = [0, 24], sizes = [8, 8], strides = [1, 1]} : vector<8x32xf32> to vector<8x8xf32>
    %255 = arith.truncf %254 : vector<8x8xf32> to vector<8x8xbf16>
    %cst_80 = arith.constant dense<0.000000e+00> : vector<8x8xf32>
    %256 = tpu.matmul %253, %255, %cst_80 {dimension_numbers = #tpu.dot_dimension_numbers<[1], [0], [0], [1], [0, 0, 1, 1], [], []>} : vector<8x8xbf16>, vector<8x8xbf16>, vector<8x8xf32> -> vector<8x8xf32>
    %257 = arith.truncf %256 : vector<8x8xf32> to vector<8x8xbf16>
    %258 = vector.extract_strided_slice %169 {offsets = [24, 0], sizes = [8, 32], strides = [1, 1]} : vector<32x32xbf16> to vector<8x32xbf16>
    %cst_81 = arith.constant dense<0.000000e+00> : vector<8x32xf32>
    %259 = tpu.matmul %257, %258, %cst_81 {dimension_numbers = #tpu.dot_dimension_numbers<[1], [0], [0], [1], [0, 0, 1, 1], [], []>} : vector<8x8xbf16>, vector<8x32xbf16>, vector<8x32xf32> -> vector<8x32xf32>
    %260 = arith.addf %237, %259 : vector<8x32xf32>
    %261 = vector.extract_strided_slice %13 {offsets = [2, 0], sizes = [1, 32], strides = [1, 1]} : vector<4x32xf32> to vector<1x32xf32>
    %262 = vector.broadcast %261 : vector<1x32xf32> to vector<8x32xf32>
    %263 = arith.addf %260, %262 : vector<8x32xf32>
    %264 = arith.addf %151, %263 : vector<8x32xf32>
    %265 = vector.extract_strided_slice %15 {offsets = [2, 0], sizes = [1, 32], strides = [1, 1]} : vector<6x32xf32> to vector<1x32xf32>
    %266 = vector.extract_strided_slice %15 {offsets = [3, 0], sizes = [1, 32], strides = [1, 1]} : vector<6x32xf32> to vector<1x32xf32>
    %cst_82 = arith.constant dense<0.000000e+00> : vector<8xf32>
    %267 = vector.multi_reduction <add>, %264, %cst_82 [1] : vector<8x32xf32> to vector<8xf32>
    %268 = vector.shape_cast %267 : vector<8xf32> to vector<8x1xf32>
    %cst_83 = arith.constant 3.200000e+01 : f32
    %269 = vector.broadcast %cst_83 : f32 to vector<8x1xf32>
    %270 = arith.divf %268, %269 : vector<8x1xf32>
    %271 = vector.broadcast %270 : vector<8x1xf32> to vector<8x32xf32>
    %272 = arith.subf %264, %271 : vector<8x32xf32>
    %273 = arith.mulf %272, %272 : vector<8x32xf32>
    %cst_84 = arith.constant dense<0.000000e+00> : vector<8xf32>
    %274 = vector.multi_reduction <add>, %273, %cst_84 [1] : vector<8x32xf32> to vector<8xf32>
    %275 = vector.shape_cast %274 : vector<8xf32> to vector<8x1xf32>
    %cst_85 = arith.constant 3.200000e+01 : f32
    %276 = vector.broadcast %cst_85 : f32 to vector<8x1xf32>
    %277 = arith.divf %275, %276 : vector<8x1xf32>
    %278 = vector.broadcast %270 : vector<8x1xf32> to vector<8x32xf32>
    %279 = arith.subf %264, %278 : vector<8x32xf32>
    %cst_86 = arith.constant 9.99999974E-6 : f32
    %280 = vector.broadcast %cst_86 : f32 to vector<8x1xf32>
    %281 = arith.addf %277, %280 : vector<8x1xf32>
    %282 = math.rsqrt %281 : vector<8x1xf32>
    %283 = vector.broadcast %282 : vector<8x1xf32> to vector<8x32xf32>
    %284 = arith.mulf %279, %283 : vector<8x32xf32>
    %285 = vector.broadcast %265 : vector<1x32xf32> to vector<8x32xf32>
    %286 = arith.mulf %284, %285 : vector<8x32xf32>
    %287 = vector.broadcast %266 : vector<1x32xf32> to vector<8x32xf32>
    %288 = arith.addf %286, %287 : vector<8x32xf32>
    %289 = arith.truncf %288 : vector<8x32xf32> to vector<8x32xbf16>
    %c0_87 = arith.constant 0 : index
    %c0_88 = arith.constant 0 : index
    %c0_89 = arith.constant 0 : index
    %290 = vector.load %arg11[%c0_87, %c0_88, %c0_89] : memref<1x32x128xbf16, #tpu.memory_space<vmem>>, vector<1x32x128xbf16>
    %291 = vector.shape_cast %290 : vector<1x32x128xbf16> to vector<32x128xbf16>
    %cst_90 = arith.constant dense<0.000000e+00> : vector<8x128xf32>
    %292 = tpu.matmul %289, %291, %cst_90 {dimension_numbers = #tpu.dot_dimension_numbers<[1], [0], [0], [1], [0, 0, 1, 1], [], []>} : vector<8x32xbf16>, vector<32x128xbf16>, vector<8x128xf32> -> vector<8x128xf32>
    %c0_91 = arith.constant 0 : index
    %c0_92 = arith.constant 0 : index
    %c0_93 = arith.constant 0 : index
    %293 = vector.load %arg12[%c0_91, %c0_92, %c0_93] : memref<1x1x128xf32, #tpu.memory_space<vmem>>, vector<1x1x128xf32>
    %294 = vector.shape_cast %293 : vector<1x1x128xf32> to vector<1x128xf32>
    %295 = vector.broadcast %294 : vector<1x128xf32> to vector<8x128xf32>
    %296 = arith.addf %292, %295 : vector<8x128xf32>
    %cst_94 = arith.constant 0.000000e+00 : f32
    %297 = vector.broadcast %cst_94 : f32 to vector<8x128xf32>
    %298 = arith.maximumf %296, %297 : vector<8x128xf32>
    %299 = arith.truncf %298 : vector<8x128xf32> to vector<8x128xbf16>
    %c0_95 = arith.constant 0 : index
    %c0_96 = arith.constant 0 : index
    %c0_97 = arith.constant 0 : index
    %300 = vector.load %arg13[%c0_95, %c0_96, %c0_97] : memref<1x128x32xbf16, #tpu.memory_space<vmem>>, vector<1x128x32xbf16>
    %301 = vector.shape_cast %300 : vector<1x128x32xbf16> to vector<128x32xbf16>
    %cst_98 = arith.constant dense<0.000000e+00> : vector<8x32xf32>
    %302 = tpu.matmul %299, %301, %cst_98 {dimension_numbers = #tpu.dot_dimension_numbers<[1], [0], [0], [1], [0, 0, 1, 1], [], []>} : vector<8x128xbf16>, vector<128x32xbf16>, vector<8x32xf32> -> vector<8x32xf32>
    %303 = vector.extract_strided_slice %13 {offsets = [3, 0], sizes = [1, 32], strides = [1, 1]} : vector<4x32xf32> to vector<1x32xf32>
    %304 = vector.broadcast %303 : vector<1x32xf32> to vector<8x32xf32>
    %305 = arith.addf %302, %304 : vector<8x32xf32>
    %306 = arith.addf %288, %305 : vector<8x32xf32>
    %307 = vector.extract_strided_slice %15 {offsets = [4, 0], sizes = [1, 32], strides = [1, 1]} : vector<6x32xf32> to vector<1x32xf32>
    %308 = vector.extract_strided_slice %15 {offsets = [5, 0], sizes = [1, 32], strides = [1, 1]} : vector<6x32xf32> to vector<1x32xf32>
    %cst_99 = arith.constant dense<0.000000e+00> : vector<8xf32>
    %309 = vector.multi_reduction <add>, %306, %cst_99 [1] : vector<8x32xf32> to vector<8xf32>
    %310 = vector.shape_cast %309 : vector<8xf32> to vector<8x1xf32>
    %cst_100 = arith.constant 3.200000e+01 : f32
    %311 = vector.broadcast %cst_100 : f32 to vector<8x1xf32>
    %312 = arith.divf %310, %311 : vector<8x1xf32>
    %313 = vector.broadcast %312 : vector<8x1xf32> to vector<8x32xf32>
    %314 = arith.subf %306, %313 : vector<8x32xf32>
    %315 = arith.mulf %314, %314 : vector<8x32xf32>
    %cst_101 = arith.constant dense<0.000000e+00> : vector<8xf32>
    %316 = vector.multi_reduction <add>, %315, %cst_101 [1] : vector<8x32xf32> to vector<8xf32>
    %317 = vector.shape_cast %316 : vector<8xf32> to vector<8x1xf32>
    %cst_102 = arith.constant 3.200000e+01 : f32
    %318 = vector.broadcast %cst_102 : f32 to vector<8x1xf32>
    %319 = arith.divf %317, %318 : vector<8x1xf32>
    %320 = vector.broadcast %312 : vector<8x1xf32> to vector<8x32xf32>
    %321 = arith.subf %306, %320 : vector<8x32xf32>
    %cst_103 = arith.constant 9.99999974E-6 : f32
    %322 = vector.broadcast %cst_103 : f32 to vector<8x1xf32>
    %323 = arith.addf %319, %322 : vector<8x1xf32>
    %324 = math.rsqrt %323 : vector<8x1xf32>
    %325 = vector.broadcast %324 : vector<8x1xf32> to vector<8x32xf32>
    %326 = arith.mulf %321, %325 : vector<8x32xf32>
    %327 = vector.broadcast %307 : vector<1x32xf32> to vector<8x32xf32>
    %328 = arith.mulf %326, %327 : vector<8x32xf32>
    %329 = vector.broadcast %308 : vector<1x32xf32> to vector<8x32xf32>
    %330 = arith.addf %328, %329 : vector<8x32xf32>
    %c0_104 = arith.constant 0 : index
    %c0_105 = arith.constant 0 : index
    %331 = vector.load %arg18[%c0_104, %c0_105] : memref<8x32xf32, #tpu.memory_space<vmem>>, vector<8x32xf32>
    tpu.vector_store %arg18[%c0_104, %c0_105], %330 {strides = array<i32>} : memref<8x32xf32, #tpu.memory_space<vmem>>, vector<8x32xf32>,
    %c1_i32 = arith.constant 1 : i32
    %332 = arith.cmpi eq, %arg1, %c1_i32 : i32
    %333 = arith.extui %332 : i1 to i32
    %c0_i32_106 = arith.constant 0 : i32
    %334 = arith.cmpi ne, %333, %c0_i32_106 : i32
    scf.if %334 {
      %335 = arith.truncf %330 : vector<8x32xf32> to vector<8x32xbf16>
      %c0_107 = arith.constant 0 : index
      %c0_108 = arith.constant 0 : index
      %336 = vector.load %arg15[%c0_107, %c0_108] : memref<32x128xbf16, #tpu.memory_space<vmem>>, vector<32x128xbf16>
      %cst_109 = arith.constant dense<0.000000e+00> : vector<8x128xf32>
      %337 = tpu.matmul %335, %336, %cst_109 {dimension_numbers = #tpu.dot_dimension_numbers<[1], [0], [0], [1], [0, 0, 1, 1], [], []>} : vector<8x32xbf16>, vector<32x128xbf16>, vector<8x128xf32> -> vector<8x128xf32>
      %c0_110 = arith.constant 0 : index
      %c0_111 = arith.constant 0 : index
      %338 = vector.load %arg16[%c0_110, %c0_111] : memref<1x128xf32, #tpu.memory_space<vmem>>, vector<1x128xf32>
      %339 = vector.broadcast %338 : vector<1x128xf32> to vector<8x128xf32>
      %340 = arith.addf %337, %339 : vector<8x128xf32>
      %c0_112 = arith.constant 0 : index
      %c0_113 = arith.constant 0 : index
      %c0_114 = arith.constant 0 : index
      %341 = vector.load %arg17[%c0_112, %c0_113, %c0_114] : memref<1x8x128xf32, #tpu.memory_space<vmem>>, vector<1x8x128xf32>
      %342 = vector.shape_cast %341 : vector<1x8x128xf32> to vector<8x128xf32>
      %343 = vector.shape_cast %340 : vector<8x128xf32> to vector<1x8x128xf32>
      tpu.vector_store %arg17[%c0_112, %c0_113, %c0_114], %343 {strides = array<i32>} : memref<1x8x128xf32, #tpu.memory_space<vmem>>, vector<1x8x128xf32>,
    } else {
    }
    return
  }
  func.func @transform_0(%arg0: i32, %arg1: i32) -> (i32, i32, i32) {
    %c0_i32 = arith.constant 0 : i32
    %c0_i32_0 = arith.constant 0 : i32
    %c0_i32_1 = arith.constant 0 : i32
    return %arg0, %c0_i32, %c0_i32_0 : i32, i32, i32
  }
  func.func @transform_1(%arg0: i32, %arg1: i32) -> (i32, i32, i32) {
    %c0_i32 = arith.constant 0 : i32
    %c0_i32_0 = arith.constant 0 : i32
    %c0_i32_1 = arith.constant 0 : i32
    return %arg0, %c0_i32, %c0_i32_0 : i32, i32, i32
  }
  func.func @transform_2(%arg0: i32, %arg1: i32) -> (i32, i32, i32) {
    %c0_i32 = arith.constant 0 : i32
    %c0_i32_0 = arith.constant 0 : i32
    %c0_i32_1 = arith.constant 0 : i32
    return %arg1, %c0_i32, %c0_i32_0 : i32, i32, i32
  }
  func.func @transform_3(%arg0: i32, %arg1: i32) -> (i32, i32, i32) {
    %c0_i32 = arith.constant 0 : i32
    %c0_i32_0 = arith.constant 0 : i32
    %c0_i32_1 = arith.constant 0 : i32
    return %arg1, %c0_i32, %c0_i32_0 : i32, i32, i32
  }
  func.func @transform_4(%arg0: i32, %arg1: i32) -> (i32, i32, i32) {
    %c0_i32 = arith.constant 0 : i32
    %c0_i32_0 = arith.constant 0 : i32
    %c0_i32_1 = arith.constant 0 : i32
    return %arg1, %c0_i32, %c0_i32_0 : i32, i32, i32
  }
  func.func @transform_5(%arg0: i32, %arg1: i32) -> (i32, i32, i32) {
    %c0_i32 = arith.constant 0 : i32
    %c0_i32_0 = arith.constant 0 : i32
    %c0_i32_1 = arith.constant 0 : i32
    return %arg1, %c0_i32, %c0_i32_0 : i32, i32, i32
  }
  func.func @transform_6(%arg0: i32, %arg1: i32) -> (i32, i32, i32) {
    %c0_i32 = arith.constant 0 : i32
    %c0_i32_0 = arith.constant 0 : i32
    %c0_i32_1 = arith.constant 0 : i32
    return %arg1, %c0_i32, %c0_i32_0 : i32, i32, i32
  }
  func.func @transform_7(%arg0: i32, %arg1: i32) -> (i32, i32, i32, i32) {
    %c0_i32 = arith.constant 0 : i32
    %c0_i32_0 = arith.constant 0 : i32
    %c0_i32_1 = arith.constant 0 : i32
    %c0_i32_2 = arith.constant 0 : i32
    return %arg1, %c0_i32, %c0_i32_0, %c0_i32_1 : i32, i32, i32, i32
  }
  func.func @transform_8(%arg0: i32, %arg1: i32) -> (i32, i32, i32) {
    %c0_i32 = arith.constant 0 : i32
    %c0_i32_0 = arith.constant 0 : i32
    %c0_i32_1 = arith.constant 0 : i32
    return %arg1, %c0_i32, %c0_i32_0 : i32, i32, i32
  }
  func.func @transform_9(%arg0: i32, %arg1: i32) -> (i32, i32, i32) {
    %c0_i32 = arith.constant 0 : i32
    %c0_i32_0 = arith.constant 0 : i32
    %c0_i32_1 = arith.constant 0 : i32
    return %arg1, %c0_i32, %c0_i32_0 : i32, i32, i32
  }
  func.func @transform_10(%arg0: i32, %arg1: i32) -> (i32, i32, i32) {
    %c0_i32 = arith.constant 0 : i32
    %c0_i32_0 = arith.constant 0 : i32
    %c0_i32_1 = arith.constant 0 : i32
    return %arg1, %c0_i32, %c0_i32_0 : i32, i32, i32
  }
  func.func @transform_11(%arg0: i32, %arg1: i32) -> (i32, i32, i32) {
    %c0_i32 = arith.constant 0 : i32
    %c0_i32_0 = arith.constant 0 : i32
    %c0_i32_1 = arith.constant 0 : i32
    return %arg1, %c0_i32, %c0_i32_0 : i32, i32, i32
  }
  func.func @transform_12(%arg0: i32, %arg1: i32) -> (i32, i32, i32) {
    %c0_i32 = arith.constant 0 : i32
    %c0_i32_0 = arith.constant 0 : i32
    %c0_i32_1 = arith.constant 0 : i32
    return %arg1, %c0_i32, %c0_i32_0 : i32, i32, i32
  }
  func.func @transform_13(%arg0: i32, %arg1: i32) -> (i32, i32) {
    %c0_i32 = arith.constant 0 : i32
    %c0_i32_0 = arith.constant 0 : i32
    %c0_i32_1 = arith.constant 0 : i32
    return %c0_i32, %c0_i32_0 : i32, i32
  }
  func.func @transform_14(%arg0: i32, %arg1: i32) -> (i32, i32) {
    %c0_i32 = arith.constant 0 : i32
    %c0_i32_0 = arith.constant 0 : i32
    %c0_i32_1 = arith.constant 0 : i32
    return %c0_i32, %c0_i32_0 : i32, i32
  }
  func.func @transform_15(%arg0: i32, %arg1: i32) -> (i32, i32, i32) {
    %c0_i32 = arith.constant 0 : i32
    %c0_i32_0 = arith.constant 0 : i32
    %c0_i32_1 = arith.constant 0 : i32
    return %arg0, %c0_i32, %c0_i32_0 : i32, i32, i32
  }
}

</mosaic_0001>

<llo_original>
// kernel: tpu_custom_call.1
$region0: #{tpu_custom_call.1}
  #allocation0 [shape = 'u32[]', space=smem, size = 0x4, offset = 0x4, fixed_abs, tag = 'smem constant byte address 0x4 - core index']
  #allocation1 [shape = 'u32[144,128]{1,0:T(1,128)}', space=vmem, size = 0x12000, scoped, tag = 'internal scratch']
  #allocation2 [shape = 'f32[8,32]{1,0:T(8,128)}', space=vmem, size = 0x1000, scoped, tag = 'scratch operand']
  %s0 = inlined_call_operand.vmem [shape: f32[2,8,32], index: 0, kind: input, shape index: {}]
  %s1 = inlined_call_operand.hbm [shape: bf16[2,8,32], index: 1, kind: input, shape index: {}]
  %s2 = inlined_call_operand.vmem [shape: bf16[2,32,96], index: 2, kind: input, shape index: {}]
  %s3 = inlined_call_operand.hbm [shape: f32[2,1,96], index: 3, kind: input, shape index: {}]
  %s4 = inlined_call_operand.vmem [shape: bf16[2,32,32], index: 4, kind: input, shape index: {}]
  %s5 = inlined_call_operand.vmem [shape: bf16[2,32,64], index: 5, kind: input, shape index: {}]
  %s6 = inlined_call_operand.hbm [shape: f32[2,1,64], index: 6, kind: input, shape index: {}]
  %s7 = inlined_call_operand.vmem [shape: bf16[2,2,32,32], index: 7, kind: input, shape index: {}]
  %s8 = inlined_call_operand.hbm [shape: f32[2,4,32], index: 8, kind: input, shape index: {}]
  %s9 = inlined_call_operand.hbm [shape: bf16[2,32,128], index: 9, kind: input, shape index: {}]
  %s10 = inlined_call_operand.hbm [shape: f32[2,1,128], index: 10, kind: input, shape index: {}]
  %s11 = inlined_call_operand.vmem [shape: bf16[2,128,32], index: 11, kind: input, shape index: {}]
  %s12 = inlined_call_operand.vmem [shape: f32[2,6,32], index: 12, kind: input, shape index: {}]
  %s13 = inlined_call_operand.hbm [shape: bf16[32,128], index: 13, kind: input, shape index: {}]
  %s14 = inlined_call_operand.vmem [shape: f32[1,128], index: 14, kind: input, shape index: {}]
  %s15 = inlined_call_operand.hbm [shape: f32[2,8,128], index: 15, kind: output, shape index: {}]
  %s16 = sld [smem:[#allocation0]]
  $region129: #{tpu_custom_call.1} parent=0
    _
  %s18 = ssub.s32 1, %s16
  %s19 = scalar_select 0, %s18, %s16
  $region1: #{tpu_custom_call.1} parent=0
    #allocation3 [shape = 'u8[4096]{0}', space=vmem, size = 0x1000, scoped, tag = 'input window, operand 1']
    #allocation4 [shape = 's32[2]{0}', space=sflag, size = 0x8, scoped, tag = 'scoped memory for tpu_custom_call.1']
    #allocation5 [shape = 's32[2]{0}', space=sflag, size = 0x8, scoped, tag = 'scoped memory for tpu_custom_call.1']
    #allocation6 [shape = 'u8[1024]{0}', space=vmem, size = 0x400, scoped, tag = 'input window, operand 3']
    #allocation7 [shape = 's32[2]{0}', space=sflag, size = 0x8, scoped, tag = 'scoped memory for tpu_custom_call.1']
    #allocation8 [shape = 'u8[1024]{0}', space=vmem, size = 0x400, scoped, tag = 'input window, operand 6']
    #allocation9 [shape = 'u8[4096]{0}', space=vmem, size = 0x1000, scoped, tag = 'input window, operand 8']
    #allocation10 [shape = 's32[2]{0}', space=sflag, size = 0x8, scoped, tag = 'scoped memory for tpu_custom_call.1']
    #allocation11 [shape = 'u8[16384]{0}', space=vmem, size = 0x4000, scoped, tag = 'input window, operand 9']
    #allocation12 [shape = 'u8[1024]{0}', space=vmem, size = 0x400, scoped, tag = 'input window, operand 10']
    #allocation13 [shape = 's32[2]{0}', space=sflag, size = 0x8, scoped, tag = 'scoped memory for tpu_custom_call.1']
    #allocation14 [shape = 'u8[8192]{0}', space=vmem, size = 0x2000, scoped, tag = 'input window, operand 13, single buffered']
    #allocation15 [shape = 'u8[8192]{0}', space=vmem, size = 0x2000, scoped, tag = 'output window, operand 0']
    %20 = vsyncpa [#allocation4], 0
    %s21 = scalar_lea.sflag [#allocation4], 1
    %22 = vsyncpa %s21, 0
    %23 = vsyncpa [#allocation7], 0
    %s24 = scalar_lea.sflag [#allocation7], 1
    %25 = vsyncpa %s24, 0
    %26 = vsyncpa [#allocation10], 0
    %s27 = scalar_lea.sflag [#allocation10], 1
    %28 = vsyncpa %s27, 0
    %29 = vsyncpa [#allocation13], 0
    %s30 = scalar_lea.sflag [#allocation13], 1
    %31 = vsyncpa %s30, 0
    %32 = vsyncpa [#allocation5], 0
    %s33 = scalar_lea.sflag [#allocation5], 1
    %34 = vsyncpa %s33, 0
    loop: start=0, step=1, limit=6
    $region2: #{tpu_custom_call.1} parent=1 // loop_pre_header
      _
    $region3: #{tpu_custom_call.1} parent=1 // loop_header
      %s36 = sphi 0, %s40
      %p37 = scmp.ge.s32.totalorder %s36, 6
      %s43 = sphi 0, %s55
      %s44 = sphi 0, %s51
      %s45 = sphi 0, %s43
      %s46 = sphi 0, %s44
      %s47 = sphi 0, %s45
      %s48 = sphi 0, %s46
      %s58 = sphi 0, %s60
      %s61 = sphi 0, %s58
      %s62 = sphi 0, %s61
      %s78 = sphi 0, %s62
      %s84 = sphi 0, %s86
      %s87 = sphi 0, %s84
      %s88 = sphi 0, %s87
      %s104 = sphi 0, %s88
      %s110 = sphi 0, %s112
      %s113 = sphi 0, %s110
      %s114 = sphi 0, %s113
      %s130 = sphi 0, %s114
      %s136 = sphi 0, %s138
      %s139 = sphi 0, %s136
      %s140 = sphi 0, %s139
      %s156 = sphi 0, %s140
      %s162 = sphi 0, %s164
      %s165 = sphi 0, %s162
      %s166 = sphi 0, %s165
      %s182 = sphi 0, %s166
      %s188 = sphi 0, %s190
      %s191 = sphi 0, %s188
      %s192 = sphi 0, %s191
      %s208 = sphi 0, %s192
      %s214 = sphi 0, %s216
      %s217 = sphi 0, %s214
      %s218 = sphi 0, %s217
      %s234 = sphi 0, %s218
      %s240 = sphi 0, %s242
      %s243 = sphi 0, %s240
      %s244 = sphi 0, %s243
      %s260 = sphi 0, %s244
      %s266 = sphi 0, %s268
      %s269 = sphi 0, %s266
      %s270 = sphi 0, %s269
      %s286 = sphi 0, %s270
      %s292 = sphi 0, %s294
      %s295 = sphi 0, %s292
      %s296 = sphi 0, %s295
      %s312 = sphi 0, %s296
      %s318 = sphi 0, %s320
      %s321 = sphi 0, %s318
      %s322 = sphi 0, %s321
      %s338 = sphi 0, %s322
      %s344 = sphi 0, %s346
      %s347 = sphi 0, %s344
      %s348 = sphi 0, %s347
      %s364 = sphi 0, %s348
      %s370 = sphi 0, %s372
      %s373 = sphi 0, %s370
      %s374 = sphi 0, %s373
      %s390 = sphi 0, %s374
      %s394 = sphi 0, %s394
      %s396 = sphi 0, %s394
      %s397 = sphi 0, %s396
      %s411 = sphi 0, %s397
      %s415 = sphi 0, %s415
      %s417 = sphi 0, %s415
      %s418 = sphi 0, %s417
      %s432 = sphi 0, %s418
      %s438 = sphi 0, %s440
      %s441 = sphi 0, %s438
      %s442 = sphi 0, %s441
      %s458 = sphi 0, %s442
    $region4: #{tpu_custom_call.1} parent=1 // loop_header_branch
      %39 = sbr.rel (%p37) target = $region8
    $region5: #{tpu_custom_call.1} parent=1 // loop_body
      %s41 = ssub.s32 %s36, 1
      %s42 = ssub.s32 %s36, 2
      %s49 = sadd.s32 1, %s44
      %p50 = scmp.ge.s32.totalorder %s49, 2
      %s51 = scalar_select %p50, 0, %s49
      %s52 = sadd.s32 1, %s43
      %s53 = scalar_select %p50, %s52, %s43
      %p54 = scmp.ge.s32.totalorder %s53, 2
      %s55 = scalar_select %p54, 0, %s53
      %s56 = ssub.s32 %s43, %s55
      %p57 = scmp.eq.s32.totalorder %s56, 0
      %s59 = sadd.s32 %s58, 1
      %s60 = scalar_select %p57, %s58, %s59
      %p63 = pneg %p57
      %p64 = scmp.eq.s32.totalorder %s36, 3
      %p65 = por %p63, %p64
      %p66 = scmp.ne.s32.totalorder %s58, %s61
      %p67 = scmp.eq.s32.totalorder %s36, 0
      %p68 = por %p66, %p67
      %p69 = scmp.ne.s32.totalorder %s58, %s61
      %p70 = scmp.eq.s32.totalorder %s41, 3
      %p71 = por %p69, %p70
      %p72 = scmp.ne.s32.totalorder %s61, %s62
      %p73 = scmp.eq.s32.totalorder %s41, 0
      %p74 = por %p72, %p73
      %p75 = scmp.ne.s32.totalorder %s61, %s62
      %p76 = scmp.eq.s32.totalorder %s42, 3
      %p77 = por %p75, %p76
      %p79 = scmp.ne.s32.totalorder %s62, %s78
      %p80 = scmp.eq.s32.totalorder %s42, 0
      %p81 = por %p79, %p80
      %s82 = ssub.s32 %s43, %s55
      %p83 = scmp.eq.s32.totalorder %s82, 0
      %s85 = sadd.s32 %s84, 1
      %s86 = scalar_select %p83, %s84, %s85
      %p89 = pneg %p83
      %p90 = scmp.eq.s32.totalorder %s36, 3
      %p91 = por %p89, %p90
      %p92 = scmp.ne.s32.totalorder %s84, %s87
      %p93 = scmp.eq.s32.totalorder %s36, 0
      %p94 = por %p92, %p93
      %p95 = scmp.ne.s32.totalorder %s84, %s87
      %p96 = scmp.eq.s32.totalorder %s41, 3
      %p97 = por %p95, %p96
      %p98 = scmp.ne.s32.totalorder %s87, %s88
      %p99 = scmp.eq.s32.totalorder %s41, 0
      %p100 = por %p98, %p99
      %p101 = scmp.ne.s32.totalorder %s87, %s88
      %p102 = scmp.eq.s32.totalorder %s42, 3
      %p103 = por %p101, %p102
      %p105 = scmp.ne.s32.totalorder %s88, %s104
      %p106 = scmp.eq.s32.totalorder %s42, 0
      %p107 = por %p105, %p106
      %s108 = ssub.s32 %s44, %s51
      %p109 = scmp.eq.s32.totalorder %s108, 0
      %s111 = sadd.s32 %s110, 1
      %s112 = scalar_select %p109, %s110, %s111
      %p115 = pneg %p109
      %p116 = scmp.eq.s32.totalorder %s36, 3
      %p117 = por %p115, %p116
      %p118 = scmp.ne.s32.totalorder %s110, %s113
      %p119 = scmp.eq.s32.totalorder %s36, 0
      %p120 = por %p118, %p119
      %p121 = scmp.ne.s32.totalorder %s110, %s113
      %p122 = scmp.eq.s32.totalorder %s41, 3
      %p123 = por %p121, %p122
      %p124 = scmp.ne.s32.totalorder %s113, %s114
      %p125 = scmp.eq.s32.totalorder %s41, 0
      %p126 = por %p124, %p125
      %p127 = scmp.ne.s32.totalorder %s113, %s114
      %p128 = scmp.eq.s32.totalorder %s42, 3
      %p129 = por %p127, %p128
      %p131 = scmp.ne.s32.totalorder %s114, %s130
      %p132 = scmp.eq.s32.totalorder %s42, 0
      %p133 = por %p131, %p132
      %s134 = ssub.s32 %s44, %s51
      %p135 = scmp.eq.s32.totalorder %s134, 0
      %s137 = sadd.s32 %s136, 1
      %s138 = scalar_select %p135, %s136, %s137
      %p141 = pneg %p135
      %p142 = scmp.eq.s32.totalorder %s36, 3
      %p143 = por %p141, %p142
      %p144 = scmp.ne.s32.totalorder %s136, %s139
      %p145 = scmp.eq.s32.totalorder %s36, 0
      %p146 = por %p144, %p145
      %p147 = scmp.ne.s32.totalorder %s136, %s139
      %p148 = scmp.eq.s32.totalorder %s41, 3
      %p149 = por %p147, %p148
      %p150 = scmp.ne.s32.totalorder %s139, %s140
      %p151 = scmp.eq.s32.totalorder %s41, 0
      %p152 = por %p150, %p151
      %p153 = scmp.ne.s32.totalorder %s139, %s140
      %p154 = scmp.eq.s32.totalorder %s42, 3
      %p155 = por %p153, %p154
      %p157 = scmp.ne.s32.totalorder %s140, %s156
      %p158 = scmp.eq.s32.totalorder %s42, 0
      %p159 = por %p157, %p158
      %s160 = ssub.s32 %s44, %s51
      %p161 = scmp.eq.s32.totalorder %s160, 0
      %s163 = sadd.s32 %s162, 1
      %s164 = scalar_select %p161, %s162, %s163
      %p167 = pneg %p161
      %p168 = scmp.eq.s32.totalorder %s36, 3
      %p169 = por %p167, %p168
      %p170 = scmp.ne.s32.totalorder %s162, %s165
      %p171 = scmp.eq.s32.totalorder %s36, 0
      %p172 = por %p170, %p171
      %p173 = scmp.ne.s32.totalorder %s162, %s165
      %p174 = scmp.eq.s32.totalorder %s41, 3
      %p175 = por %p173, %p174
      %p176 = scmp.ne.s32.totalorder %s165, %s166
      %p177 = scmp.eq.s32.totalorder %s41, 0
      %p178 = por %p176, %p177
      %p179 = scmp.ne.s32.totalorder %s165, %s166
      %p180 = scmp.eq.s32.totalorder %s42, 3
      %p181 = por %p179, %p180
      %p183 = scmp.ne.s32.totalorder %s166, %s182
      %p184 = scmp.eq.s32.totalorder %s42, 0
      %p185 = por %p183, %p184
      %s186 = ssub.s32 %s44, %s51
      %p187 = scmp.eq.s32.totalorder %s186, 0
      %s189 = sadd.s32 %s188, 1
      %s190 = scalar_select %p187, %s188, %s189
      %p193 = pneg %p187
      %p194 = scmp.eq.s32.totalorder %s36, 3
      %p195 = por %p193, %p194
      %p196 = scmp.ne.s32.totalorder %s188, %s191
      %p197 = scmp.eq.s32.totalorder %s36, 0
      %p198 = por %p196, %p197
      %p199 = scmp.ne.s32.totalorder %s188, %s191
      %p200 = scmp.eq.s32.totalorder %s41, 3
      %p201 = por %p199, %p200
      %p202 = scmp.ne.s32.totalorder %s191, %s192
      %p203 = scmp.eq.s32.totalorder %s41, 0
      %p204 = por %p202, %p203
      %p205 = scmp.ne.s32.totalorder %s191, %s192
      %p206 = scmp.eq.s32.totalorder %s42, 3
      %p207 = por %p205, %p206
      %p209 = scmp.ne.s32.totalorder %s192, %s208
      %p210 = scmp.eq.s32.totalorder %s42, 0
      %p211 = por %p209, %p210
      %s212 = ssub.s32 %s44, %s51
      %p213 = scmp.eq.s32.totalorder %s212, 0
      %s215 = sadd.s32 %s214, 1
      %s216 = scalar_select %p213, %s214, %s215
      %p219 = pneg %p213
      %p220 = scmp.eq.s32.totalorder %s36, 3
      %p221 = por %p219, %p220
      %p222 = scmp.ne.s32.totalorder %s214, %s217
      %p223 = scmp.eq.s32.totalorder %s36, 0
      %p224 = por %p222, %p223
      %p225 = scmp.ne.s32.totalorder %s214, %s217
      %p226 = scmp.eq.s32.totalorder %s41, 3
      %p227 = por %p225, %p226
      %p228 = scmp.ne.s32.totalorder %s217, %s218
      %p229 = scmp.eq.s32.totalorder %s41, 0
      %p230 = por %p228, %p229
      %p231 = scmp.ne.s32.totalorder %s217, %s218
      %p232 = scmp.eq.s32.totalorder %s42, 3
      %p233 = por %p231, %p232
      %p235 = scmp.ne.s32.totalorder %s218, %s234
      %p236 = scmp.eq.s32.totalorder %s42, 0
      %p237 = por %p235, %p236
      %s238 = ssub.s32 %s44, %s51
      %p239 = scmp.eq.s32.totalorder %s238, 0
      %s241 = sadd.s32 %s240, 1
      %s242 = scalar_select %p239, %s240, %s241
      %p245 = pneg %p239
      %p246 = scmp.eq.s32.totalorder %s36, 3
      %p247 = por %p245, %p246
      %p248 = scmp.ne.s32.totalorder %s240, %s243
      %p249 = scmp.eq.s32.totalorder %s36, 0
      %p250 = por %p248, %p249
      %p251 = scmp.ne.s32.totalorder %s240, %s243
      %p252 = scmp.eq.s32.totalorder %s41, 3
      %p253 = por %p251, %p252
      %p254 = scmp.ne.s32.totalorder %s243, %s244
      %p255 = scmp.eq.s32.totalorder %s41, 0
      %p256 = por %p254, %p255
      %p257 = scmp.ne.s32.totalorder %s243, %s244
      %p258 = scmp.eq.s32.totalorder %s42, 3
      %p259 = por %p257, %p258
      %p261 = scmp.ne.s32.totalorder %s244, %s260
      %p262 = scmp.eq.s32.totalorder %s42, 0
      %p263 = por %p261, %p262
      %s264 = ssub.s32 %s44, %s51
      %p265 = scmp.eq.s32.totalorder %s264, 0
      %s267 = sadd.s32 %s266, 1
      %s268 = scalar_select %p265, %s266, %s267
      %p271 = pneg %p265
      %p272 = scmp.eq.s32.totalorder %s36, 3
      %p273 = por %p271, %p272
      %p274 = scmp.ne.s32.totalorder %s266, %s269
      %p275 = scmp.eq.s32.totalorder %s36, 0
      %p276 = por %p274, %p275
      %p277 = scmp.ne.s32.totalorder %s266, %s269
      %p278 = scmp.eq.s32.totalorder %s41, 3
      %p279 = por %p277, %p278
      %p280 = scmp.ne.s32.totalorder %s269, %s270
      %p281 = scmp.eq.s32.totalorder %s41, 0
      %p282 = por %p280, %p281
      %p283 = scmp.ne.s32.totalorder %s269, %s270
      %p284 = scmp.eq.s32.totalorder %s42, 3
      %p285 = por %p283, %p284
      %p287 = scmp.ne.s32.totalorder %s270, %s286
      %p288 = scmp.eq.s32.totalorder %s42, 0
      %p289 = por %p287, %p288
      %s290 = ssub.s32 %s44, %s51
      %p291 = scmp.eq.s32.totalorder %s290, 0
      %s293 = sadd.s32 %s292, 1
      %s294 = scalar_select %p291, %s292, %s293
      %p297 = pneg %p291
      %p298 = scmp.eq.s32.totalorder %s36, 3
      %p299 = por %p297, %p298
      %p300 = scmp.ne.s32.totalorder %s292, %s295
      %p301 = scmp.eq.s32.totalorder %s36, 0
      %p302 = por %p300, %p301
      %p303 = scmp.ne.s32.totalorder %s292, %s295
      %p304 = scmp.eq.s32.totalorder %s41, 3
      %p305 = por %p303, %p304
      %p306 = scmp.ne.s32.totalorder %s295, %s296
      %p307 = scmp.eq.s32.totalorder %s41, 0
      %p308 = por %p306, %p307
      %p309 = scmp.ne.s32.totalorder %s295, %s296
      %p310 = scmp.eq.s32.totalorder %s42, 3
      %p311 = por %p309, %p310
      %p313 = scmp.ne.s32.totalorder %s296, %s312
      %p314 = scmp.eq.s32.totalorder %s42, 0
      %p315 = por %p313, %p314
      %s316 = ssub.s32 %s44, %s51
      %p317 = scmp.eq.s32.totalorder %s316, 0
      %s319 = sadd.s32 %s318, 1
      %s320 = scalar_select %p317, %s318, %s319
      %p323 = pneg %p317
      %p324 = scmp.eq.s32.totalorder %s36, 3
      %p325 = por %p323, %p324
      %p326 = scmp.ne.s32.totalorder %s318, %s321
      %p327 = scmp.eq.s32.totalorder %s36, 0
      %p328 = por %p326, %p327
      %p329 = scmp.ne.s32.totalorder %s318, %s321
      %p330 = scmp.eq.s32.totalorder %s41, 3
      %p331 = por %p329, %p330
      %p332 = scmp.ne.s32.totalorder %s321, %s322
      %p333 = scmp.eq.s32.totalorder %s41, 0
      %p334 = por %p332, %p333
      %p335 = scmp.ne.s32.totalorder %s321, %s322
      %p336 = scmp.eq.s32.totalorder %s42, 3
      %p337 = por %p335, %p336
      %p339 = scmp.ne.s32.totalorder %s322, %s338
      %p340 = scmp.eq.s32.totalorder %s42, 0
      %p341 = por %p339, %p340
      %s342 = ssub.s32 %s44, %s51
      %p343 = scmp.eq.s32.totalorder %s342, 0
      %s345 = sadd.s32 %s344, 1
      %s346 = scalar_select %p343, %s344, %s345
      %p349 = pneg %p343
      %p350 = scmp.eq.s32.totalorder %s36, 3
      %p351 = por %p349, %p350
      %p352 = scmp.ne.s32.totalorder %s344, %s347
      %p353 = scmp.eq.s32.totalorder %s36, 0
      %p354 = por %p352, %p353
      %p355 = scmp.ne.s32.totalorder %s344, %s347
      %p356 = scmp.eq.s32.totalorder %s41, 3
      %p357 = por %p355, %p356
      %p358 = scmp.ne.s32.totalorder %s347, %s348
      %p359 = scmp.eq.s32.totalorder %s41, 0
      %p360 = por %p358, %p359
      %p361 = scmp.ne.s32.totalorder %s347, %s348
      %p362 = scmp.eq.s32.totalorder %s42, 3
      %p363 = por %p361, %p362
      %p365 = scmp.ne.s32.totalorder %s348, %s364
      %p366 = scmp.eq.s32.totalorder %s42, 0
      %p367 = por %p365, %p366
      %s368 = ssub.s32 %s44, %s51
      %p369 = scmp.eq.s32.totalorder %s368, 0
      %s371 = sadd.s32 %s370, 1
      %s372 = scalar_select %p369, %s370, %s371
      %p375 = pneg %p369
      %p376 = scmp.eq.s32.totalorder %s36, 3
      %p377 = por %p375, %p376
      %p378 = scmp.ne.s32.totalorder %s370, %s373
      %p379 = scmp.eq.s32.totalorder %s36, 0
      %p380 = por %p378, %p379
      %p381 = scmp.ne.s32.totalorder %s370, %s373
      %p382 = scmp.eq.s32.totalorder %s41, 3
      %p383 = por %p381, %p382
      %p384 = scmp.ne.s32.totalorder %s373, %s374
      %p385 = scmp.eq.s32.totalorder %s41, 0
      %p386 = por %p384, %p385
      %p387 = scmp.ne.s32.totalorder %s373, %s374
      %p388 = scmp.eq.s32.totalorder %s42, 3
      %p389 = por %p387, %p388
      %p391 = scmp.ne.s32.totalorder %s374, %s390
      %p392 = scmp.eq.s32.totalorder %s42, 0
      %p393 = por %p391, %p392
      %s395 = sadd.s32 %s394, 1
      %p398 = scmp.eq.s32.totalorder %s36, 3
      %p399 = scmp.ne.s32.totalorder %s394, %s396
      %p400 = scmp.eq.s32.totalorder %s36, 0
      %p401 = por %p399, %p400
      %p402 = scmp.ne.s32.totalorder %s394, %s396
      %p403 = scmp.eq.s32.totalorder %s41, 3
      %p404 = por %p402, %p403
      %p405 = scmp.ne.s32.totalorder %s396, %s397
      %p406 = scmp.eq.s32.totalorder %s41, 0
      %p407 = por %p405, %p406
      %p408 = scmp.ne.s32.totalorder %s396, %s397
      %p409 = scmp.eq.s32.totalorder %s42, 3
      %p410 = por %p408, %p409
      %p412 = scmp.ne.s32.totalorder %s397, %s411
      %p413 = scmp.eq.s32.totalorder %s42, 0
      %p414 = por %p412, %p413
      %s416 = sadd.s32 %s415, 1
      %p419 = scmp.eq.s32.totalorder %s36, 3
      %p420 = scmp.ne.s32.totalorder %s415, %s417
      %p421 = scmp.eq.s32.totalorder %s36, 0
      %p422 = por %p420, %p421
      %p423 = scmp.ne.s32.totalorder %s415, %s417
      %p424 = scmp.eq.s32.totalorder %s41, 3
      %p425 = por %p423, %p424
      %p426 = scmp.ne.s32.totalorder %s417, %s418
      %p427 = scmp.eq.s32.totalorder %s41, 0
      %p428 = por %p426, %p427
      %p429 = scmp.ne.s32.totalorder %s417, %s418
      %p430 = scmp.eq.s32.totalorder %s42, 3
      %p431 = por %p429, %p430
      %p433 = scmp.ne.s32.totalorder %s418, %s432
      %p434 = scmp.eq.s32.totalorder %s42, 0
      %p435 = por %p433, %p434
      %s436 = ssub.s32 %s43, %s55
      %p437 = scmp.eq.s32.totalorder %s436, 0
      %s439 = sadd.s32 %s438, 1
      %s440 = scalar_select %p437, %s438, %s439
      %p443 = pneg %p437
      %p444 = scmp.eq.s32.totalorder %s36, 3
      %p445 = por %p443, %p444
      %p446 = scmp.ne.s32.totalorder %s438, %s441
      %p447 = scmp.eq.s32.totalorder %s36, 0
      %p448 = por %p446, %p447
      %p449 = scmp.ne.s32.totalorder %s438, %s441
      %p450 = scmp.eq.s32.totalorder %s41, 3
      %p451 = por %p449, %p450
      %p452 = scmp.ne.s32.totalorder %s441, %s442
      %p453 = scmp.eq.s32.totalorder %s41, 0
      %p454 = por %p452, %p453
      %p455 = scmp.ne.s32.totalorder %s441, %s442
      %p456 = scmp.eq.s32.totalorder %s42, 3
      %p457 = por %p455, %p456
      %p459 = scmp.ne.s32.totalorder %s442, %s458
      %p460 = scmp.eq.s32.totalorder %s42, 0
      %p461 = por %p459, %p460
      %p462 = scmp.le.s32.totalorder 1, %s36
      %p463 = scmp.lt.s32.totalorder %s36, 5
      %p464 = pnand %p462, %p463
      %p465 = pneg %p464
      // Predicated region
      $region9: #{tpu_custom_call.1} parent=5 // pred_check
        _
      $region10: #{tpu_custom_call.1} parent=5 // pred_check_branch
        %467 = sbr.rel (%p464) target = $region12
      $region11: #{tpu_custom_call.1} parent=5 // pred_region
        %s468 = ssub.s32 %s36, 1
        // Predicated region
        $region13: #{tpu_custom_call.1} parent=11 // pred_check
          %p469 = pneg %p407
        $region14: #{tpu_custom_call.1} parent=11 // pred_check_branch
          %471 = sbr.rel (%p469) target = $region16
        $region15: #{tpu_custom_call.1} parent=11 // pred_region
          %s473 = ssub.s32 256, 256
          %474 = vsyncadd [#allocation13], %s473
          %s475 = sshll.u32 [#allocation14], 4
          %s476 = int_to_ptr.vmem [resolvable:$true] %s475
          %481 = dma.hbm_to_vmem [thread:$0]  %s13, 256, %s476, [#allocation13], 64, 64, 4
        $region16: #{tpu_custom_call.1} parent=11 // pred_fallthru
          _
        // Predicated region
        $region17: #{tpu_custom_call.1} parent=11 // pred_check
          %p482 = pneg %p428
        $region18: #{tpu_custom_call.1} parent=11 // pred_check_branch
          %484 = sbr.rel (%p482) target = $region20
        $region19: #{tpu_custom_call.1} parent=11 // pred_region
          _
        $region20: #{tpu_custom_call.1} parent=11 // pred_fallthru
          _
      $region12: #{tpu_custom_call.1} parent=5 // pred_fallthru
        _
      %p485 = scmp.lt.s32.totalorder %s36, 4
      // Predicated region
      $region21: #{tpu_custom_call.1} parent=5 // pred_check
        %p486 = pneg %p485
      $region22: #{tpu_custom_call.1} parent=5 // pred_check_branch
        %488 = sbr.rel (%p486) target = $region24
      $region23: #{tpu_custom_call.1} parent=5 // pred_region
        // Predicated region
        $region25: #{tpu_custom_call.1} parent=23 // pred_check
          %p489 = pneg %p68
        $region26: #{tpu_custom_call.1} parent=23 // pred_check_branch
          %491 = sbr.rel (%p489) target = $region28
        $region27: #{tpu_custom_call.1} parent=23 // pred_region
          %p492 = scmp.lt.s32.totalorder %s43, 1
          %s493 = scalar_select %p492, %s43, 1
          %s494 = smul.addr %s493, 8
          %s495 = scalar_lea.vmem %s0, %s494
        $region28: #{tpu_custom_call.1} parent=23 // pred_fallthru
          _
        // Predicated region
        $region29: #{tpu_custom_call.1} parent=23 // pred_check
          %p496 = pneg %p94
        $region30: #{tpu_custom_call.1} parent=23 // pred_check_branch
          %498 = sbr.rel (%p496) target = $region32
        $region31: #{tpu_custom_call.1} parent=23 // pred_region
          %s499 = sand.u32 %s84, 1
          %s500 = scalar_lea.sflag [#allocation4], %s499
          %s501 = sand.u32 %s84, 1
          %s502 = smul.addr %s501, 4
          %s503 = scalar_lea.vmem [#allocation3], %s502
          %s505 = ssub.s32 64, 64
          %506 = vsyncadd %s500, %s505
          %s507 = smul.addr %s43, 64
          %s508 = scalar_lea.hbm %s1, %s507
          %s510 = sshll.u32 %s503, 4
          %s511 = int_to_ptr.vmem [resolvable:$true] %s510
          %513 = dma.hbm_to_vmem [thread:$0]  %s508, 64, %s511, %s500
        $region32: #{tpu_custom_call.1} parent=23 // pred_fallthru
          _
        // Predicated region
        $region33: #{tpu_custom_call.1} parent=23 // pred_check
          %p514 = pneg %p120
        $region34: #{tpu_custom_call.1} parent=23 // pred_check_branch
          %516 = sbr.rel (%p514) target = $region36
        $region35: #{tpu_custom_call.1} parent=23 // pred_region
          %p517 = scmp.lt.s32.totalorder %s44, 1
          %s518 = scalar_select %p517, %s44, 1
          %s519 = smul.addr %s518, 4
          %s520 = smul.addr %s519, 4
          %s521 = scalar_lea.vmem %s2, %s520
        $region36: #{tpu_custom_call.1} parent=23 // pred_fallthru
          _
        // Predicated region
        $region37: #{tpu_custom_call.1} parent=23 // pred_check
          %p522 = pneg %p146
        $region38: #{tpu_custom_call.1} parent=23 // pred_check_branch
          %524 = sbr.rel (%p522) target = $region40
        $region39: #{tpu_custom_call.1} parent=23 // pred_region
          %s525 = sand.u32 %s36, 1
          %s526 = scalar_lea.sflag [#allocation7], %s525
          %s527 = sand.u32 %s136, 1
          %s528 = scalar_lea.vmem [#allocation6], %s527
          %s530 = ssub.s32 16, 16
          %531 = vsyncadd %s526, %s530
          %s532 = smul.addr %s44, 16
          %s533 = scalar_lea.hbm %s3, %s532
          %s535 = sshll.u32 %s528, 4
          %s536 = int_to_ptr.vmem [resolvable:$true] %s535
          %538 = dma.hbm_to_vmem [thread:$0]  %s533, 16, %s536, %s526
        $region40: #{tpu_custom_call.1} parent=23 // pred_fallthru
          _
        // Predicated region
        $region41: #{tpu_custom_call.1} parent=23 // pred_check
          %p539 = pneg %p172
        $region42: #{tpu_custom_call.1} parent=23 // pred_check_branch
          %541 = sbr.rel (%p539) target = $region44
        $region43: #{tpu_custom_call.1} parent=23 // pred_region
          %p542 = scmp.lt.s32.totalorder %s44, 1
          %s543 = scalar_select %p542, %s44, 1
          %s544 = smul.addr %s543, 4
          %s545 = smul.addr %s544, 4
          %s546 = scalar_lea.vmem %s4, %s545
        $region44: #{tpu_custom_call.1} parent=23 // pred_fallthru
          _
        // Predicated region
        $region45: #{tpu_custom_call.1} parent=23 // pred_check
          %p547 = pneg %p198
        $region46: #{tpu_custom_call.1} parent=23 // pred_check_branch
          %549 = sbr.rel (%p547) target = $region48
        $region47: #{tpu_custom_call.1} parent=23 // pred_region
          %p550 = scmp.lt.s32.totalorder %s44, 1
          %s551 = scalar_select %p550, %s44, 1
          %s552 = smul.addr %s551, 4
          %s553 = smul.addr %s552, 4
          %s554 = scalar_lea.vmem %s5, %s553
        $region48: #{tpu_custom_call.1} parent=23 // pred_fallthru
          _
        // Predicated region
        $region49: #{tpu_custom_call.1} parent=23 // pred_check
          %p555 = pneg %p224
        $region50: #{tpu_custom_call.1} parent=23 // pred_check_branch
          %557 = sbr.rel (%p555) target = $region52
        $region51: #{tpu_custom_call.1} parent=23 // pred_region
          %s558 = sand.u32 %s36, 1
          %s559 = scalar_lea.sflag [#allocation7], %s558
          %s560 = sand.u32 %s214, 1
          %s561 = scalar_lea.vmem [#allocation8], %s560
          %s563 = ssub.s32 16, 16
          %564 = vsyncadd %s559, %s563
          %s565 = smul.addr %s44, 16
          %s566 = scalar_lea.hbm %s6, %s565
          %s568 = sshll.u32 %s561, 4
          %s569 = int_to_ptr.vmem [resolvable:$true] %s568
          %571 = dma.hbm_to_vmem [thread:$0]  %s566, 16, %s569, %s559
        $region52: #{tpu_custom_call.1} parent=23 // pred_fallthru
          _
        // Predicated region
        $region53: #{tpu_custom_call.1} parent=23 // pred_check
          %p572 = pneg %p250
        $region54: #{tpu_custom_call.1} parent=23 // pred_check_branch
          %574 = sbr.rel (%p572) target = $region56
        $region55: #{tpu_custom_call.1} parent=23 // pred_region
          %p575 = scmp.lt.s32.totalorder %s44, 1
          %s576 = scalar_select %p575, %s44, 1
          %s577 = smul.addr %s576, 8
          %s578 = smul.addr %s577, 4
          %s579 = scalar_lea.vmem %s7, %s578
        $region56: #{tpu_custom_call.1} parent=23 // pred_fallthru
          _
        // Predicated region
        $region57: #{tpu_custom_call.1} parent=23 // pred_check
          %p580 = pneg %p276
        $region58: #{tpu_custom_call.1} parent=23 // pred_check_branch
          %582 = sbr.rel (%p580) target = $region60
        $region59: #{tpu_custom_call.1} parent=23 // pred_region
          %s583 = sand.u32 %s36, 1
          %s584 = scalar_lea.sflag [#allocation10], %s583
          %s585 = sand.u32 %s266, 1
          %s586 = smul.addr %s585, 4
          %s587 = scalar_lea.vmem [#allocation9], %s586
          %s589 = ssub.s32 64, 64
          %590 = vsyncadd %s584, %s589
          %s591 = smul.addr %s44, 64
          %s592 = scalar_lea.hbm %s8, %s591
          %s594 = sshll.u32 %s587, 4
          %s595 = int_to_ptr.vmem [resolvable:$true] %s594
          %597 = dma.hbm_to_vmem [thread:$0]  %s592, 64, %s595, %s584
        $region60: #{tpu_custom_call.1} parent=23 // pred_fallthru
          _
        // Predicated region
        $region61: #{tpu_custom_call.1} parent=23 // pred_check
          %p598 = pneg %p302
        $region62: #{tpu_custom_call.1} parent=23 // pred_check_branch
          %600 = sbr.rel (%p598) target = $region64
        $region63: #{tpu_custom_call.1} parent=23 // pred_region
          %s601 = sand.u32 %s36, 1
          %s602 = scalar_lea.sflag [#allocation10], %s601
          %s603 = sand.u32 %s292, 1
          %s604 = smul.addr %s603, 16
          %s605 = scalar_lea.vmem [#allocation11], %s604
          %s607 = ssub.s32 256, 256
          %608 = vsyncadd %s602, %s607
          %s609 = smul.addr %s44, 4
          %s610 = smul.addr %s609, 64
          %s611 = scalar_lea.hbm %s9, %s610
          %s612 = sshll.u32 %s605, 4
          %s613 = int_to_ptr.vmem [resolvable:$true] %s612
          %618 = dma.hbm_to_vmem [thread:$0]  %s611, 256, %s613, %s602, 64, 64, 4
        $region64: #{tpu_custom_call.1} parent=23 // pred_fallthru
          _
        // Predicated region
        $region65: #{tpu_custom_call.1} parent=23 // pred_check
          %p619 = pneg %p328
        $region66: #{tpu_custom_call.1} parent=23 // pred_check_branch
          %621 = sbr.rel (%p619) target = $region68
        $region67: #{tpu_custom_call.1} parent=23 // pred_region
          %s622 = sand.u32 %s36, 1
          %s623 = scalar_lea.sflag [#allocation13], %s622
          %s624 = sand.u32 %s318, 1
          %s625 = scalar_lea.vmem [#allocation12], %s624
          %s627 = ssub.s32 16, 16
          %628 = vsyncadd %s623, %s627
          %s629 = smul.addr %s44, 16
          %s630 = scalar_lea.hbm %s10, %s629
          %s632 = sshll.u32 %s625, 4
          %s633 = int_to_ptr.vmem [resolvable:$true] %s632
          %635 = dma.hbm_to_vmem [thread:$0]  %s630, 16, %s633, %s623
        $region68: #{tpu_custom_call.1} parent=23 // pred_fallthru
          _
        // Predicated region
        $region69: #{tpu_custom_call.1} parent=23 // pred_check
          %p636 = pneg %p354
        $region70: #{tpu_custom_call.1} parent=23 // pred_check_branch
          %638 = sbr.rel (%p636) target = $region72
        $region71: #{tpu_custom_call.1} parent=23 // pred_region
          %p639 = scmp.lt.s32.totalorder %s44, 1
          %s640 = scalar_select %p639, %s44, 1
          %s641 = smul.addr %s640, 16
          %s642 = smul.addr %s641, 4
          %s643 = scalar_lea.vmem %s11, %s642
        $region72: #{tpu_custom_call.1} parent=23 // pred_fallthru
          _
        // Predicated region
        $region73: #{tpu_custom_call.1} parent=23 // pred_check
          %p644 = pneg %p380
        $region74: #{tpu_custom_call.1} parent=23 // pred_check_branch
          %646 = sbr.rel (%p644) target = $region76
        $region75: #{tpu_custom_call.1} parent=23 // pred_region
          %p647 = scmp.lt.s32.totalorder %s44, 1
          %s648 = scalar_select %p647, %s44, 1
          %s649 = smul.addr %s648, 8
          %s650 = scalar_lea.vmem %s12, %s649
        $region76: #{tpu_custom_call.1} parent=23 // pred_fallthru
          _
      $region24: #{tpu_custom_call.1} parent=5 // pred_fallthru
        _
      %p651 = scmp.le.s32.totalorder 1, %s36
      %p652 = scmp.lt.s32.totalorder %s36, 5
      %p653 = pnand %p651, %p652
      %p654 = pneg %p653
      // Predicated region
      $region77: #{tpu_custom_call.1} parent=5 // pred_check
        _
      $region78: #{tpu_custom_call.1} parent=5 // pred_check_branch
        %656 = sbr.rel (%p653) target = $region80
      $region79: #{tpu_custom_call.1} parent=5 // pred_region
        %s657 = ssub.s32 %s36, 1
        %s658 = sand.u32 %s87, 1
        %s659 = scalar_lea.sflag [#allocation4], %s658
        %s660 = sand.u32 %s87, 1
        %s661 = smul.addr %s660, 4
        %s662 = scalar_lea.vmem [#allocation3], %s661
        // Predicated region
        $region81: #{tpu_custom_call.1} parent=79 // pred_check
          %p663 = pneg %p100
        $region82: #{tpu_custom_call.1} parent=79 // pred_check_branch
          %665 = sbr.rel (%p663) target = $region84
        $region83: #{tpu_custom_call.1} parent=79 // pred_region
          %666 = dma.done %s659, 64
        $region84: #{tpu_custom_call.1} parent=79 // pred_fallthru
          _
        %s667 = sand.u32 %s41, 1
        %s668 = scalar_lea.sflag [#allocation7], %s667
        %s669 = sand.u32 %s139, 1
        %s670 = scalar_lea.vmem [#allocation6], %s669
        // Predicated region
        $region85: #{tpu_custom_call.1} parent=79 // pred_check
          %p671 = pneg %p152
        $region86: #{tpu_custom_call.1} parent=79 // pred_check_branch
          %673 = sbr.rel (%p671) target = $region88
        $region87: #{tpu_custom_call.1} parent=79 // pred_region
          %674 = dma.done %s668, 16
        $region88: #{tpu_custom_call.1} parent=79 // pred_fallthru
          _
        %s675 = sand.u32 %s41, 1
        %s676 = scalar_lea.sflag [#allocation7], %s675
        %s677 = sand.u32 %s217, 1
        %s678 = scalar_lea.vmem [#allocation8], %s677
        // Predicated region
        $region89: #{tpu_custom_call.1} parent=79 // pred_check
          %p679 = pneg %p230
        $region90: #{tpu_custom_call.1} parent=79 // pred_check_branch
          %681 = sbr.rel (%p679) target = $region92
        $region91: #{tpu_custom_call.1} parent=79 // pred_region
          %682 = dma.done %s676, 16
        $region92: #{tpu_custom_call.1} parent=79 // pred_fallthru
          _
        %s683 = sand.u32 %s41, 1
        %s684 = scalar_lea.sflag [#allocation10], %s683
        %s685 = sand.u32 %s269, 1
        %s686 = smul.addr %s685, 4
        %s687 = scalar_lea.vmem [#allocation9], %s686
        // Predicated region
        $region93: #{tpu_custom_call.1} parent=79 // pred_check
          %p688 = pneg %p282
        $region94: #{tpu_custom_call.1} parent=79 // pred_check_branch
          %690 = sbr.rel (%p688) target = $region96
        $region95: #{tpu_custom_call.1} parent=79 // pred_region
          %691 = dma.done %s684, 64
        $region96: #{tpu_custom_call.1} parent=79 // pred_fallthru
          _
        %s692 = sand.u32 %s41, 1
        %s693 = scalar_lea.sflag [#allocation10], %s692
        %s694 = sand.u32 %s295, 1
        %s695 = smul.addr %s694, 16
        %s696 = scalar_lea.vmem [#allocation11], %s695
        // Predicated region
        $region97: #{tpu_custom_call.1} parent=79 // pred_check
          %p697 = pneg %p308
        $region98: #{tpu_custom_call.1} parent=79 // pred_check_branch
          %699 = sbr.rel (%p697) target = $region100
        $region99: #{tpu_custom_call.1} parent=79 // pred_region
          %700 = dma.done %s693, 256
        $region100: #{tpu_custom_call.1} parent=79 // pred_fallthru
          _
        %s701 = sand.u32 %s41, 1
        %s702 = scalar_lea.sflag [#allocation13], %s701
        %s703 = sand.u32 %s321, 1
        %s704 = scalar_lea.vmem [#allocation12], %s703
        // Predicated region
        $region101: #{tpu_custom_call.1} parent=79 // pred_check
          %p705 = pneg %p334
        $region102: #{tpu_custom_call.1} parent=79 // pred_check_branch
          %707 = sbr.rel (%p705) target = $region104
        $region103: #{tpu_custom_call.1} parent=79 // pred_region
          %708 = dma.done %s702, 16
        $region104: #{tpu_custom_call.1} parent=79 // pred_fallthru
          _
        // Predicated region
        $region105: #{tpu_custom_call.1} parent=79 // pred_check
          %p709 = pneg %p407
        $region106: #{tpu_custom_call.1} parent=79 // pred_check_branch
          %711 = sbr.rel (%p709) target = $region108
        $region107: #{tpu_custom_call.1} parent=79 // pred_region
          %712 = dma.done [#allocation13], 256
        $region108: #{tpu_custom_call.1} parent=79 // pred_fallthru
          _
        %p713 = scmp.lt.s32.totalorder %s45, 1
        %s714 = scalar_select %p713, %s45, 1
        %s715 = smul.addr %s714, 8
        %s716 = scalar_lea.vmem %s0, %s715
        %p717 = pneg %p74
        %p718 = pneg %p71
        %s719 = sand.u32 %s87, 1
        %s720 = scalar_lea.sflag [#allocation4], %s719
        %s721 = sand.u32 %s87, 1
        %s722 = smul.addr %s721, 4
        %s723 = scalar_lea.vmem [#allocation3], %s722
        %p724 = pneg %p100
        %p725 = pneg %p97
        %p726 = scmp.lt.s32.totalorder %s46, 1
        %s727 = scalar_select %p726, %s46, 1
        %s728 = smul.addr %s727, 4
        %s729 = smul.addr %s728, 4
        %s730 = scalar_lea.vmem %s2, %s729
        %p731 = pneg %p126
        %p732 = pneg %p123
        %s733 = sand.u32 %s41, 1
        %s734 = scalar_lea.sflag [#allocation7], %s733
        %s735 = sand.u32 %s139, 1
        %s736 = scalar_lea.vmem [#allocation6], %s735
        %p737 = pneg %p152
        %p738 = pneg %p149
        %p739 = scmp.lt.s32.totalorder %s46, 1
        %s740 = scalar_select %p739, %s46, 1
        %s741 = smul.addr %s740, 4
        %s742 = smul.addr %s741, 4
        %s743 = scalar_lea.vmem %s4, %s742
        %p744 = pneg %p178
        %p745 = pneg %p175
        %p746 = scmp.lt.s32.totalorder %s46, 1
        %s747 = scalar_select %p746, %s46, 1
        %s748 = smul.addr %s747, 4
        %s749 = smul.addr %s748, 4
        %s750 = scalar_lea.vmem %s5, %s749
        %p751 = pneg %p204
        %p752 = pneg %p201
        %s753 = sand.u32 %s41, 1
        %s754 = scalar_lea.sflag [#allocation7], %s753
        %s755 = sand.u32 %s217, 1
        %s756 = scalar_lea.vmem [#allocation8], %s755
        %p757 = pneg %p230
        %p758 = pneg %p227
        %p759 = scmp.lt.s32.totalorder %s46, 1
        %s760 = scalar_select %p759, %s46, 1
        %s761 = smul.addr %s760, 8
        %s762 = smul.addr %s761, 4
        %s763 = scalar_lea.vmem %s7, %s762
        %p764 = pneg %p256
        %p765 = pneg %p253
        %s766 = sand.u32 %s41, 1
        %s767 = scalar_lea.sflag [#allocation10], %s766
        %s768 = sand.u32 %s269, 1
        %s769 = smul.addr %s768, 4
        %s770 = scalar_lea.vmem [#allocation9], %s769
        %p771 = pneg %p282
        %p772 = pneg %p279
        %s773 = sand.u32 %s41, 1
        %s774 = scalar_lea.sflag [#allocation10], %s773
        %s775 = sand.u32 %s295, 1
        %s776 = smul.addr %s775, 16
        %s777 = scalar_lea.vmem [#allocation11], %s776
        %p778 = pneg %p308
        %p779 = pneg %p305
        %s780 = sand.u32 %s41, 1
        %s781 = scalar_lea.sflag [#allocation13], %s780
        %s782 = sand.u32 %s321, 1
        %s783 = scalar_lea.vmem [#allocation12], %s782
        %p784 = pneg %p334
        %p785 = pneg %p331
        %p786 = scmp.lt.s32.totalorder %s46, 1
        %s787 = scalar_select %p786, %s46, 1
        %s788 = smul.addr %s787, 16
        %s789 = smul.addr %s788, 4
        %s790 = scalar_lea.vmem %s11, %s789
        %p791 = pneg %p360
        %p792 = pneg %p357
        %p793 = scmp.lt.s32.totalorder %s46, 1
        %s794 = scalar_select %p793, %s46, 1
        %s795 = smul.addr %s794, 8
        %s796 = scalar_lea.vmem %s12, %s795
        %p797 = pneg %p386
        %p798 = pneg %p383
        %p799 = pneg %p407
        %p800 = pneg %p404
        %p801 = pneg %p428
        %p802 = pneg %p425
        %p803 = pneg %p454
        %p804 = pneg %p451
        %s805 = sand.u32 %s441, 1
        %s806 = scalar_lea.sflag [#allocation5], %s805
        %s807 = sand.u32 %s441, 1
        %s808 = smul.addr %s807, 8
        %s809 = scalar_lea.vmem [#allocation15], %s808
        %p810 = scmp.lt.s32.totalorder %s45, 1
        %s811 = scalar_select %p810, %s45, 1
        %s812 = smul.addr %s811, 8
        %s813 = scalar_lea.vmem %s0, %s812
        %p814 = scmp.lt.s32.totalorder %s46, 1
        %s815 = scalar_select %p814, %s46, 1
        %s816 = smul.addr %s815, 4
        %s817 = smul.addr %s816, 4
        %s818 = scalar_lea.vmem %s2, %s817
        %p819 = scmp.lt.s32.totalorder %s46, 1
        %s820 = scalar_select %p819, %s46, 1
        %s821 = smul.addr %s820, 4
        %s822 = smul.addr %s821, 4
        %s823 = scalar_lea.vmem %s4, %s822
        %p824 = scmp.lt.s32.totalorder %s46, 1
        %s825 = scalar_select %p824, %s46, 1
        %s826 = smul.addr %s825, 4
        %s827 = smul.addr %s826, 4
        %s828 = scalar_lea.vmem %s5, %s827
        %p829 = scmp.lt.s32.totalorder %s46, 1
        %s830 = scalar_select %p829, %s46, 1
        %s831 = smul.addr %s830, 8
        %s832 = smul.addr %s831, 4
        %s833 = scalar_lea.vmem %s7, %s832
        %p834 = scmp.lt.s32.totalorder %s46, 1
        %s835 = scalar_select %p834, %s46, 1
        %s836 = smul.addr %s835, 16
        %s837 = smul.addr %s836, 4
        %s838 = scalar_lea.vmem %s11, %s837
        %p839 = scmp.lt.s32.totalorder %s46, 1
        %s840 = scalar_select %p839, %s46, 1
        %s841 = smul.addr %s840, 8
        %s842 = scalar_lea.vmem %s12, %s841
        %p844 = scmp.eq.s32.totalorder %s46, 0
        // Predicated region
        $region109: #{tpu_custom_call.1} parent=79 // pred_check
          %p845 = pneg %p844
        $region110: #{tpu_custom_call.1} parent=79 // pred_check_branch
          %847 = sbr.rel (%p845) target = $region112
        $region111: #{tpu_custom_call.1} parent=79 // pred_region
          %v848 = vld [vmem:[%s813] sm:$0xff]
          %vm849 = vcmask 261120
          %850 = vst.msk [vmem:[#allocation2] sm:$0xff] %vm849, %v848
        $region112: #{tpu_custom_call.1} parent=79 // pred_fallthru
          _
        %v851 = vld [vmem:[#allocation2] sm:$0xff]
        %v852 = vld [vmem:[%s662] sm:$0xf]
        %v853 = vlaneseq
        %v854 = vshrl.u32 %v853, 7
        %v855 = vlaneseq
        %v856 = vand.u32 %v855, 127
        %vm857 = vcmp.le.s32.totalorder %v856, %v854
        %v858 = vsel %vm857, 0.0, -1e+30
        %v859 = vld [vmem:[%s687] sm:$0xf]
        %v860 = vld [vmem:[%s842] sm:$0x3f]
        %v861 = vpack.c.bf16 %v851, %v851
        %v862 = vld [vmem:[%s818] sm:$0xf]
        %v863 = vld [vmem:[%s818 + $0x4] sm:$0xf]
        %v864 = vld [vmem:[%s818 + $0x8] sm:$0xf]
        %v865 = vld [vmem:[%s818 + $0xc] sm:$0xf]
        %v866 = vld [vmem:[%s670] sm:$0x1]
        %v868 = vlaneseq
        %v869 = vshrl.u32 %v868, 7
        %v870 = vsub.s32 0, %v869
        %v871 = vrot.slane %v866, %v870
        %v877 = vunpack.c.l.b16 %v862
        %v878 = vunpack.c.l.b16 %v863
        %v879 = vunpack.c.l.b16 %v864
        %v880 = vunpack.c.l.b16 %v865
        %v881 = vpack.c.b16 %v878, %v877
        %v882 = vpack.c.b16 %v880, %v879
        %vm885 = vcmask 261120
        %v887 = vsel %vm885, %v861, 0
        %889 = vmatprep.subr.bf16.mxu0 0
        %890 = vmatpush1.bf16.msra.mxu0 0
        %891 = vmatprep.subr.bf16.mxu0 0
        %892 = vmatpush1.bf16.msra.mxu0 0
        %893 = vmatprep.subr.bf16.mxu0 0
        %894 = vmatpush1.bf16.msra.mxu0 0
        %895 = vmatprep.subr.bf16.mxu0 0
        %896 = vmatpush1.bf16.msra.mxu0 0
        %897 = vmatprep.subr.bf16.mxu0 0
        %898 = vmatpush1.bf16.msra.mxu0 0
        %899 = vmatprep.subr.bf16.mxu0 0
        %900 = vmatpush1.bf16.msra.mxu0 0
        %901 = vmatprep.subr.bf16.mxu0 0
        %902 = vmatpush1.bf16.msra.mxu0 %v882
        %903 = vmatprep.subr.bf16.mxu0 0
        %904 = vmatpush1.bf16.msra.mxu0 %v881
        %905 = vmatprep.subr.bf16.mxu0 0
        %906 = vmatpush2.bf16.msra.mxu0 0
        %907 = vmatprep.subr.bf16.mxu0 0
        %908 = vmatpush2.bf16.msra.mxu0 0
        %909 = vmatprep.subr.bf16.mxu0 0
        %910 = vmatpush2.bf16.msra.mxu0 0
        %911 = vmatprep.subr.bf16.mxu0 0
        %912 = vmatpush2.bf16.msra.mxu0 0
        %913 = vmatprep.subr.bf16.mxu0 0
        %914 = vmatpush2.bf16.msra.mxu0 0
        %915 = vmatprep.subr.bf16.mxu0 0
        %916 = vmatpush2.bf16.msra.mxu0 0
        %917 = vmatprep.subr.bf16.mxu0 0
        %918 = vmatpush2.bf16.msra.mxu0 0
        %919 = vmatprep.subr.bf16.mxu0 0
        %920 = vmatpush2.bf16.msra.mxu0 0
        %921 = vmatprep.mubr.bf16.mxu0 0
        %922 = vmatmul.mubr.bf16.gmra.mxu0 %v887
        %v923 = vpop.f32.mrf.mxu0
        %v924 = vadd.f32 %v871, %v923
        %v925 = vpop.f32.mrf.mxu0
        %v926 = vpop.f32.mrf.mxu0
        %v927 = vpop.f32.mrf.mxu0
        %928 = vdwg.mxu0
        %v929 = vld [vmem:[%s833] sm:$0xf]
        %v930 = vld [vmem:[%s833 + $0x4] sm:$0xf]
        %v931 = vld [vmem:[%s833 + $0x8] sm:$0xf]
        %v932 = vld [vmem:[%s833 + $0xc] sm:$0xf]
        %v933 = vpack.c.bf16 %v924, %v924
        %935 = vrot.lane.b32.xlu0 %v933, 96
        %v936 = vpop.permute.xlu0 %935
        %vm937 = vcmask 64512
        %v939 = vsel %vm937, %v933, 0
        %v942 = vsel %vm937, %v936, 0
        %944 = vmatprep.subr.bf16.mxu0 0
        %945 = vmatpush1.bf16.xpose.msra.mxu0 0
        %946 = vmatprep.subr.bf16.mxu0 0
        %947 = vmatpush1.bf16.xpose.msra.mxu0 0
        %948 = vmatprep.subr.bf16.mxu0 0
        %949 = vmatpush1.bf16.xpose.msra.mxu0 0
        %950 = vmatprep.subr.bf16.mxu0 0
        %951 = vmatpush1.bf16.xpose.msra.mxu0 0
        %952 = vmatprep.subr.bf16.mxu0 0
        %953 = vmatpush1.bf16.xpose.msra.mxu0 0
        %954 = vmatprep.subr.bf16.mxu0 0
        %955 = vmatpush1.bf16.xpose.msra.mxu0 0
        %956 = vmatprep.subr.bf16.mxu0 0
        %957 = vmatpush1.bf16.xpose.msra.mxu0 0
        %958 = vmatprep.subr.bf16.mxu0 0
        %959 = vmatpush1.bf16.xpose.msra.mxu0 %v942
        %960 = vmatprep.subr.bf16.mxu0 0
        %961 = vmatpush2.bf16.xpose.msra.mxu0 0
        %962 = vmatprep.subr.bf16.mxu0 0
        %963 = vmatpush2.bf16.xpose.msra.mxu0 0
        %964 = vmatprep.subr.bf16.mxu0 0
        %965 = vmatpush2.bf16.xpose.msra.mxu0 0
        %966 = vmatprep.subr.bf16.mxu0 0
        %967 = vmatpush2.bf16.xpose.msra.mxu0 0
        %968 = vmatprep.subr.bf16.mxu0 0
        %969 = vmatpush2.bf16.xpose.msra.mxu0 0
        %970 = vmatprep.subr.bf16.mxu0 0
        %971 = vmatpush2.bf16.xpose.msra.mxu0 0
        %972 = vmatprep.subr.bf16.mxu0 0
        %973 = vmatpush2.bf16.xpose.msra.mxu0 0
        %974 = vmatprep.subr.bf16.mxu0 0
        %975 = vmatpush2.bf16.xpose.msra.mxu0 0
        %976 = vmatprep.mubr.bf16.mxu0 0
        %977 = vmatmul.mubr.bf16.gmra.mxu0 %v939
        %v978 = vpop.f32.mrf.mxu0
        %v979 = vadd.f32 %v858, %v978
        %v980 = vpop.f32.mrf.mxu0
        %v981 = vpop.f32.mrf.mxu0
        %v982 = vpop.f32.mrf.mxu0
        %983 = vdwg.mxu0
        %v984 = vsel %vm937, %v979, -inf
        %985 = vmax.xlane.f32.xlu0 %v984
        %v986 = vpop.xlane.xlu0 %985
        %v987 = vsub.f32 %v979, %v986
        %v988 = vmul.f32 %v987, 1.442695
        %v989 = vpow.pop %v988
        %v990 = vsel %vm937, %v989, 0.0
        %991 = vadd.xlane.f32.xlu0 %v990
        %v992 = vpop.xlane.xlu0 %991
        %v993 = vrcp.pop %v992
        %v994 = vmul.f32 %v989, %v993
        %v995 = vpack.c.bf16 %v994, %v994
        %996 = vrot.lane.b32.xlu0 %v933, 64
        %v997 = vpop.permute.xlu0 %996
        %v999 = vsel %vm937, %v995, 0
        %vm1001 = vcmask 1043456
        %v1003 = vsel %vm1001, %v997, 0
        %1005 = vmatprep.subr.bf16.mxu0 0
        %1006 = vmatpush1.bf16.msra.mxu0 0
        %1007 = vmatprep.subr.bf16.mxu0 0
        %1008 = vmatpush1.bf16.msra.mxu0 0
        %1009 = vmatprep.subr.bf16.mxu0 0
        %1010 = vmatpush1.bf16.msra.mxu0 0
        %1011 = vmatprep.subr.bf16.mxu0 0
        %1012 = vmatpush1.bf16.msra.mxu0 0
        %1013 = vmatprep.subr.bf16.mxu0 0
        %1014 = vmatpush1.bf16.msra.mxu0 0
        %1015 = vmatprep.subr.bf16.mxu0 0
        %1016 = vmatpush1.bf16.msra.mxu0 0
        %1017 = vmatprep.subr.bf16.mxu0 0
        %1018 = vmatpush1.bf16.msra.mxu0 0
        %1019 = vmatprep.subr.bf16.mxu0 0
        %1020 = vmatpush1.bf16.msra.mxu0 %v1003
        %1021 = vmatprep.subr.bf16.mxu0 0
        %1022 = vmatpush2.bf16.msra.mxu0 0
        %1023 = vmatprep.subr.bf16.mxu0 0
        %1024 = vmatpush2.bf16.msra.mxu0 0
        %1025 = vmatprep.subr.bf16.mxu0 0
        %1026 = vmatpush2.bf16.msra.mxu0 0
        %1027 = vmatprep.subr.bf16.mxu0 0
        %1028 = vmatpush2.bf16.msra.mxu0 0
        %1029 = vmatprep.subr.bf16.mxu0 0
        %1030 = vmatpush2.bf16.msra.mxu0 0
        %1031 = vmatprep.subr.bf16.mxu0 0
        %1032 = vmatpush2.bf16.msra.mxu0 0
        %1033 = vmatprep.subr.bf16.mxu0 0
        %1034 = vmatpush2.bf16.msra.mxu0 0
        %1035 = vmatprep.subr.bf16.mxu0 0
        %1036 = vmatpush2.bf16.msra.mxu0 0
        %1037 = vmatprep.mubr.bf16.mxu0 0
        %1038 = vmatmul.mubr.bf16.gmra.mxu0 %v999
        %v1039 = vpop.f32.mrf.mxu0
        %v1040 = vadd.f32 0.0, %v1039
        %v1041 = vpop.f32.mrf.mxu0
        %v1042 = vpop.f32.mrf.mxu0
        %v1043 = vpop.f32.mrf.mxu0
        %1044 = vdwg.mxu0
        %v1045 = vpack.c.bf16 %v1040, %v1040
        %1046 = vrot.lane.b32.xlu0 %v933, 120
        %v1047 = vpop.permute.xlu0 %1046
        %1048 = vrot.lane.b32.xlu0 %v933, 88
        %v1049 = vpop.permute.xlu0 %1048
        %v1051 = vsel %vm937, %v1047, 0
        %v1054 = vsel %vm937, %v1049, 0
        %1056 = vmatprep.subr.bf16.mxu0 0
        %1057 = vmatpush1.bf16.xpose.msra.mxu0 0
        %1058 = vmatprep.subr.bf16.mxu0 0
        %1059 = vmatpush1.bf16.xpose.msra.mxu0 0
        %1060 = vmatprep.subr.bf16.mxu0 0
        %1061 = vmatpush1.bf16.xpose.msra.mxu0 0
        %1062 = vmatprep.subr.bf16.mxu0 0
        %1063 = vmatpush1.bf16.xpose.msra.mxu0 0
        %1064 = vmatprep.subr.bf16.mxu0 0
        %1065 = vmatpush1.bf16.xpose.msra.mxu0 0
        %1066 = vmatprep.subr.bf16.mxu0 0
        %1067 = vmatpush1.bf16.xpose.msra.mxu0 0
        %1068 = vmatprep.subr.bf16.mxu0 0
        %1069 = vmatpush1.bf16.xpose.msra.mxu0 0
        %1070 = vmatprep.subr.bf16.mxu0 0
        %1071 = vmatpush1.bf16.xpose.msra.mxu0 %v1054
        %1072 = vmatprep.subr.bf16.mxu0 0
        %1073 = vmatpush2.bf16.xpose.msra.mxu0 0
        %1074 = vmatprep.subr.bf16.mxu0 0
        %1075 = vmatpush2.bf16.xpose.msra.mxu0 0
        %1076 = vmatprep.subr.bf16.mxu0 0
        %1077 = vmatpush2.bf16.xpose.msra.mxu0 0
        %1078 = vmatprep.subr.bf16.mxu0 0
        %1079 = vmatpush2.bf16.xpose.msra.mxu0 0
        %1080 = vmatprep.subr.bf16.mxu0 0
        %1081 = vmatpush2.bf16.xpose.msra.mxu0 0
        %1082 = vmatprep.subr.bf16.mxu0 0
        %1083 = vmatpush2.bf16.xpose.msra.mxu0 0
        %1084 = vmatprep.subr.bf16.mxu0 0
        %1085 = vmatpush2.bf16.xpose.msra.mxu0 0
        %1086 = vmatprep.subr.bf16.mxu0 0
        %1087 = vmatpush2.bf16.xpose.msra.mxu0 0
        %1088 = vmatprep.mubr.bf16.mxu0 0
        %1089 = vmatmul.mubr.bf16.gmra.mxu0 %v1051
        %v1090 = vpop.f32.mrf.mxu0
        %v1091 = vadd.f32 %v858, %v1090
        %v1092 = vpop.f32.mrf.mxu0
        %v1093 = vpop.f32.mrf.mxu0
        %v1094 = vpop.f32.mrf.mxu0
        %1095 = vdwg.mxu0
        %v1096 = vsel %vm937, %v1091, -inf
        %1097 = vmax.xlane.f32.xlu0 %v1096
        %v1098 = vpop.xlane.xlu0 %1097
        %v1099 = vsub.f32 %v1091, %v1098
        %v1100 = vmul.f32 %v1099, 1.442695
        %v1101 = vpow.pop %v1100
        %v1102 = vsel %vm937, %v1101, 0.0
        %1103 = vadd.xlane.f32.xlu0 %v1102
        %v1104 = vpop.xlane.xlu0 %1103
        %v1105 = vrcp.pop %v1104
        %v1106 = vmul.f32 %v1101, %v1105
        %v1107 = vpack.c.bf16 %v1106, %v1106
        %1108 = vrot.lane.b32.xlu0 %v933, 56
        %v1109 = vpop.permute.xlu0 %1108
        %v1111 = vsel %vm937, %v1107, 0
        %v1114 = vsel %vm1001, %v1109, 0
        %1116 = vmatprep.subr.bf16.mxu0 0
        %1117 = vmatpush1.bf16.msra.mxu0 0
        %1118 = vmatprep.subr.bf16.mxu0 0
        %1119 = vmatpush1.bf16.msra.mxu0 0
        %1120 = vmatprep.subr.bf16.mxu0 0
        %1121 = vmatpush1.bf16.msra.mxu0 0
        %1122 = vmatprep.subr.bf16.mxu0 0
        %1123 = vmatpush1.bf16.msra.mxu0 0
        %1124 = vmatprep.subr.bf16.mxu0 0
        %1125 = vmatpush1.bf16.msra.mxu0 0
        %1126 = vmatprep.subr.bf16.mxu0 0
        %1127 = vmatpush1.bf16.msra.mxu0 0
        %1128 = vmatprep.subr.bf16.mxu0 0
        %1129 = vmatpush1.bf16.msra.mxu0 0
        %1130 = vmatprep.subr.bf16.mxu0 0
        %1131 = vmatpush1.bf16.msra.mxu0 %v1114
        %1132 = vmatprep.subr.bf16.mxu0 0
        %1133 = vmatpush2.bf16.msra.mxu0 0
        %1134 = vmatprep.subr.bf16.mxu0 0
        %1135 = vmatpush2.bf16.msra.mxu0 0
        %1136 = vmatprep.subr.bf16.mxu0 0
        %1137 = vmatpush2.bf16.msra.mxu0 0
        %1138 = vmatprep.subr.bf16.mxu0 0
        %1139 = vmatpush2.bf16.msra.mxu0 0
        %1140 = vmatprep.subr.bf16.mxu0 0
        %1141 = vmatpush2.bf16.msra.mxu0 0
        %1142 = vmatprep.subr.bf16.mxu0 0
        %1143 = vmatpush2.bf16.msra.mxu0 0
        %1144 = vmatprep.subr.bf16.mxu0 0
        %1145 = vmatpush2.bf16.msra.mxu0 0
        %1146 = vmatprep.subr.bf16.mxu0 0
        %1147 = vmatpush2.bf16.msra.mxu0 0
        %1148 = vmatprep.mubr.bf16.mxu0 0
        %1149 = vmatmul.mubr.bf16.gmra.mxu0 %v1111
        %v1150 = vpop.f32.mrf.mxu0
        %v1151 = vadd.f32 0.0, %v1150
        %v1152 = vpop.f32.mrf.mxu0
        %v1153 = vpop.f32.mrf.mxu0
        %v1154 = vpop.f32.mrf.mxu0
        %1155 = vdwg.mxu0
        %v1156 = vpack.c.bf16 %v1151, %v1151
        %v1158 = vsel %vm937, %v1156, 0
        %v1161 = vsel %vm1001, %v930, 0
        %1163 = vmatprep.subr.bf16.mxu0 0
        %1164 = vmatpush1.bf16.msra.mxu0 0
        %1165 = vmatprep.subr.bf16.mxu0 0
        %1166 = vmatpush1.bf16.msra.mxu0 0
        %1167 = vmatprep.subr.bf16.mxu0 0
        %1168 = vmatpush1.bf16.msra.mxu0 0
        %1169 = vmatprep.subr.bf16.mxu0 0
        %1170 = vmatpush1.bf16.msra.mxu0 0
        %1171 = vmatprep.subr.bf16.mxu0 0
        %1172 = vmatpush1.bf16.msra.mxu0 0
        %1173 = vmatprep.subr.bf16.mxu0 0
        %1174 = vmatpush1.bf16.msra.mxu0 0
        %1175 = vmatprep.subr.bf16.mxu0 0
        %1176 = vmatpush1.bf16.msra.mxu0 0
        %1177 = vmatprep.subr.bf16.mxu0 0
        %1178 = vmatpush1.bf16.msra.mxu0 %v1161
        %1179 = vmatprep.subr.bf16.mxu0 0
        %1180 = vmatpush2.bf16.msra.mxu0 0
        %1181 = vmatprep.subr.bf16.mxu0 0
        %1182 = vmatpush2.bf16.msra.mxu0 0
        %1183 = vmatprep.subr.bf16.mxu0 0
        %1184 = vmatpush2.bf16.msra.mxu0 0
        %1185 = vmatprep.subr.bf16.mxu0 0
        %1186 = vmatpush2.bf16.msra.mxu0 0
        %1187 = vmatprep.subr.bf16.mxu0 0
        %1188 = vmatpush2.bf16.msra.mxu0 0
        %1189 = vmatprep.subr.bf16.mxu0 0
        %1190 = vmatpush2.bf16.msra.mxu0 0
        %1191 = vmatprep.subr.bf16.mxu0 0
        %1192 = vmatpush2.bf16.msra.mxu0 0
        %1193 = vmatprep.subr.bf16.mxu0 0
        %1194 = vmatpush2.bf16.msra.mxu0 0
        %1195 = vmatprep.mubr.bf16.mxu0 0
        %1196 = vmatmul.mubr.bf16.gmra.mxu0 %v1158
        %v1197 = vpop.f32.mrf.mxu0
        %v1198 = vadd.f32 0.0, %v1197
        %v1199 = vpop.f32.mrf.mxu0
        %v1200 = vpop.f32.mrf.mxu0
        %v1201 = vpop.f32.mrf.mxu0
        %1202 = vdwg.mxu0
        %v1204 = vsel %vm937, %v1045, 0
        %v1207 = vsel %vm1001, %v929, 0
        %1209 = vmatprep.subr.bf16.mxu0 0
        %1210 = vmatpush1.bf16.msra.mxu0 0
        %1211 = vmatprep.subr.bf16.mxu0 0
        %1212 = vmatpush1.bf16.msra.mxu0 0
        %1213 = vmatprep.subr.bf16.mxu0 0
        %1214 = vmatpush1.bf16.msra.mxu0 0
        %1215 = vmatprep.subr.bf16.mxu0 0
        %1216 = vmatpush1.bf16.msra.mxu0 0
        %1217 = vmatprep.subr.bf16.mxu0 0
        %1218 = vmatpush1.bf16.msra.mxu0 0
        %1219 = vmatprep.subr.bf16.mxu0 0
        %1220 = vmatpush1.bf16.msra.mxu0 0
        %1221 = vmatprep.subr.bf16.mxu0 0
        %1222 = vmatpush1.bf16.msra.mxu0 0
        %1223 = vmatprep.subr.bf16.mxu0 0
        %1224 = vmatpush1.bf16.msra.mxu0 %v1207
        %1225 = vmatprep.subr.bf16.mxu0 0
        %1226 = vmatpush2.bf16.msra.mxu0 0
        %1227 = vmatprep.subr.bf16.mxu0 0
        %1228 = vmatpush2.bf16.msra.mxu0 0
        %1229 = vmatprep.subr.bf16.mxu0 0
        %1230 = vmatpush2.bf16.msra.mxu0 0
        %1231 = vmatprep.subr.bf16.mxu0 0
        %1232 = vmatpush2.bf16.msra.mxu0 0
        %1233 = vmatprep.subr.bf16.mxu0 0
        %1234 = vmatpush2.bf16.msra.mxu0 0
        %1235 = vmatprep.subr.bf16.mxu0 0
        %1236 = vmatpush2.bf16.msra.mxu0 0
        %1237 = vmatprep.subr.bf16.mxu0 0
        %1238 = vmatpush2.bf16.msra.mxu0 0
        %1239 = vmatprep.subr.bf16.mxu0 0
        %1240 = vmatpush2.bf16.msra.mxu0 0
        %1241 = vmatprep.mubr.bf16.mxu0 0
        %1242 = vmatmul.mubr.bf16.gmra.mxu0 %v1204
        %v1243 = vpop.f32.mrf.mxu0
        %v1244 = vadd.f32 %v1198, %v1243
        %v1245 = vpop.f32.mrf.mxu0
        %v1246 = vpop.f32.mrf.mxu0
        %v1247 = vpop.f32.mrf.mxu0
        %1248 = vdwg.mxu0
        %1249 = vrot.lane.b32.xlu0 %v933, 112
        %v1250 = vpop.permute.xlu0 %1249
        %1251 = vrot.lane.b32.xlu0 %v933, 80
        %v1252 = vpop.permute.xlu0 %1251
        %v1254 = vsel %vm937, %v1250, 0
        %v1257 = vsel %vm937, %v1252, 0
        %1259 = vmatprep.subr.bf16.mxu0 0
        %1260 = vmatpush1.bf16.xpose.msra.mxu0 0
        %1261 = vmatprep.subr.bf16.mxu0 0
        %1262 = vmatpush1.bf16.xpose.msra.mxu0 0
        %1263 = vmatprep.subr.bf16.mxu0 0
        %1264 = vmatpush1.bf16.xpose.msra.mxu0 0
        %1265 = vmatprep.subr.bf16.mxu0 0
        %1266 = vmatpush1.bf16.xpose.msra.mxu0 0
        %1267 = vmatprep.subr.bf16.mxu0 0
        %1268 = vmatpush1.bf16.xpose.msra.mxu0 0
        %1269 = vmatprep.subr.bf16.mxu0 0
        %1270 = vmatpush1.bf16.xpose.msra.mxu0 0
        %1271 = vmatprep.subr.bf16.mxu0 0
        %1272 = vmatpush1.bf16.xpose.msra.mxu0 0
        %1273 = vmatprep.subr.bf16.mxu0 0
        %1274 = vmatpush1.bf16.xpose.msra.mxu0 %v1257
        %1275 = vmatprep.subr.bf16.mxu0 0
        %1276 = vmatpush2.bf16.xpose.msra.mxu0 0
        %1277 = vmatprep.subr.bf16.mxu0 0
        %1278 = vmatpush2.bf16.xpose.msra.mxu0 0
        %1279 = vmatprep.subr.bf16.mxu0 0
        %1280 = vmatpush2.bf16.xpose.msra.mxu0 0
        %1281 = vmatprep.subr.bf16.mxu0 0
        %1282 = vmatpush2.bf16.xpose.msra.mxu0 0
        %1283 = vmatprep.subr.bf16.mxu0 0
        %1284 = vmatpush2.bf16.xpose.msra.mxu0 0
        %1285 = vmatprep.subr.bf16.mxu0 0
        %1286 = vmatpush2.bf16.xpose.msra.mxu0 0
        %1287 = vmatprep.subr.bf16.mxu0 0
        %1288 = vmatpush2.bf16.xpose.msra.mxu0 0
        %1289 = vmatprep.subr.bf16.mxu0 0
        %1290 = vmatpush2.bf16.xpose.msra.mxu0 0
        %1291 = vmatprep.mubr.bf16.mxu0 0
        %1292 = vmatmul.mubr.bf16.gmra.mxu0 %v1254
        %v1293 = vpop.f32.mrf.mxu0
        %v1294 = vadd.f32 %v858, %v1293
        %v1295 = vpop.f32.mrf.mxu0
        %v1296 = vpop.f32.mrf.mxu0
        %v1297 = vpop.f32.mrf.mxu0
        %1298 = vdwg.mxu0
        %v1299 = vsel %vm937, %v1294, -inf
        %1300 = vmax.xlane.f32.xlu0 %v1299
        %v1301 = vpop.xlane.xlu0 %1300
        %v1302 = vsub.f32 %v1294, %v1301
        %v1303 = vmul.f32 %v1302, 1.442695
        %v1304 = vpow.pop %v1303
        %v1305 = vsel %vm937, %v1304, 0.0
        %1306 = vadd.xlane.f32.xlu0 %v1305
        %v1307 = vpop.xlane.xlu0 %1306
        %v1308 = vrcp.pop %v1307
        %v1309 = vmul.f32 %v1304, %v1308
        %v1310 = vpack.c.bf16 %v1309, %v1309
        %1311 = vrot.lane.b32.xlu0 %v933, 48
        %v1312 = vpop.permute.xlu0 %1311
        %v1314 = vsel %vm937, %v1310, 0
        %v1317 = vsel %vm1001, %v1312, 0
        %1319 = vmatprep.subr.bf16.mxu0 0
        %1320 = vmatpush1.bf16.msra.mxu0 0
        %1321 = vmatprep.subr.bf16.mxu0 0
        %1322 = vmatpush1.bf16.msra.mxu0 0
        %1323 = vmatprep.subr.bf16.mxu0 0
        %1324 = vmatpush1.bf16.msra.mxu0 0
        %1325 = vmatprep.subr.bf16.mxu0 0
        %1326 = vmatpush1.bf16.msra.mxu0 0
        %1327 = vmatprep.subr.bf16.mxu0 0
        %1328 = vmatpush1.bf16.msra.mxu0 0
        %1329 = vmatprep.subr.bf16.mxu0 0
        %1330 = vmatpush1.bf16.msra.mxu0 0
        %1331 = vmatprep.subr.bf16.mxu0 0
        %1332 = vmatpush1.bf16.msra.mxu0 0
        %1333 = vmatprep.subr.bf16.mxu0 0
        %1334 = vmatpush1.bf16.msra.mxu0 %v1317
        %1335 = vmatprep.subr.bf16.mxu0 0
        %1336 = vmatpush2.bf16.msra.mxu0 0
        %1337 = vmatprep.subr.bf16.mxu0 0
        %1338 = vmatpush2.bf16.msra.mxu0 0
        %1339 = vmatprep.subr.bf16.mxu0 0
        %1340 = vmatpush2.bf16.msra.mxu0 0
        %1341 = vmatprep.subr.bf16.mxu0 0
        %1342 = vmatpush2.bf16.msra.mxu0 0
        %1343 = vmatprep.subr.bf16.mxu0 0
        %1344 = vmatpush2.bf16.msra.mxu0 0
        %1345 = vmatprep.subr.bf16.mxu0 0
        %1346 = vmatpush2.bf16.msra.mxu0 0
        %1347 = vmatprep.subr.bf16.mxu0 0
        %1348 = vmatpush2.bf16.msra.mxu0 0
        %1349 = vmatprep.subr.bf16.mxu0 0
        %1350 = vmatpush2.bf16.msra.mxu0 0
        %1351 = vmatprep.mubr.bf16.mxu0 0
        %1352 = vmatmul.mubr.bf16.gmra.mxu0 %v1314
        %v1353 = vpop.f32.mrf.mxu0
        %v1354 = vadd.f32 0.0, %v1353
        %v1355 = vpop.f32.mrf.mxu0
        %v1356 = vpop.f32.mrf.mxu0
        %v1357 = vpop.f32.mrf.mxu0
        %1358 = vdwg.mxu0
        %v1359 = vpack.c.bf16 %v1354, %v1354
        %v1361 = vsel %vm937, %v1359, 0
        %v1364 = vsel %vm1001, %v931, 0
        %1366 = vmatprep.subr.bf16.mxu0 0
        %1367 = vmatpush1.bf16.msra.mxu0 0
        %1368 = vmatprep.subr.bf16.mxu0 0
        %1369 = vmatpush1.bf16.msra.mxu0 0
        %1370 = vmatprep.subr.bf16.mxu0 0
        %1371 = vmatpush1.bf16.msra.mxu0 0
        %1372 = vmatprep.subr.bf16.mxu0 0
        %1373 = vmatpush1.bf16.msra.mxu0 0
        %1374 = vmatprep.subr.bf16.mxu0 0
        %1375 = vmatpush1.bf16.msra.mxu0 0
        %1376 = vmatprep.subr.bf16.mxu0 0
        %1377 = vmatpush1.bf16.msra.mxu0 0
        %1378 = vmatprep.subr.bf16.mxu0 0
        %1379 = vmatpush1.bf16.msra.mxu0 0
        %1380 = vmatprep.subr.bf16.mxu0 0
        %1381 = vmatpush1.bf16.msra.mxu0 %v1364
        %1382 = vmatprep.subr.bf16.mxu0 0
        %1383 = vmatpush2.bf16.msra.mxu0 0
        %1384 = vmatprep.subr.bf16.mxu0 0
        %1385 = vmatpush2.bf16.msra.mxu0 0
        %1386 = vmatprep.subr.bf16.mxu0 0
        %1387 = vmatpush2.bf16.msra.mxu0 0
        %1388 = vmatprep.subr.bf16.mxu0 0
        %1389 = vmatpush2.bf16.msra.mxu0 0
        %1390 = vmatprep.subr.bf16.mxu0 0
        %1391 = vmatpush2.bf16.msra.mxu0 0
        %1392 = vmatprep.subr.bf16.mxu0 0
        %1393 = vmatpush2.bf16.msra.mxu0 0
        %1394 = vmatprep.subr.bf16.mxu0 0
        %1395 = vmatpush2.bf16.msra.mxu0 0
        %1396 = vmatprep.subr.bf16.mxu0 0
        %1397 = vmatpush2.bf16.msra.mxu0 0
        %1398 = vmatprep.mubr.bf16.mxu0 0
        %1399 = vmatmul.mubr.bf16.gmra.mxu0 %v1361
        %v1400 = vpop.f32.mrf.mxu0
        %v1401 = vadd.f32 0.0, %v1400
        %v1402 = vpop.f32.mrf.mxu0
        %v1403 = vpop.f32.mrf.mxu0
        %v1404 = vpop.f32.mrf.mxu0
        %1405 = vdwg.mxu0
        %v1406 = vadd.f32 %v1244, %v1401
        %1407 = vrot.lane.b32.xlu0 %v933, 104
        %v1408 = vpop.permute.xlu0 %1407
        %1409 = vrot.lane.b32.xlu0 %v933, 72
        %v1410 = vpop.permute.xlu0 %1409
        %v1412 = vsel %vm937, %v1408, 0
        %v1415 = vsel %vm937, %v1410, 0
        %1417 = vmatprep.subr.bf16.mxu0 0
        %1418 = vmatpush1.bf16.xpose.msra.mxu0 0
        %1419 = vmatprep.subr.bf16.mxu0 0
        %1420 = vmatpush1.bf16.xpose.msra.mxu0 0
        %1421 = vmatprep.subr.bf16.mxu0 0
        %1422 = vmatpush1.bf16.xpose.msra.mxu0 0
        %1423 = vmatprep.subr.bf16.mxu0 0
        %1424 = vmatpush1.bf16.xpose.msra.mxu0 0
        %1425 = vmatprep.subr.bf16.mxu0 0
        %1426 = vmatpush1.bf16.xpose.msra.mxu0 0
        %1427 = vmatprep.subr.bf16.mxu0 0
        %1428 = vmatpush1.bf16.xpose.msra.mxu0 0
        %1429 = vmatprep.subr.bf16.mxu0 0
        %1430 = vmatpush1.bf16.xpose.msra.mxu0 0
        %1431 = vmatprep.subr.bf16.mxu0 0
        %1432 = vmatpush1.bf16.xpose.msra.mxu0 %v1415
        %1433 = vmatprep.subr.bf16.mxu0 0
        %1434 = vmatpush2.bf16.xpose.msra.mxu0 0
        %1435 = vmatprep.subr.bf16.mxu0 0
        %1436 = vmatpush2.bf16.xpose.msra.mxu0 0
        %1437 = vmatprep.subr.bf16.mxu0 0
        %1438 = vmatpush2.bf16.xpose.msra.mxu0 0
        %1439 = vmatprep.subr.bf16.mxu0 0
        %1440 = vmatpush2.bf16.xpose.msra.mxu0 0
        %1441 = vmatprep.subr.bf16.mxu0 0
        %1442 = vmatpush2.bf16.xpose.msra.mxu0 0
        %1443 = vmatprep.subr.bf16.mxu0 0
        %1444 = vmatpush2.bf16.xpose.msra.mxu0 0
        %1445 = vmatprep.subr.bf16.mxu0 0
        %1446 = vmatpush2.bf16.xpose.msra.mxu0 0
        %1447 = vmatprep.subr.bf16.mxu0 0
        %1448 = vmatpush2.bf16.xpose.msra.mxu0 0
        %1449 = vmatprep.mubr.bf16.mxu0 0
        %1450 = vmatmul.mubr.bf16.gmra.mxu0 %v1412
        %v1451 = vpop.f32.mrf.mxu0
        %v1452 = vadd.f32 %v858, %v1451
        %v1453 = vpop.f32.mrf.mxu0
        %v1454 = vpop.f32.mrf.mxu0
        %v1455 = vpop.f32.mrf.mxu0
        %1456 = vdwg.mxu0
        %v1457 = vsel %vm937, %v1452, -inf
        %1458 = vmax.xlane.f32.xlu0 %v1457
        %v1459 = vpop.xlane.xlu0 %1458
        %v1460 = vsub.f32 %v1452, %v1459
        %v1461 = vmul.f32 %v1460, 1.442695
        %v1462 = vpow.pop %v1461
        %v1463 = vsel %vm937, %v1462, 0.0
        %1464 = vadd.xlane.f32.xlu0 %v1463
        %v1465 = vpop.xlane.xlu0 %1464
        %v1466 = vrcp.pop %v1465
        %v1467 = vmul.f32 %v1462, %v1466
        %v1468 = vpack.c.bf16 %v1467, %v1467
        %1469 = vrot.lane.b32.xlu0 %v933, 40
        %v1470 = vpop.permute.xlu0 %1469
        %v1472 = vsel %vm937, %v1468, 0
        %v1475 = vsel %vm1001, %v1470, 0
        %1477 = vmatprep.subr.bf16.mxu0 0
        %1478 = vmatpush1.bf16.msra.mxu0 0
        %1479 = vmatprep.subr.bf16.mxu0 0
        %1480 = vmatpush1.bf16.msra.mxu0 0
        %1481 = vmatprep.subr.bf16.mxu0 0
        %1482 = vmatpush1.bf16.msra.mxu0 0
        %1483 = vmatprep.subr.bf16.mxu0 0
        %1484 = vmatpush1.bf16.msra.mxu0 0
        %1485 = vmatprep.subr.bf16.mxu0 0
        %1486 = vmatpush1.bf16.msra.mxu0 0
        %1487 = vmatprep.subr.bf16.mxu0 0
        %1488 = vmatpush1.bf16.msra.mxu0 0
        %1489 = vmatprep.subr.bf16.mxu0 0
        %1490 = vmatpush1.bf16.msra.mxu0 0
        %1491 = vmatprep.subr.bf16.mxu0 0
        %1492 = vmatpush1.bf16.msra.mxu0 %v1475
        %1493 = vmatprep.subr.bf16.mxu0 0
        %1494 = vmatpush2.bf16.msra.mxu0 0
        %1495 = vmatprep.subr.bf16.mxu0 0
        %1496 = vmatpush2.bf16.msra.mxu0 0
        %1497 = vmatprep.subr.bf16.mxu0 0
        %1498 = vmatpush2.bf16.msra.mxu0 0
        %1499 = vmatprep.subr.bf16.mxu0 0
        %1500 = vmatpush2.bf16.msra.mxu0 0
        %1501 = vmatprep.subr.bf16.mxu0 0
        %1502 = vmatpush2.bf16.msra.mxu0 0
        %1503 = vmatprep.subr.bf16.mxu0 0
        %1504 = vmatpush2.bf16.msra.mxu0 0
        %1505 = vmatprep.subr.bf16.mxu0 0
        %1506 = vmatpush2.bf16.msra.mxu0 0
        %1507 = vmatprep.subr.bf16.mxu0 0
        %1508 = vmatpush2.bf16.msra.mxu0 0
        %1509 = vmatprep.mubr.bf16.mxu0 0
        %1510 = vmatmul.mubr.bf16.gmra.mxu0 %v1472
        %v1511 = vpop.f32.mrf.mxu0
        %v1512 = vadd.f32 0.0, %v1511
        %v1513 = vpop.f32.mrf.mxu0
        %v1514 = vpop.f32.mrf.mxu0
        %v1515 = vpop.f32.mrf.mxu0
        %1516 = vdwg.mxu0
        %v1517 = vpack.c.bf16 %v1512, %v1512
        %v1519 = vsel %vm937, %v1517, 0
        %v1522 = vsel %vm1001, %v932, 0
        %1524 = vmatprep.subr.bf16.mxu0 0
        %1525 = vmatpush1.bf16.msra.mxu0 0
        %1526 = vmatprep.subr.bf16.mxu0 0
        %1527 = vmatpush1.bf16.msra.mxu0 0
        %1528 = vmatprep.subr.bf16.mxu0 0
        %1529 = vmatpush1.bf16.msra.mxu0 0
        %1530 = vmatprep.subr.bf16.mxu0 0
        %1531 = vmatpush1.bf16.msra.mxu0 0
        %1532 = vmatprep.subr.bf16.mxu0 0
        %1533 = vmatpush1.bf16.msra.mxu0 0
        %1534 = vmatprep.subr.bf16.mxu0 0
        %1535 = vmatpush1.bf16.msra.mxu0 0
        %1536 = vmatprep.subr.bf16.mxu0 0
        %1537 = vmatpush1.bf16.msra.mxu0 0
        %1538 = vmatprep.subr.bf16.mxu0 0
        %1539 = vmatpush1.bf16.msra.mxu0 %v1522
        %1540 = vmatprep.subr.bf16.mxu0 0
        %1541 = vmatpush2.bf16.msra.mxu0 0
        %1542 = vmatprep.subr.bf16.mxu0 0
        %1543 = vmatpush2.bf16.msra.mxu0 0
        %1544 = vmatprep.subr.bf16.mxu0 0
        %1545 = vmatpush2.bf16.msra.mxu0 0
        %1546 = vmatprep.subr.bf16.mxu0 0
        %1547 = vmatpush2.bf16.msra.mxu0 0
        %1548 = vmatprep.subr.bf16.mxu0 0
        %1549 = vmatpush2.bf16.msra.mxu0 0
        %1550 = vmatprep.subr.bf16.mxu0 0
        %1551 = vmatpush2.bf16.msra.mxu0 0
        %1552 = vmatprep.subr.bf16.mxu0 0
        %1553 = vmatpush2.bf16.msra.mxu0 0
        %1554 = vmatprep.subr.bf16.mxu0 0
        %1555 = vmatpush2.bf16.msra.mxu0 0
        %1556 = vmatprep.mubr.bf16.mxu0 0
        %1557 = vmatmul.mubr.bf16.gmra.mxu0 %v1519
        %v1558 = vpop.f32.mrf.mxu0
        %v1559 = vadd.f32 0.0, %v1558
        %v1560 = vpop.f32.mrf.mxu0
        %v1561 = vpop.f32.mrf.mxu0
        %v1562 = vpop.f32.mrf.mxu0
        %1563 = vdwg.mxu0
        %v1564 = vadd.f32 %v1406, %v1559
        %v1565 = vlaneseq
        %v1566 = vshrl.u32 %v1565, 7
        %v1567 = vsub.s32 1, %v1566
        %v1568 = vrot.slane %v859, %v1567
        %v1569 = vadd.f32 %v1564, %v1568
        %v1570 = vadd.f32 %v851, %v1569
        %v1571 = vsel %vm885, %v1570, 0.0
        %1572 = vadd.xlane.f32.xlu0 %v1571
        %v1573 = vpop.xlane.xlu0 %1572
        %v1574 = vrcp.pop 32.0
        %v1575 = vmul.f32 %v1573, %v1574
        %v1576 = vsub.f32 %v1570, %v1575
        %v1577 = vmul.f32 %v1576, %v1576
        %v1578 = vsel %vm885, %v1577, 0.0
        %1579 = vadd.xlane.f32.xlu0 %v1578
        %v1580 = vpop.xlane.xlu0 %1579
        %v1581 = vmul.f32 %v1580, %v1574
        %v1582 = vadd.f32 %v1581, 1e-05
        %v1583 = vrsqrt.pop %v1582
        %v1584 = vmul.f32 %v1576, %v1583
        %v1585 = vlaneseq
        %v1586 = vshrl.u32 %v1585, 7
        %v1587 = vsub.s32 0, %v1586
        %v1588 = vrot.slane %v860, %v1587
        %v1589 = vmul.f32 %v1584, %v1588
        %v1590 = vlaneseq
        %v1591 = vshrl.u32 %v1590, 7
        %v1592 = vsub.s32 1, %v1591
        %v1593 = vrot.slane %v860, %v1592
        %v1594 = vadd.f32 %v1589, %v1593
        %v1595 = vpack.c.bf16 %v1594, %v1594
        %v1596 = vld [vmem:[%s823] sm:$0xf]
        %v1597 = vld [vmem:[%s823 + $0x4] sm:$0xf]
        %v1598 = vld [vmem:[%s823 + $0x8] sm:$0xf]
        %v1599 = vld [vmem:[%s823 + $0xc] sm:$0xf]
        %v1600 = vlaneseq
        %v1601 = vshrl.u32 %v1600, 7
        %v1602 = vsub.s32 0, %v1601
        %v1603 = vrot.slane %v859, %v1602
        %v1608 = vunpack.c.l.b16 %v1596
        %v1609 = vunpack.c.l.b16 %v1597
        %v1610 = vunpack.c.l.b16 %v1598
        %v1611 = vunpack.c.l.b16 %v1599
        %v1612 = vpack.c.b16 %v1609, %v1608
        %v1613 = vpack.c.b16 %v1611, %v1610
        %v1617 = vsel %vm885, %v1595, 0
        %1619 = vmatprep.subr.bf16.mxu0 0
        %1620 = vmatpush1.bf16.msra.mxu0 0
        %1621 = vmatprep.subr.bf16.mxu0 0
        %1622 = vmatpush1.bf16.msra.mxu0 0
        %1623 = vmatprep.subr.bf16.mxu0 0
        %1624 = vmatpush1.bf16.msra.mxu0 0
        %1625 = vmatprep.subr.bf16.mxu0 0
        %1626 = vmatpush1.bf16.msra.mxu0 0
        %1627 = vmatprep.subr.bf16.mxu0 0
        %1628 = vmatpush1.bf16.msra.mxu0 0
        %1629 = vmatprep.subr.bf16.mxu0 0
        %1630 = vmatpush1.bf16.msra.mxu0 0
        %1631 = vmatprep.subr.bf16.mxu0 0
        %1632 = vmatpush1.bf16.msra.mxu0 %v1613
        %1633 = vmatprep.subr.bf16.mxu0 0
        %1634 = vmatpush1.bf16.msra.mxu0 %v1612
        %1635 = vmatprep.subr.bf16.mxu0 0
        %1636 = vmatpush2.bf16.msra.mxu0 0
        %1637 = vmatprep.subr.bf16.mxu0 0
        %1638 = vmatpush2.bf16.msra.mxu0 0
        %1639 = vmatprep.subr.bf16.mxu0 0
        %1640 = vmatpush2.bf16.msra.mxu0 0
        %1641 = vmatprep.subr.bf16.mxu0 0
        %1642 = vmatpush2.bf16.msra.mxu0 0
        %1643 = vmatprep.subr.bf16.mxu0 0
        %1644 = vmatpush2.bf16.msra.mxu0 0
        %1645 = vmatprep.subr.bf16.mxu0 0
        %1646 = vmatpush2.bf16.msra.mxu0 0
        %1647 = vmatprep.subr.bf16.mxu0 0
        %1648 = vmatpush2.bf16.msra.mxu0 0
        %1649 = vmatprep.subr.bf16.mxu0 0
        %1650 = vmatpush2.bf16.msra.mxu0 0
        %1651 = vmatprep.mubr.bf16.mxu0 0
        %1652 = vmatmul.mubr.bf16.gmra.mxu0 %v1617
        %v1653 = vpop.f32.mrf.mxu0
        %v1654 = vadd.f32 %v1603, %v1653
        %v1655 = vpop.f32.mrf.mxu0
        %v1656 = vpop.f32.mrf.mxu0
        %v1657 = vpop.f32.mrf.mxu0
        %1658 = vdwg.mxu0
        %v1659 = vld [vmem:[%s828] sm:$0xf]
        %v1660 = vld [vmem:[%s828 + $0x4] sm:$0xf]
        %v1661 = vld [vmem:[%s828 + $0x8] sm:$0xf]
        %v1662 = vld [vmem:[%s828 + $0xc] sm:$0xf]
        %v1663 = vld [vmem:[%s678] sm:$0x1]
        %v1665 = vlaneseq
        %v1666 = vshrl.u32 %v1665, 7
        %v1667 = vsub.s32 0, %v1666
        %v1668 = vrot.slane %v1663, %v1667
        %v1674 = vunpack.c.l.b16 %v1659
        %v1675 = vunpack.c.l.b16 %v1660
        %v1676 = vunpack.c.l.b16 %v1661
        %v1677 = vunpack.c.l.b16 %v1662
        %v1678 = vpack.c.b16 %v1675, %v1674
        %v1679 = vpack.c.b16 %v1677, %v1676
        %v1683 = vsel %vm885, %v852, 0
        %1685 = vmatprep.subr.bf16.mxu0 0
        %1686 = vmatpush1.bf16.msra.mxu0 0
        %1687 = vmatprep.subr.bf16.mxu0 0
        %1688 = vmatpush1.bf16.msra.mxu0 0
        %1689 = vmatprep.subr.bf16.mxu0 0
        %1690 = vmatpush1.bf16.msra.mxu0 0
        %1691 = vmatprep.subr.bf16.mxu0 0
        %1692 = vmatpush1.bf16.msra.mxu0 0
        %1693 = vmatprep.subr.bf16.mxu0 0
        %1694 = vmatpush1.bf16.msra.mxu0 0
        %1695 = vmatprep.subr.bf16.mxu0 0
        %1696 = vmatpush1.bf16.msra.mxu0 0
        %1697 = vmatprep.subr.bf16.mxu0 0
        %1698 = vmatpush1.bf16.msra.mxu0 %v1679
        %1699 = vmatprep.subr.bf16.mxu0 0
        %1700 = vmatpush1.bf16.msra.mxu0 %v1678
        %1701 = vmatprep.subr.bf16.mxu0 0
        %1702 = vmatpush2.bf16.msra.mxu0 0
        %1703 = vmatprep.subr.bf16.mxu0 0
        %1704 = vmatpush2.bf16.msra.mxu0 0
        %1705 = vmatprep.subr.bf16.mxu0 0
        %1706 = vmatpush2.bf16.msra.mxu0 0
        %1707 = vmatprep.subr.bf16.mxu0 0
        %1708 = vmatpush2.bf16.msra.mxu0 0
        %1709 = vmatprep.subr.bf16.mxu0 0
        %1710 = vmatpush2.bf16.msra.mxu0 0
        %1711 = vmatprep.subr.bf16.mxu0 0
        %1712 = vmatpush2.bf16.msra.mxu0 0
        %1713 = vmatprep.subr.bf16.mxu0 0
        %1714 = vmatpush2.bf16.msra.mxu0 0
        %1715 = vmatprep.subr.bf16.mxu0 0
        %1716 = vmatpush2.bf16.msra.mxu0 0
        %1717 = vmatprep.mubr.bf16.mxu0 0
        %1718 = vmatmul.mubr.bf16.gmra.mxu0 %v1683
        %v1719 = vpop.f32.mrf.mxu0
        %v1720 = vadd.f32 %v1668, %v1719
        %v1721 = vpop.f32.mrf.mxu0
        %v1722 = vpop.f32.mrf.mxu0
        %v1723 = vpop.f32.mrf.mxu0
        %1724 = vdwg.mxu0
        %s1725 = scalar_lea.vmem %s833, 16
        %v1726 = vld [vmem:[%s1725] sm:$0xf]
        %v1727 = vld [vmem:[%s1725 + $0x4] sm:$0xf]
        %v1728 = vld [vmem:[%s1725 + $0x8] sm:$0xf]
        %v1729 = vld [vmem:[%s1725 + $0xc] sm:$0xf]
        %v1730 = vpack.c.bf16 %v1654, %v1654
        %v1731 = vpack.c.bf16 %v1720, %v1720
        %v1733 = vsel %vm937, %v1730, 0
        %v1736 = vsel %vm937, %v1731, 0
        %1738 = vmatprep.subr.bf16.mxu0 0
        %1739 = vmatpush1.bf16.xpose.msra.mxu0 0
        %1740 = vmatprep.subr.bf16.mxu0 0
        %1741 = vmatpush1.bf16.xpose.msra.mxu0 0
        %1742 = vmatprep.subr.bf16.mxu0 0
        %1743 = vmatpush1.bf16.xpose.msra.mxu0 0
        %1744 = vmatprep.subr.bf16.mxu0 0
        %1745 = vmatpush1.bf16.xpose.msra.mxu0 0
        %1746 = vmatprep.subr.bf16.mxu0 0
        %1747 = vmatpush1.bf16.xpose.msra.mxu0 0
        %1748 = vmatprep.subr.bf16.mxu0 0
        %1749 = vmatpush1.bf16.xpose.msra.mxu0 0
        %1750 = vmatprep.subr.bf16.mxu0 0
        %1751 = vmatpush1.bf16.xpose.msra.mxu0 0
        %1752 = vmatprep.subr.bf16.mxu0 0
        %1753 = vmatpush1.bf16.xpose.msra.mxu0 %v1736
        %1754 = vmatprep.subr.bf16.mxu0 0
        %1755 = vmatpush2.bf16.xpose.msra.mxu0 0
        %1756 = vmatprep.subr.bf16.mxu0 0
        %1757 = vmatpush2.bf16.xpose.msra.mxu0 0
        %1758 = vmatprep.subr.bf16.mxu0 0
        %1759 = vmatpush2.bf16.xpose.msra.mxu0 0
        %1760 = vmatprep.subr.bf16.mxu0 0
        %1761 = vmatpush2.bf16.xpose.msra.mxu0 0
        %1762 = vmatprep.subr.bf16.mxu0 0
        %1763 = vmatpush2.bf16.xpose.msra.mxu0 0
        %1764 = vmatprep.subr.bf16.mxu0 0
        %1765 = vmatpush2.bf16.xpose.msra.mxu0 0
        %1766 = vmatprep.subr.bf16.mxu0 0
        %1767 = vmatpush2.bf16.xpose.msra.mxu0 0
        %1768 = vmatprep.subr.bf16.mxu0 0
        %1769 = vmatpush2.bf16.xpose.msra.mxu0 0
        %1770 = vmatprep.mubr.bf16.mxu0 0
        %1771 = vmatmul.mubr.bf16.gmra.mxu0 %v1733
        %v1772 = vpop.f32.mrf.mxu0
        %v1773 = vadd.f32 0.0, %v1772
        %v1774 = vpop.f32.mrf.mxu0
        %v1775 = vpop.f32.mrf.mxu0
        %v1776 = vpop.f32.mrf.mxu0
        %1777 = vdwg.mxu0
        %v1778 = vsel %vm937, %v1773, -inf
        %1779 = vmax.xlane.f32.xlu0 %v1778
        %v1780 = vpop.xlane.xlu0 %1779
        %v1781 = vsub.f32 %v1773, %v1780
        %v1782 = vmul.f32 %v1781, 1.442695
        %v1783 = vpow.pop %v1782
        %v1784 = vsel %vm937, %v1783, 0.0
        %1785 = vadd.xlane.f32.xlu0 %v1784
        %v1786 = vpop.xlane.xlu0 %1785
        %v1787 = vrcp.pop %v1786
        %v1788 = vmul.f32 %v1783, %v1787
        %v1789 = vpack.c.bf16 %v1788, %v1788
        %1791 = vrot.lane.b32.xlu0 %v1731, 96
        %v1792 = vpop.permute.xlu0 %1791
        %v1794 = vsel %vm937, %v1789, 0
        %v1797 = vsel %vm1001, %v1792, 0
        %1799 = vmatprep.subr.bf16.mxu0 0
        %1800 = vmatpush1.bf16.msra.mxu0 0
        %1801 = vmatprep.subr.bf16.mxu0 0
        %1802 = vmatpush1.bf16.msra.mxu0 0
        %1803 = vmatprep.subr.bf16.mxu0 0
        %1804 = vmatpush1.bf16.msra.mxu0 0
        %1805 = vmatprep.subr.bf16.mxu0 0
        %1806 = vmatpush1.bf16.msra.mxu0 0
        %1807 = vmatprep.subr.bf16.mxu0 0
        %1808 = vmatpush1.bf16.msra.mxu0 0
        %1809 = vmatprep.subr.bf16.mxu0 0
        %1810 = vmatpush1.bf16.msra.mxu0 0
        %1811 = vmatprep.subr.bf16.mxu0 0
        %1812 = vmatpush1.bf16.msra.mxu0 0
        %1813 = vmatprep.subr.bf16.mxu0 0
        %1814 = vmatpush1.bf16.msra.mxu0 %v1797
        %1815 = vmatprep.subr.bf16.mxu0 0
        %1816 = vmatpush2.bf16.msra.mxu0 0
        %1817 = vmatprep.subr.bf16.mxu0 0
        %1818 = vmatpush2.bf16.msra.mxu0 0
        %1819 = vmatprep.subr.bf16.mxu0 0
        %1820 = vmatpush2.bf16.msra.mxu0 0
        %1821 = vmatprep.subr.bf16.mxu0 0
        %1822 = vmatpush2.bf16.msra.mxu0 0
        %1823 = vmatprep.subr.bf16.mxu0 0
        %1824 = vmatpush2.bf16.msra.mxu0 0
        %1825 = vmatprep.subr.bf16.mxu0 0
        %1826 = vmatpush2.bf16.msra.mxu0 0
        %1827 = vmatprep.subr.bf16.mxu0 0
        %1828 = vmatpush2.bf16.msra.mxu0 0
        %1829 = vmatprep.subr.bf16.mxu0 0
        %1830 = vmatpush2.bf16.msra.mxu0 0
        %1831 = vmatprep.mubr.bf16.mxu0 0
        %1832 = vmatmul.mubr.bf16.gmra.mxu0 %v1794
        %v1833 = vpop.f32.mrf.mxu0
        %v1834 = vadd.f32 0.0, %v1833
        %v1835 = vpop.f32.mrf.mxu0
        %v1836 = vpop.f32.mrf.mxu0
        %v1837 = vpop.f32.mrf.mxu0
        %1838 = vdwg.mxu0
        %v1839 = vpack.c.bf16 %v1834, %v1834
        %1841 = vrot.lane.b32.xlu0 %v1730, 120
        %v1842 = vpop.permute.xlu0 %1841
        %1843 = vrot.lane.b32.xlu0 %v1731, 120
        %v1844 = vpop.permute.xlu0 %1843
        %v1846 = vsel %vm937, %v1842, 0
        %v1849 = vsel %vm937, %v1844, 0
        %1851 = vmatprep.subr.bf16.mxu0 0
        %1852 = vmatpush1.bf16.xpose.msra.mxu0 0
        %1853 = vmatprep.subr.bf16.mxu0 0
        %1854 = vmatpush1.bf16.xpose.msra.mxu0 0
        %1855 = vmatprep.subr.bf16.mxu0 0
        %1856 = vmatpush1.bf16.xpose.msra.mxu0 0
        %1857 = vmatprep.subr.bf16.mxu0 0
        %1858 = vmatpush1.bf16.xpose.msra.mxu0 0
        %1859 = vmatprep.subr.bf16.mxu0 0
        %1860 = vmatpush1.bf16.xpose.msra.mxu0 0
        %1861 = vmatprep.subr.bf16.mxu0 0
        %1862 = vmatpush1.bf16.xpose.msra.mxu0 0
        %1863 = vmatprep.subr.bf16.mxu0 0
        %1864 = vmatpush1.bf16.xpose.msra.mxu0 0
        %1865 = vmatprep.subr.bf16.mxu0 0
        %1866 = vmatpush1.bf16.xpose.msra.mxu0 %v1849
        %1867 = vmatprep.subr.bf16.mxu0 0
        %1868 = vmatpush2.bf16.xpose.msra.mxu0 0
        %1869 = vmatprep.subr.bf16.mxu0 0
        %1870 = vmatpush2.bf16.xpose.msra.mxu0 0
        %1871 = vmatprep.subr.bf16.mxu0 0
        %1872 = vmatpush2.bf16.xpose.msra.mxu0 0
        %1873 = vmatprep.subr.bf16.mxu0 0
        %1874 = vmatpush2.bf16.xpose.msra.mxu0 0
        %1875 = vmatprep.subr.bf16.mxu0 0
        %1876 = vmatpush2.bf16.xpose.msra.mxu0 0
        %1877 = vmatprep.subr.bf16.mxu0 0
        %1878 = vmatpush2.bf16.xpose.msra.mxu0 0
        %1879 = vmatprep.subr.bf16.mxu0 0
        %1880 = vmatpush2.bf16.xpose.msra.mxu0 0
        %1881 = vmatprep.subr.bf16.mxu0 0
        %1882 = vmatpush2.bf16.xpose.msra.mxu0 0
        %1883 = vmatprep.mubr.bf16.mxu0 0
        %1884 = vmatmul.mubr.bf16.gmra.mxu0 %v1846
        %v1885 = vpop.f32.mrf.mxu0
        %v1886 = vadd.f32 0.0, %v1885
        %v1887 = vpop.f32.mrf.mxu0
        %v1888 = vpop.f32.mrf.mxu0
        %v1889 = vpop.f32.mrf.mxu0
        %1890 = vdwg.mxu0
        %v1891 = vsel %vm937, %v1886, -inf
        %1892 = vmax.xlane.f32.xlu0 %v1891
        %v1893 = vpop.xlane.xlu0 %1892
        %v1894 = vsub.f32 %v1886, %v1893
        %v1895 = vmul.f32 %v1894, 1.442695
        %v1896 = vpow.pop %v1895
        %v1897 = vsel %vm937, %v1896, 0.0
        %1898 = vadd.xlane.f32.xlu0 %v1897
        %v1899 = vpop.xlane.xlu0 %1898
        %v1900 = vrcp.pop %v1899
        %v1901 = vmul.f32 %v1896, %v1900
        %v1902 = vpack.c.bf16 %v1901, %v1901
        %1903 = vrot.lane.b32.xlu0 %v1731, 88
        %v1904 = vpop.permute.xlu0 %1903
        %v1906 = vsel %vm937, %v1902, 0
        %v1909 = vsel %vm1001, %v1904, 0
        %1911 = vmatprep.subr.bf16.mxu0 0
        %1912 = vmatpush1.bf16.msra.mxu0 0
        %1913 = vmatprep.subr.bf16.mxu0 0
        %1914 = vmatpush1.bf16.msra.mxu0 0
        %1915 = vmatprep.subr.bf16.mxu0 0
        %1916 = vmatpush1.bf16.msra.mxu0 0
        %1917 = vmatprep.subr.bf16.mxu0 0
        %1918 = vmatpush1.bf16.msra.mxu0 0
        %1919 = vmatprep.subr.bf16.mxu0 0
        %1920 = vmatpush1.bf16.msra.mxu0 0
        %1921 = vmatprep.subr.bf16.mxu0 0
        %1922 = vmatpush1.bf16.msra.mxu0 0
        %1923 = vmatprep.subr.bf16.mxu0 0
        %1924 = vmatpush1.bf16.msra.mxu0 0
        %1925 = vmatprep.subr.bf16.mxu0 0
        %1926 = vmatpush1.bf16.msra.mxu0 %v1909
        %1927 = vmatprep.subr.bf16.mxu0 0
        %1928 = vmatpush2.bf16.msra.mxu0 0
        %1929 = vmatprep.subr.bf16.mxu0 0
        %1930 = vmatpush2.bf16.msra.mxu0 0
        %1931 = vmatprep.subr.bf16.mxu0 0
        %1932 = vmatpush2.bf16.msra.mxu0 0
        %1933 = vmatprep.subr.bf16.mxu0 0
        %1934 = vmatpush2.bf16.msra.mxu0 0
        %1935 = vmatprep.subr.bf16.mxu0 0
        %1936 = vmatpush2.bf16.msra.mxu0 0
        %1937 = vmatprep.subr.bf16.mxu0 0
        %1938 = vmatpush2.bf16.msra.mxu0 0
        %1939 = vmatprep.subr.bf16.mxu0 0
        %1940 = vmatpush2.bf16.msra.mxu0 0
        %1941 = vmatprep.subr.bf16.mxu0 0
        %1942 = vmatpush2.bf16.msra.mxu0 0
        %1943 = vmatprep.mubr.bf16.mxu0 0
        %1944 = vmatmul.mubr.bf16.gmra.mxu0 %v1906
        %v1945 = vpop.f32.mrf.mxu0
        %v1946 = vadd.f32 0.0, %v1945
        %v1947 = vpop.f32.mrf.mxu0
        %v1948 = vpop.f32.mrf.mxu0
        %v1949 = vpop.f32.mrf.mxu0
        %1950 = vdwg.mxu0
        %v1951 = vpack.c.bf16 %v1946, %v1946
        %v1953 = vsel %vm937, %v1951, 0
        %v1956 = vsel %vm1001, %v1727, 0
        %1958 = vmatprep.subr.bf16.mxu0 0
        %1959 = vmatpush1.bf16.msra.mxu0 0
        %1960 = vmatprep.subr.bf16.mxu0 0
        %1961 = vmatpush1.bf16.msra.mxu0 0
        %1962 = vmatprep.subr.bf16.mxu0 0
        %1963 = vmatpush1.bf16.msra.mxu0 0
        %1964 = vmatprep.subr.bf16.mxu0 0
        %1965 = vmatpush1.bf16.msra.mxu0 0
        %1966 = vmatprep.subr.bf16.mxu0 0
        %1967 = vmatpush1.bf16.msra.mxu0 0
        %1968 = vmatprep.subr.bf16.mxu0 0
        %1969 = vmatpush1.bf16.msra.mxu0 0
        %1970 = vmatprep.subr.bf16.mxu0 0
        %1971 = vmatpush1.bf16.msra.mxu0 0
        %1972 = vmatprep.subr.bf16.mxu0 0
        %1973 = vmatpush1.bf16.msra.mxu0 %v1956
        %1974 = vmatprep.subr.bf16.mxu0 0
        %1975 = vmatpush2.bf16.msra.mxu0 0
        %1976 = vmatprep.subr.bf16.mxu0 0
        %1977 = vmatpush2.bf16.msra.mxu0 0
        %1978 = vmatprep.subr.bf16.mxu0 0
        %1979 = vmatpush2.bf16.msra.mxu0 0
        %1980 = vmatprep.subr.bf16.mxu0 0
        %1981 = vmatpush2.bf16.msra.mxu0 0
        %1982 = vmatprep.subr.bf16.mxu0 0
        %1983 = vmatpush2.bf16.msra.mxu0 0
        %1984 = vmatprep.subr.bf16.mxu0 0
        %1985 = vmatpush2.bf16.msra.mxu0 0
        %1986 = vmatprep.subr.bf16.mxu0 0
        %1987 = vmatpush2.bf16.msra.mxu0 0
        %1988 = vmatprep.subr.bf16.mxu0 0
        %1989 = vmatpush2.bf16.msra.mxu0 0
        %1990 = vmatprep.mubr.bf16.mxu0 0
        %1991 = vmatmul.mubr.bf16.gmra.mxu0 %v1953
        %v1992 = vpop.f32.mrf.mxu0
        %v1993 = vadd.f32 0.0, %v1992
        %v1994 = vpop.f32.mrf.mxu0
        %v1995 = vpop.f32.mrf.mxu0
        %v1996 = vpop.f32.mrf.mxu0
        %1997 = vdwg.mxu0
        %v1999 = vsel %vm937, %v1839, 0
        %v2002 = vsel %vm1001, %v1726, 0
        %2004 = vmatprep.subr.bf16.mxu0 0
        %2005 = vmatpush1.bf16.msra.mxu0 0
        %2006 = vmatprep.subr.bf16.mxu0 0
        %2007 = vmatpush1.bf16.msra.mxu0 0
        %2008 = vmatprep.subr.bf16.mxu0 0
        %2009 = vmatpush1.bf16.msra.mxu0 0
        %2010 = vmatprep.subr.bf16.mxu0 0
        %2011 = vmatpush1.bf16.msra.mxu0 0
        %2012 = vmatprep.subr.bf16.mxu0 0
        %2013 = vmatpush1.bf16.msra.mxu0 0
        %2014 = vmatprep.subr.bf16.mxu0 0
        %2015 = vmatpush1.bf16.msra.mxu0 0
        %2016 = vmatprep.subr.bf16.mxu0 0
        %2017 = vmatpush1.bf16.msra.mxu0 0
        %2018 = vmatprep.subr.bf16.mxu0 0
        %2019 = vmatpush1.bf16.msra.mxu0 %v2002
        %2020 = vmatprep.subr.bf16.mxu0 0
        %2021 = vmatpush2.bf16.msra.mxu0 0
        %2022 = vmatprep.subr.bf16.mxu0 0
        %2023 = vmatpush2.bf16.msra.mxu0 0
        %2024 = vmatprep.subr.bf16.mxu0 0
        %2025 = vmatpush2.bf16.msra.mxu0 0
        %2026 = vmatprep.subr.bf16.mxu0 0
        %2027 = vmatpush2.bf16.msra.mxu0 0
        %2028 = vmatprep.subr.bf16.mxu0 0
        %2029 = vmatpush2.bf16.msra.mxu0 0
        %2030 = vmatprep.subr.bf16.mxu0 0
        %2031 = vmatpush2.bf16.msra.mxu0 0
        %2032 = vmatprep.subr.bf16.mxu0 0
        %2033 = vmatpush2.bf16.msra.mxu0 0
        %2034 = vmatprep.subr.bf16.mxu0 0
        %2035 = vmatpush2.bf16.msra.mxu0 0
        %2036 = vmatprep.mubr.bf16.mxu0 0
        %2037 = vmatmul.mubr.bf16.gmra.mxu0 %v1999
        %v2038 = vpop.f32.mrf.mxu0
        %v2039 = vadd.f32 %v1993, %v2038
        %v2040 = vpop.f32.mrf.mxu0
        %v2041 = vpop.f32.mrf.mxu0
        %v2042 = vpop.f32.mrf.mxu0
        %2043 = vdwg.mxu0
        %2044 = vrot.lane.b32.xlu0 %v1730, 112
        %v2045 = vpop.permute.xlu0 %2044
        %2046 = vrot.lane.b32.xlu0 %v1731, 112
        %v2047 = vpop.permute.xlu0 %2046
        %v2049 = vsel %vm937, %v2045, 0
        %v2052 = vsel %vm937, %v2047, 0
        %2054 = vmatprep.subr.bf16.mxu0 0
        %2055 = vmatpush1.bf16.xpose.msra.mxu0 0
        %2056 = vmatprep.subr.bf16.mxu0 0
        %2057 = vmatpush1.bf16.xpose.msra.mxu0 0
        %2058 = vmatprep.subr.bf16.mxu0 0
        %2059 = vmatpush1.bf16.xpose.msra.mxu0 0
        %2060 = vmatprep.subr.bf16.mxu0 0
        %2061 = vmatpush1.bf16.xpose.msra.mxu0 0
        %2062 = vmatprep.subr.bf16.mxu0 0
        %2063 = vmatpush1.bf16.xpose.msra.mxu0 0
        %2064 = vmatprep.subr.bf16.mxu0 0
        %2065 = vmatpush1.bf16.xpose.msra.mxu0 0
        %2066 = vmatprep.subr.bf16.mxu0 0
        %2067 = vmatpush1.bf16.xpose.msra.mxu0 0
        %2068 = vmatprep.subr.bf16.mxu0 0
        %2069 = vmatpush1.bf16.xpose.msra.mxu0 %v2052
        %2070 = vmatprep.subr.bf16.mxu0 0
        %2071 = vmatpush2.bf16.xpose.msra.mxu0 0
        %2072 = vmatprep.subr.bf16.mxu0 0
        %2073 = vmatpush2.bf16.xpose.msra.mxu0 0
        %2074 = vmatprep.subr.bf16.mxu0 0
        %2075 = vmatpush2.bf16.xpose.msra.mxu0 0
        %2076 = vmatprep.subr.bf16.mxu0 0
        %2077 = vmatpush2.bf16.xpose.msra.mxu0 0
        %2078 = vmatprep.subr.bf16.mxu0 0
        %2079 = vmatpush2.bf16.xpose.msra.mxu0 0
        %2080 = vmatprep.subr.bf16.mxu0 0
        %2081 = vmatpush2.bf16.xpose.msra.mxu0 0
        %2082 = vmatprep.subr.bf16.mxu0 0
        %2083 = vmatpush2.bf16.xpose.msra.mxu0 0
        %2084 = vmatprep.subr.bf16.mxu0 0
        %2085 = vmatpush2.bf16.xpose.msra.mxu0 0
        %2086 = vmatprep.mubr.bf16.mxu0 0
        %2087 = vmatmul.mubr.bf16.gmra.mxu0 %v2049
        %v2088 = vpop.f32.mrf.mxu0
        %v2089 = vadd.f32 0.0, %v2088
        %v2090 = vpop.f32.mrf.mxu0
        %v2091 = vpop.f32.mrf.mxu0
        %v2092 = vpop.f32.mrf.mxu0
        %2093 = vdwg.mxu0
        %v2094 = vsel %vm937, %v2089, -inf
        %2095 = vmax.xlane.f32.xlu0 %v2094
        %v2096 = vpop.xlane.xlu0 %2095
        %v2097 = vsub.f32 %v2089, %v2096
        %v2098 = vmul.f32 %v2097, 1.442695
        %v2099 = vpow.pop %v2098
        %v2100 = vsel %vm937, %v2099, 0.0
        %2101 = vadd.xlane.f32.xlu0 %v2100
        %v2102 = vpop.xlane.xlu0 %2101
        %v2103 = vrcp.pop %v2102
        %v2104 = vmul.f32 %v2099, %v2103
        %v2105 = vpack.c.bf16 %v2104, %v2104
        %2106 = vrot.lane.b32.xlu0 %v1731, 80
        %v2107 = vpop.permute.xlu0 %2106
        %v2109 = vsel %vm937, %v2105, 0
        %v2112 = vsel %vm1001, %v2107, 0
        %2114 = vmatprep.subr.bf16.mxu0 0
        %2115 = vmatpush1.bf16.msra.mxu0 0
        %2116 = vmatprep.subr.bf16.mxu0 0
        %2117 = vmatpush1.bf16.msra.mxu0 0
        %2118 = vmatprep.subr.bf16.mxu0 0
        %2119 = vmatpush1.bf16.msra.mxu0 0
        %2120 = vmatprep.subr.bf16.mxu0 0
        %2121 = vmatpush1.bf16.msra.mxu0 0
        %2122 = vmatprep.subr.bf16.mxu0 0
        %2123 = vmatpush1.bf16.msra.mxu0 0
        %2124 = vmatprep.subr.bf16.mxu0 0
        %2125 = vmatpush1.bf16.msra.mxu0 0
        %2126 = vmatprep.subr.bf16.mxu0 0
        %2127 = vmatpush1.bf16.msra.mxu0 0
        %2128 = vmatprep.subr.bf16.mxu0 0
        %2129 = vmatpush1.bf16.msra.mxu0 %v2112
        %2130 = vmatprep.subr.bf16.mxu0 0
        %2131 = vmatpush2.bf16.msra.mxu0 0
        %2132 = vmatprep.subr.bf16.mxu0 0
        %2133 = vmatpush2.bf16.msra.mxu0 0
        %2134 = vmatprep.subr.bf16.mxu0 0
        %2135 = vmatpush2.bf16.msra.mxu0 0
        %2136 = vmatprep.subr.bf16.mxu0 0
        %2137 = vmatpush2.bf16.msra.mxu0 0
        %2138 = vmatprep.subr.bf16.mxu0 0
        %2139 = vmatpush2.bf16.msra.mxu0 0
        %2140 = vmatprep.subr.bf16.mxu0 0
        %2141 = vmatpush2.bf16.msra.mxu0 0
        %2142 = vmatprep.subr.bf16.mxu0 0
        %2143 = vmatpush2.bf16.msra.mxu0 0
        %2144 = vmatprep.subr.bf16.mxu0 0
        %2145 = vmatpush2.bf16.msra.mxu0 0
        %2146 = vmatprep.mubr.bf16.mxu0 0
        %2147 = vmatmul.mubr.bf16.gmra.mxu0 %v2109
        %v2148 = vpop.f32.mrf.mxu0
        %v2149 = vadd.f32 0.0, %v2148
        %v2150 = vpop.f32.mrf.mxu0
        %v2151 = vpop.f32.mrf.mxu0
        %v2152 = vpop.f32.mrf.mxu0
        %2153 = vdwg.mxu0
        %v2154 = vpack.c.bf16 %v2149, %v2149
        %v2156 = vsel %vm937, %v2154, 0
        %v2159 = vsel %vm1001, %v1728, 0
        %2161 = vmatprep.subr.bf16.mxu0 0
        %2162 = vmatpush1.bf16.msra.mxu0 0
        %2163 = vmatprep.subr.bf16.mxu0 0
        %2164 = vmatpush1.bf16.msra.mxu0 0
        %2165 = vmatprep.subr.bf16.mxu0 0
        %2166 = vmatpush1.bf16.msra.mxu0 0
        %2167 = vmatprep.subr.bf16.mxu0 0
        %2168 = vmatpush1.bf16.msra.mxu0 0
        %2169 = vmatprep.subr.bf16.mxu0 0
        %2170 = vmatpush1.bf16.msra.mxu0 0
        %2171 = vmatprep.subr.bf16.mxu0 0
        %2172 = vmatpush1.bf16.msra.mxu0 0
        %2173 = vmatprep.subr.bf16.mxu0 0
        %2174 = vmatpush1.bf16.msra.mxu0 0
        %2175 = vmatprep.subr.bf16.mxu0 0
        %2176 = vmatpush1.bf16.msra.mxu0 %v2159
        %2177 = vmatprep.subr.bf16.mxu0 0
        %2178 = vmatpush2.bf16.msra.mxu0 0
        %2179 = vmatprep.subr.bf16.mxu0 0
        %2180 = vmatpush2.bf16.msra.mxu0 0
        %2181 = vmatprep.subr.bf16.mxu0 0
        %2182 = vmatpush2.bf16.msra.mxu0 0
        %2183 = vmatprep.subr.bf16.mxu0 0
        %2184 = vmatpush2.bf16.msra.mxu0 0
        %2185 = vmatprep.subr.bf16.mxu0 0
        %2186 = vmatpush2.bf16.msra.mxu0 0
        %2187 = vmatprep.subr.bf16.mxu0 0
        %2188 = vmatpush2.bf16.msra.mxu0 0
        %2189 = vmatprep.subr.bf16.mxu0 0
        %2190 = vmatpush2.bf16.msra.mxu0 0
        %2191 = vmatprep.subr.bf16.mxu0 0
        %2192 = vmatpush2.bf16.msra.mxu0 0
        %2193 = vmatprep.mubr.bf16.mxu0 0
        %2194 = vmatmul.mubr.bf16.gmra.mxu0 %v2156
        %v2195 = vpop.f32.mrf.mxu0
        %v2196 = vadd.f32 0.0, %v2195
        %v2197 = vpop.f32.mrf.mxu0
        %v2198 = vpop.f32.mrf.mxu0
        %v2199 = vpop.f32.mrf.mxu0
        %2200 = vdwg.mxu0
        %v2201 = vadd.f32 %v2039, %v2196
        %2202 = vrot.lane.b32.xlu0 %v1730, 104
        %v2203 = vpop.permute.xlu0 %2202
        %2204 = vrot.lane.b32.xlu0 %v1731, 104
        %v2205 = vpop.permute.xlu0 %2204
        %v2207 = vsel %vm937, %v2203, 0
        %v2210 = vsel %vm937, %v2205, 0
        %2212 = vmatprep.subr.bf16.mxu0 0
        %2213 = vmatpush1.bf16.xpose.msra.mxu0 0
        %2214 = vmatprep.subr.bf16.mxu0 0
        %2215 = vmatpush1.bf16.xpose.msra.mxu0 0
        %2216 = vmatprep.subr.bf16.mxu0 0
        %2217 = vmatpush1.bf16.xpose.msra.mxu0 0
        %2218 = vmatprep.subr.bf16.mxu0 0
        %2219 = vmatpush1.bf16.xpose.msra.mxu0 0
        %2220 = vmatprep.subr.bf16.mxu0 0
        %2221 = vmatpush1.bf16.xpose.msra.mxu0 0
        %2222 = vmatprep.subr.bf16.mxu0 0
        %2223 = vmatpush1.bf16.xpose.msra.mxu0 0
        %2224 = vmatprep.subr.bf16.mxu0 0
        %2225 = vmatpush1.bf16.xpose.msra.mxu0 0
        %2226 = vmatprep.subr.bf16.mxu0 0
        %2227 = vmatpush1.bf16.xpose.msra.mxu0 %v2210
        %2228 = vmatprep.subr.bf16.mxu0 0
        %2229 = vmatpush2.bf16.xpose.msra.mxu0 0
        %2230 = vmatprep.subr.bf16.mxu0 0
        %2231 = vmatpush2.bf16.xpose.msra.mxu0 0
        %2232 = vmatprep.subr.bf16.mxu0 0
        %2233 = vmatpush2.bf16.xpose.msra.mxu0 0
        %2234 = vmatprep.subr.bf16.mxu0 0
        %2235 = vmatpush2.bf16.xpose.msra.mxu0 0
        %2236 = vmatprep.subr.bf16.mxu0 0
        %2237 = vmatpush2.bf16.xpose.msra.mxu0 0
        %2238 = vmatprep.subr.bf16.mxu0 0
        %2239 = vmatpush2.bf16.xpose.msra.mxu0 0
        %2240 = vmatprep.subr.bf16.mxu0 0
        %2241 = vmatpush2.bf16.xpose.msra.mxu0 0
        %2242 = vmatprep.subr.bf16.mxu0 0
        %2243 = vmatpush2.bf16.xpose.msra.mxu0 0
        %2244 = vmatprep.mubr.bf16.mxu0 0
        %2245 = vmatmul.mubr.bf16.gmra.mxu0 %v2207
        %v2246 = vpop.f32.mrf.mxu0
        %v2247 = vadd.f32 0.0, %v2246
        %v2248 = vpop.f32.mrf.mxu0
        %v2249 = vpop.f32.mrf.mxu0
        %v2250 = vpop.f32.mrf.mxu0
        %2251 = vdwg.mxu0
        %v2252 = vsel %vm937, %v2247, -inf
        %2253 = vmax.xlane.f32.xlu0 %v2252
        %v2254 = vpop.xlane.xlu0 %2253
        %v2255 = vsub.f32 %v2247, %v2254
        %v2256 = vmul.f32 %v2255, 1.442695
        %v2257 = vpow.pop %v2256
        %v2258 = vsel %vm937, %v2257, 0.0
        %2259 = vadd.xlane.f32.xlu0 %v2258
        %v2260 = vpop.xlane.xlu0 %2259
        %v2261 = vrcp.pop %v2260
        %v2262 = vmul.f32 %v2257, %v2261
        %v2263 = vpack.c.bf16 %v2262, %v2262
        %2264 = vrot.lane.b32.xlu0 %v1731, 72
        %v2265 = vpop.permute.xlu0 %2264
        %v2267 = vsel %vm937, %v2263, 0
        %v2270 = vsel %vm1001, %v2265, 0
        %2272 = vmatprep.subr.bf16.mxu0 0
        %2273 = vmatpush1.bf16.msra.mxu0 0
        %2274 = vmatprep.subr.bf16.mxu0 0
        %2275 = vmatpush1.bf16.msra.mxu0 0
        %2276 = vmatprep.subr.bf16.mxu0 0
        %2277 = vmatpush1.bf16.msra.mxu0 0
        %2278 = vmatprep.subr.bf16.mxu0 0
        %2279 = vmatpush1.bf16.msra.mxu0 0
        %2280 = vmatprep.subr.bf16.mxu0 0
        %2281 = vmatpush1.bf16.msra.mxu0 0
        %2282 = vmatprep.subr.bf16.mxu0 0
        %2283 = vmatpush1.bf16.msra.mxu0 0
        %2284 = vmatprep.subr.bf16.mxu0 0
        %2285 = vmatpush1.bf16.msra.mxu0 0
        %2286 = vmatprep.subr.bf16.mxu0 0
        %2287 = vmatpush1.bf16.msra.mxu0 %v2270
        %2288 = vmatprep.subr.bf16.mxu0 0
        %2289 = vmatpush2.bf16.msra.mxu0 0
        %2290 = vmatprep.subr.bf16.mxu0 0
        %2291 = vmatpush2.bf16.msra.mxu0 0
        %2292 = vmatprep.subr.bf16.mxu0 0
        %2293 = vmatpush2.bf16.msra.mxu0 0
        %2294 = vmatprep.subr.bf16.mxu0 0
        %2295 = vmatpush2.bf16.msra.mxu0 0
        %2296 = vmatprep.subr.bf16.mxu0 0
        %2297 = vmatpush2.bf16.msra.mxu0 0
        %2298 = vmatprep.subr.bf16.mxu0 0
        %2299 = vmatpush2.bf16.msra.mxu0 0
        %2300 = vmatprep.subr.bf16.mxu0 0
        %2301 = vmatpush2.bf16.msra.mxu0 0
        %2302 = vmatprep.subr.bf16.mxu0 0
        %2303 = vmatpush2.bf16.msra.mxu0 0
        %2304 = vmatprep.mubr.bf16.mxu0 0
        %2305 = vmatmul.mubr.bf16.gmra.mxu0 %v2267
        %v2306 = vpop.f32.mrf.mxu0
        %v2307 = vadd.f32 0.0, %v2306
        %v2308 = vpop.f32.mrf.mxu0
        %v2309 = vpop.f32.mrf.mxu0
        %v2310 = vpop.f32.mrf.mxu0
        %2311 = vdwg.mxu0
        %v2312 = vpack.c.bf16 %v2307, %v2307
        %v2314 = vsel %vm937, %v2312, 0
        %v2317 = vsel %vm1001, %v1729, 0
        %2319 = vmatprep.subr.bf16.mxu0 0
        %2320 = vmatpush1.bf16.msra.mxu0 0
        %2321 = vmatprep.subr.bf16.mxu0 0
        %2322 = vmatpush1.bf16.msra.mxu0 0
        %2323 = vmatprep.subr.bf16.mxu0 0
        %2324 = vmatpush1.bf16.msra.mxu0 0
        %2325 = vmatprep.subr.bf16.mxu0 0
        %2326 = vmatpush1.bf16.msra.mxu0 0
        %2327 = vmatprep.subr.bf16.mxu0 0
        %2328 = vmatpush1.bf16.msra.mxu0 0
        %2329 = vmatprep.subr.bf16.mxu0 0
        %2330 = vmatpush1.bf16.msra.mxu0 0
        %2331 = vmatprep.subr.bf16.mxu0 0
        %2332 = vmatpush1.bf16.msra.mxu0 0
        %2333 = vmatprep.subr.bf16.mxu0 0
        %2334 = vmatpush1.bf16.msra.mxu0 %v2317
        %2335 = vmatprep.subr.bf16.mxu0 0
        %2336 = vmatpush2.bf16.msra.mxu0 0
        %2337 = vmatprep.subr.bf16.mxu0 0
        %2338 = vmatpush2.bf16.msra.mxu0 0
        %2339 = vmatprep.subr.bf16.mxu0 0
        %2340 = vmatpush2.bf16.msra.mxu0 0
        %2341 = vmatprep.subr.bf16.mxu0 0
        %2342 = vmatpush2.bf16.msra.mxu0 0
        %2343 = vmatprep.subr.bf16.mxu0 0
        %2344 = vmatpush2.bf16.msra.mxu0 0
        %2345 = vmatprep.subr.bf16.mxu0 0
        %2346 = vmatpush2.bf16.msra.mxu0 0
        %2347 = vmatprep.subr.bf16.mxu0 0
        %2348 = vmatpush2.bf16.msra.mxu0 0
        %2349 = vmatprep.subr.bf16.mxu0 0
        %2350 = vmatpush2.bf16.msra.mxu0 0
        %2351 = vmatprep.mubr.bf16.mxu0 0
        %2352 = vmatmul.mubr.bf16.gmra.mxu0 %v2314
        %v2353 = vpop.f32.mrf.mxu0
        %v2354 = vadd.f32 0.0, %v2353
        %v2355 = vpop.f32.mrf.mxu0
        %v2356 = vpop.f32.mrf.mxu0
        %v2357 = vpop.f32.mrf.mxu0
        %2358 = vdwg.mxu0
        %v2359 = vadd.f32 %v2201, %v2354
        %v2360 = vlaneseq
        %v2361 = vshrl.u32 %v2360, 7
        %v2362 = vsub.s32 2, %v2361
        %v2363 = vrot.slane %v859, %v2362
        %v2364 = vadd.f32 %v2359, %v2363
        %v2365 = vadd.f32 %v1594, %v2364
        %v2366 = vsel %vm885, %v2365, 0.0
        %2367 = vadd.xlane.f32.xlu0 %v2366
        %v2368 = vpop.xlane.xlu0 %2367
        %v2369 = vmul.f32 %v2368, %v1574
        %v2370 = vsub.f32 %v2365, %v2369
        %v2371 = vmul.f32 %v2370, %v2370
        %v2372 = vsel %vm885, %v2371, 0.0
        %2373 = vadd.xlane.f32.xlu0 %v2372
        %v2374 = vpop.xlane.xlu0 %2373
        %v2375 = vmul.f32 %v2374, %v1574
        %v2376 = vadd.f32 %v2375, 1e-05
        %v2377 = vrsqrt.pop %v2376
        %v2378 = vmul.f32 %v2370, %v2377
        %v2379 = vlaneseq
        %v2380 = vshrl.u32 %v2379, 7
        %v2381 = vsub.s32 2, %v2380
        %v2382 = vrot.slane %v860, %v2381
        %v2383 = vmul.f32 %v2378, %v2382
        %v2384 = vlaneseq
        %v2385 = vshrl.u32 %v2384, 7
        %v2386 = vsub.s32 3, %v2385
        %v2387 = vrot.slane %v860, %v2386
        %v2388 = vadd.f32 %v2383, %v2387
        %v2389 = vpack.c.bf16 %v2388, %v2388
        %v2390 = vld [vmem:[%s696] sm:$0xf]
        %v2391 = vld [vmem:[%s696 + $0x4] sm:$0xf]
        %v2392 = vld [vmem:[%s696 + $0x8] sm:$0xf]
        %v2393 = vld [vmem:[%s696 + $0xc] sm:$0xf]
        %v2394 = vld [vmem:[%s704] sm:$0x1]
        %v2396 = vlaneseq
        %v2397 = vshrl.u32 %v2396, 7
        %v2398 = vsub.s32 0, %v2397
        %v2399 = vrot.slane %v2394, %v2398
        %v2405 = vunpack.c.l.b16 %v2390
        %v2406 = vunpack.c.l.b16 %v2391
        %v2407 = vunpack.c.l.b16 %v2392
        %v2408 = vunpack.c.l.b16 %v2393
        %v2409 = vpack.c.b16 %v2406, %v2405
        %v2410 = vpack.c.b16 %v2408, %v2407
        %v2414 = vsel %vm885, %v2389, 0
        %2416 = vmatprep.subr.bf16.mxu0 0
        %2417 = vmatpush1.bf16.msra.mxu0 0
        %2418 = vmatprep.subr.bf16.mxu0 0
        %2419 = vmatpush1.bf16.msra.mxu0 0
        %2420 = vmatprep.subr.bf16.mxu0 0
        %2421 = vmatpush1.bf16.msra.mxu0 0
        %2422 = vmatprep.subr.bf16.mxu0 0
        %2423 = vmatpush1.bf16.msra.mxu0 0
        %2424 = vmatprep.subr.bf16.mxu0 0
        %2425 = vmatpush1.bf16.msra.mxu0 0
        %2426 = vmatprep.subr.bf16.mxu0 0
        %2427 = vmatpush1.bf16.msra.mxu0 0
        %2428 = vmatprep.subr.bf16.mxu0 0
        %2429 = vmatpush1.bf16.msra.mxu0 %v2410
        %2430 = vmatprep.subr.bf16.mxu0 0
        %2431 = vmatpush1.bf16.msra.mxu0 %v2409
        %2432 = vmatprep.subr.bf16.mxu0 0
        %2433 = vmatpush2.bf16.msra.mxu0 0
        %2434 = vmatprep.subr.bf16.mxu0 0
        %2435 = vmatpush2.bf16.msra.mxu0 0
        %2436 = vmatprep.subr.bf16.mxu0 0
        %2437 = vmatpush2.bf16.msra.mxu0 0
        %2438 = vmatprep.subr.bf16.mxu0 0
        %2439 = vmatpush2.bf16.msra.mxu0 0
        %2440 = vmatprep.subr.bf16.mxu0 0
        %2441 = vmatpush2.bf16.msra.mxu0 0
        %2442 = vmatprep.subr.bf16.mxu0 0
        %2443 = vmatpush2.bf16.msra.mxu0 0
        %2444 = vmatprep.subr.bf16.mxu0 0
        %2445 = vmatpush2.bf16.msra.mxu0 0
        %2446 = vmatprep.subr.bf16.mxu0 0
        %2447 = vmatpush2.bf16.msra.mxu0 0
        %2448 = vmatprep.mubr.bf16.mxu0 0
        %2449 = vmatmul.mubr.bf16.gmra.mxu0 %v2414
        %v2450 = vpop.f32.mrf.mxu0
        %v2451 = vadd.f32 %v2399, %v2450
        %v2452 = vpop.f32.mrf.mxu0
        %v2453 = vpop.f32.mrf.mxu0
        %v2454 = vpop.f32.mrf.mxu0
        %2455 = vdwg.mxu0
        %v2456 = vmax.f32 %v2451, 0.0
        %v2457 = vpack.c.bf16 %v2456, %v2456
        %v2458 = vld [vmem:[%s838] sm:$0xf]
        %v2459 = vld [vmem:[%s838 + $0x4] sm:$0xf]
        %v2460 = vld [vmem:[%s838 + $0x8] sm:$0xf]
        %v2461 = vld [vmem:[%s838 + $0xc] sm:$0xf]
        %v2462 = vld [vmem:[%s838 + $0x10] sm:$0xf]
        %v2463 = vld [vmem:[%s838 + $0x14] sm:$0xf]
        %v2464 = vld [vmem:[%s838 + $0x18] sm:$0xf]
        %v2465 = vld [vmem:[%s838 + $0x1c] sm:$0xf]
        %v2466 = vld [vmem:[%s838 + $0x20] sm:$0xf]
        %v2467 = vld [vmem:[%s838 + $0x24] sm:$0xf]
        %v2468 = vld [vmem:[%s838 + $0x28] sm:$0xf]
        %v2469 = vld [vmem:[%s838 + $0x2c] sm:$0xf]
        %v2470 = vld [vmem:[%s838 + $0x30] sm:$0xf]
        %v2471 = vld [vmem:[%s838 + $0x34] sm:$0xf]
        %v2472 = vld [vmem:[%s838 + $0x38] sm:$0xf]
        %v2473 = vld [vmem:[%s838 + $0x3c] sm:$0xf]
        %v2474 = vlaneseq
        %v2475 = vshrl.u32 %v2474, 7
        %v2476 = vsub.s32 3, %v2475
        %v2477 = vrot.slane %v859, %v2476
        %v2494 = vunpack.c.l.b16 %v2458
        %v2495 = vunpack.c.l.b16 %v2459
        %v2496 = vunpack.c.l.b16 %v2460
        %v2497 = vunpack.c.l.b16 %v2461
        %v2498 = vunpack.c.l.b16 %v2462
        %v2499 = vunpack.c.l.b16 %v2463
        %v2500 = vunpack.c.l.b16 %v2464
        %v2501 = vunpack.c.l.b16 %v2465
        %v2502 = vunpack.c.l.b16 %v2466
        %v2503 = vunpack.c.l.b16 %v2467
        %v2504 = vunpack.c.l.b16 %v2468
        %v2505 = vunpack.c.l.b16 %v2469
        %v2506 = vunpack.c.l.b16 %v2470
        %v2507 = vunpack.c.l.b16 %v2471
        %v2508 = vunpack.c.l.b16 %v2472
        %v2509 = vunpack.c.l.b16 %v2473
        %v2510 = vpack.c.b16 %v2495, %v2494
        %v2511 = vpack.c.b16 %v2497, %v2496
        %v2512 = vpack.c.b16 %v2499, %v2498
        %v2513 = vpack.c.b16 %v2501, %v2500
        %v2514 = vpack.c.b16 %v2503, %v2502
        %v2515 = vpack.c.b16 %v2505, %v2504
        %v2516 = vpack.c.b16 %v2507, %v2506
        %v2517 = vpack.c.b16 %v2509, %v2508
        %2526 = vmatprep.subr.bf16.mxu0 0
        %2527 = vmatpush1.bf16.msra.mxu0 %v2517
        %2528 = vmatprep.subr.bf16.mxu0 0
        %2529 = vmatpush1.bf16.msra.mxu0 %v2516
        %2530 = vmatprep.subr.bf16.mxu0 0
        %2531 = vmatpush1.bf16.msra.mxu0 %v2515
        %2532 = vmatprep.subr.bf16.mxu0 0
        %2533 = vmatpush1.bf16.msra.mxu0 %v2514
        %2534 = vmatprep.subr.bf16.mxu0 0
        %2535 = vmatpush1.bf16.msra.mxu0 %v2513
        %2536 = vmatprep.subr.bf16.mxu0 0
        %2537 = vmatpush1.bf16.msra.mxu0 %v2512
        %2538 = vmatprep.subr.bf16.mxu0 0
        %2539 = vmatpush1.bf16.msra.mxu0 %v2511
        %2540 = vmatprep.subr.bf16.mxu0 0
        %2541 = vmatpush1.bf16.msra.mxu0 %v2510
        %2542 = vmatprep.subr.bf16.mxu0 0
        %2543 = vmatpush2.bf16.msra.mxu0 0
        %2544 = vmatprep.subr.bf16.mxu0 0
        %2545 = vmatpush2.bf16.msra.mxu0 0
        %2546 = vmatprep.subr.bf16.mxu0 0
        %2547 = vmatpush2.bf16.msra.mxu0 0
        %2548 = vmatprep.subr.bf16.mxu0 0
        %2549 = vmatpush2.bf16.msra.mxu0 0
        %2550 = vmatprep.subr.bf16.mxu0 0
        %2551 = vmatpush2.bf16.msra.mxu0 0
        %2552 = vmatprep.subr.bf16.mxu0 0
        %2553 = vmatpush2.bf16.msra.mxu0 0
        %2554 = vmatprep.subr.bf16.mxu0 0
        %2555 = vmatpush2.bf16.msra.mxu0 0
        %2556 = vmatprep.subr.bf16.mxu0 0
        %2557 = vmatpush2.bf16.msra.mxu0 0
        %2558 = vmatprep.mubr.bf16.mxu0 0
        %2559 = vmatmul.mubr.bf16.gmra.mxu0 %v2457
        %v2560 = vpop.f32.mrf.mxu0
        %v2561 = vadd.f32 %v2477, %v2560
        %v2562 = vpop.f32.mrf.mxu0
        %v2563 = vpop.f32.mrf.mxu0
        %v2564 = vpop.f32.mrf.mxu0
        %2565 = vdwg.mxu0
        %v2566 = vadd.f32 %v2388, %v2561
        %v2567 = vsel %vm885, %v2566, 0.0
        %2568 = vadd.xlane.f32.xlu0 %v2567
        %v2569 = vpop.xlane.xlu0 %2568
        %v2570 = vmul.f32 %v2569, %v1574
        %v2571 = vsub.f32 %v2566, %v2570
        %v2572 = vmul.f32 %v2571, %v2571
        %v2573 = vsel %vm885, %v2572, 0.0
        %2574 = vadd.xlane.f32.xlu0 %v2573
        %v2575 = vpop.xlane.xlu0 %2574
        %v2576 = vmul.f32 %v2575, %v1574
        %v2577 = vadd.f32 %v2576, 1e-05
        %v2578 = vrsqrt.pop %v2577
        %v2579 = vmul.f32 %v2571, %v2578
        %v2580 = vlaneseq
        %v2581 = vshrl.u32 %v2580, 7
        %v2582 = vsub.s32 4, %v2581
        %v2583 = vrot.slane %v860, %v2582
        %v2584 = vmul.f32 %v2579, %v2583
        %v2585 = vlaneseq
        %v2586 = vshrl.u32 %v2585, 7
        %v2587 = vsub.s32 5, %v2586
        %v2588 = vrot.slane %v860, %v2587
        %v2589 = vadd.f32 %v2584, %v2588
        %2590 = vst.msk [vmem:[#allocation2] sm:$0xff] %vm885, %v2589
        %p2591 = scmp.eq.s32.totalorder %s46, 1
        // Predicated region
        $region113: #{tpu_custom_call.1} parent=79 // pred_check
          %p2592 = pneg %p2591
        $region114: #{tpu_custom_call.1} parent=79 // pred_check_branch
          %2594 = sbr.rel (%p2592) target = $region116
        $region115: #{tpu_custom_call.1} parent=79 // pred_region
          %v2595 = vpack.c.bf16 %v2589, %v2589
          %v2596 = vld [vmem:[#allocation14] sm:$0xf]
          %v2597 = vld [vmem:[#allocation14 + $0x4] sm:$0xf]
          %v2598 = vld [vmem:[#allocation14 + $0x8] sm:$0xf]
          %v2599 = vld [vmem:[#allocation14 + $0xc] sm:$0xf]
          %v2600 = vld [vmem:[%s14] sm:$0x1]
          %v2602 = vlaneseq
          %v2603 = vshrl.u32 %v2602, 7
          %v2604 = vsub.s32 0, %v2603
          %v2605 = vrot.slane %v2600, %v2604
          %v2611 = vunpack.c.l.b16 %v2596
          %v2612 = vunpack.c.l.b16 %v2597
          %v2613 = vunpack.c.l.b16 %v2598
          %v2614 = vunpack.c.l.b16 %v2599
          %v2615 = vpack.c.b16 %v2612, %v2611
          %v2616 = vpack.c.b16 %v2614, %v2613
          %v2620 = vsel %vm885, %v2595, 0
          %2622 = vmatprep.subr.bf16.mxu0 0
          %2623 = vmatpush1.bf16.msra.mxu0 0
          %2624 = vmatprep.subr.bf16.mxu0 0
          %2625 = vmatpush1.bf16.msra.mxu0 0
          %2626 = vmatprep.subr.bf16.mxu0 0
          %2627 = vmatpush1.bf16.msra.mxu0 0
          %2628 = vmatprep.subr.bf16.mxu0 0
          %2629 = vmatpush1.bf16.msra.mxu0 0
          %2630 = vmatprep.subr.bf16.mxu0 0
          %2631 = vmatpush1.bf16.msra.mxu0 0
          %2632 = vmatprep.subr.bf16.mxu0 0
          %2633 = vmatpush1.bf16.msra.mxu0 0
          %2634 = vmatprep.subr.bf16.mxu0 0
          %2635 = vmatpush1.bf16.msra.mxu0 %v2616
          %2636 = vmatprep.subr.bf16.mxu0 0
          %2637 = vmatpush1.bf16.msra.mxu0 %v2615
          %2638 = vmatprep.subr.bf16.mxu0 0
          %2639 = vmatpush2.bf16.msra.mxu0 0
          %2640 = vmatprep.subr.bf16.mxu0 0
          %2641 = vmatpush2.bf16.msra.mxu0 0
          %2642 = vmatprep.subr.bf16.mxu0 0
          %2643 = vmatpush2.bf16.msra.mxu0 0
          %2644 = vmatprep.subr.bf16.mxu0 0
          %2645 = vmatpush2.bf16.msra.mxu0 0
          %2646 = vmatprep.subr.bf16.mxu0 0
          %2647 = vmatpush2.bf16.msra.mxu0 0
          %2648 = vmatprep.subr.bf16.mxu0 0
          %2649 = vmatpush2.bf16.msra.mxu0 0
          %2650 = vmatprep.subr.bf16.mxu0 0
          %2651 = vmatpush2.bf16.msra.mxu0 0
          %2652 = vmatprep.subr.bf16.mxu0 0
          %2653 = vmatpush2.bf16.msra.mxu0 0
          %2654 = vmatprep.mubr.bf16.mxu0 0
          %2655 = vmatmul.mubr.bf16.gmra.mxu0 %v2620
          %v2656 = vpop.f32.mrf.mxu0
          %v2657 = vadd.f32 %v2605, %v2656
          %v2658 = vpop.f32.mrf.mxu0
          %v2659 = vpop.f32.mrf.mxu0
          %v2660 = vpop.f32.mrf.mxu0
          %2661 = vdwg.mxu0
          %2662 = vst [vmem:[%s809] sm:$0xff] %v2657
        $region116: #{tpu_custom_call.1} parent=79 // pred_fallthru
          _
        %s2663 = sand.u32 %s441, 1
        %s2664 = scalar_lea.sflag [#allocation5], %s2663
        %s2665 = sand.u32 %s441, 1
        %s2666 = smul.addr %s2665, 8
        %s2667 = scalar_lea.vmem [#allocation15], %s2666
        // Predicated region
        $region117: #{tpu_custom_call.1} parent=79 // pred_check
          %p2668 = pneg %p451
        $region118: #{tpu_custom_call.1} parent=79 // pred_check_branch
          %2670 = sbr.rel (%p2668) target = $region120
        $region119: #{tpu_custom_call.1} parent=79 // pred_region
          %s2672 = ssub.s32 128, 128
          %2673 = vsyncadd %s2664, %s2672
          %s2674 = smul.addr %s45, 128
          %s2675 = scalar_lea.hbm %s15, %s2674
          %s2677 = sshll.u32 %s2667, 4
          %s2678 = int_to_ptr.vmem [resolvable:$true] %s2677
          %2680 = dma.vmem_to_hbm [thread:$0]  %s2678, 128, %s2675, %s2664
        $region120: #{tpu_custom_call.1} parent=79 // pred_fallthru
          _
      $region80: #{tpu_custom_call.1} parent=5 // pred_fallthru
        _
      %p2681 = scmp.le.s32.totalorder 2, %s36
      // Predicated region
      $region121: #{tpu_custom_call.1} parent=5 // pred_check
        %p2682 = pneg %p2681
      $region122: #{tpu_custom_call.1} parent=5 // pred_check_branch
        %2684 = sbr.rel (%p2682) target = $region124
      $region123: #{tpu_custom_call.1} parent=5 // pred_region
        %s2685 = ssub.s32 %s36, 2
        // Predicated region
        $region125: #{tpu_custom_call.1} parent=123 // pred_check
          %p2686 = pneg %p457
        $region126: #{tpu_custom_call.1} parent=123 // pred_check_branch
          %2688 = sbr.rel (%p2686) target = $region128
        $region127: #{tpu_custom_call.1} parent=123 // pred_region
          %s2689 = sand.u32 %s442, 1
          %s2690 = scalar_lea.sflag [#allocation5], %s2689
          %s2691 = sand.u32 %s442, 1
          %s2692 = smul.addr %s2691, 8
          %s2693 = scalar_lea.vmem [#allocation15], %s2692
          %2694 = dma.done %s2690, 128
        $region128: #{tpu_custom_call.1} parent=123 // pred_fallthru
          _
      $region124: #{tpu_custom_call.1} parent=5 // pred_fallthru
        _
    $region6: #{tpu_custom_call.1} parent=1 // loop_footer
      %s40 = sadd.s32 1, %s36
    $region7: #{tpu_custom_call.1} parent=1 // loop_footer_branch
      %35 = sbr.rel target = $region3
    $region8: #{tpu_custom_call.1} parent=1 // loop_exit
      _
    %2695 = vsyncpa [#allocation4], 1
    %s2696 = scalar_lea.sflag [#allocation4], 1
    %2697 = vsyncpa %s2696, 1
    %2698 = vsyncpa [#allocation7], 1
    %s2699 = scalar_lea.sflag [#allocation7], 1
    %2700 = vsyncpa %s2699, 1
    %2701 = vsyncpa [#allocation10], 1
    %s2702 = scalar_lea.sflag [#allocation10], 1
    %2703 = vsyncpa %s2702, 1
    %2704 = vsyncpa [#allocation13], 1
    %s2705 = scalar_lea.sflag [#allocation13], 1
    %2706 = vsyncpa %s2705, 1
    %2707 = vsyncpa [#allocation5], 1
    %s2708 = scalar_lea.sflag [#allocation5], 1
    %2709 = vsyncpa %s2708, 1

</llo_original>
